<compile_context>
chip_gen: v6e
topology: v6e:2x2x1
jax: 0.10.0
libtpu: 0.0.40
codegen_flags: <defaults>
</compile_context>

<pallas_src>
import functools
import math

import jax
import jax.numpy as jnp
from jax.experimental import pallas as pl
from jax.experimental.pallas import tpu as pltpu


def _layernorm(x, gamma, beta, eps=1e-5):
    mean = jnp.mean(x, axis=-1, keepdims=True)
    var = jnp.mean((x - mean) ** 2, axis=-1, keepdims=True)
    inv = jax.lax.rsqrt(var + eps)
    return (x - mean) * inv * gamma + beta


def _gelu_exact(x):
    # PyTorch nn.GELU() default: exact erf-based GELU.
    return 0.5 * x * (1.0 + jax.lax.erf(x * (1.0 / math.sqrt(2.0))))


def transformer_kernel(n_heads, matmul_dtype, exp_dtype, approx_recip,
                       x_ref, wqkv_ref, wo_ref, bo_ref,
                       ln1_g_ref, ln1_b_ref,
                       ffln1_g_ref, ffln1_b_ref, w1_ref, b1_ref,
                       ffln2_g_ref, ffln2_b_ref, w2_ref, b2_ref,
                       ln2_g_ref, ln2_b_ref,
                       o_ref):
    Bt, S, E = x_ref.shape
    hd = E // n_heads
    R = Bt * S

    # All tokens of this block as one (R, E) row slab -> full-height MXU matmuls.
    x_mm = x_ref[...].reshape(R, E).astype(matmul_dtype)

    # --- fused QKV projection: one (R, E) x (E, 3E) matmul ---
    qkv = jnp.dot(x_mm, wqkv_ref[...], preferred_element_type=jnp.float32)
    q = qkv[:, :E].astype(matmul_dtype).reshape(Bt, S, E)
    k = qkv[:, E:2 * E].astype(matmul_dtype).reshape(Bt, S, E)
    v = qkv[:, 2 * E:].astype(matmul_dtype).reshape(Bt, S, E)

    # --- per-head attention (NO 1/sqrt(hd) scaling, per the reference),
    #     batched over the Bt batch elements of this block.  Each head's
    #     output is folded straight into the output projection via
    #     attn_proj += o_h @ wo[h*hd:(h+1)*hd, :], which avoids concatenating
    #     sub-128-lane head outputs and bounds each head's temporaries to one
    #     accumulation step.  n_heads is static and small, so the Python loop
    #     unrolls; the single f32 accumulator is the only value carried. ---
    attn_proj = jnp.zeros((R, E), jnp.float32)
    for h in range(n_heads):
        lo, hi = h * hd, (h + 1) * hd
        qh, kh, vh = q[:, :, lo:hi], k[:, :, lo:hi], v[:, :, lo:hi]
        s = jnp.einsum('bqd,bkd->bqk', qh, kh,
                       preferred_element_type=jnp.float32)       # (Bt, S, S)
        s = s - jnp.max(s, axis=-1, keepdims=True)
        # bf16 exp on the performance path (EUP throughput); f32 sum/acc.
        p = jnp.exp(s.astype(exp_dtype))
        denom = jnp.sum(p, axis=-1, keepdims=True, dtype=jnp.float32)
        o_h = jnp.einsum('bqk,bkd->bqd', p.astype(matmul_dtype), vh,
                         preferred_element_type=jnp.float32)     # (Bt, S, hd)
        if approx_recip:
            o_h = o_h * pl.reciprocal(denom, approx=True)
        else:
            o_h = o_h / denom
        attn_proj = attn_proj + jnp.dot(
            o_h.reshape(R, hd).astype(matmul_dtype),
            wo_ref[lo:hi, :],
            preferred_element_type=jnp.float32)

    # --- output projection bias + residual + LayerNorm (re-read x from the
    #     resident input block; don't keep an f32 slab live from the top) ---
    x_res = x_ref[...].reshape(R, E).astype(jnp.float32)
    out = _layernorm(attn_proj + bo_ref[...] + x_res,
                     ln1_g_ref[...], ln1_b_ref[...])

    # --- feed-forward: GELU -> LN(E) -> Linear(E->H) -> GELU -> LN(H) -> Linear(H->E)
    h1 = _gelu_exact(out)
    h1 = _layernorm(h1, ffln1_g_ref[...], ffln1_b_ref[...])
    h1 = jnp.dot(h1.astype(matmul_dtype), w1_ref[...],
                 preferred_element_type=jnp.float32) + b1_ref[...]
    h1 = _gelu_exact(h1)
    h1 = _layernorm(h1, ffln2_g_ref[...], ffln2_b_ref[...])
    ff = jnp.dot(h1.astype(matmul_dtype), w2_ref[...],
                 preferred_element_type=jnp.float32) + b2_ref[...]

    # --- second residual uses the ORIGINAL input x (as in the reference);
    #     re-read it again instead of keeping it live ---
    x_res2 = x_ref[...].reshape(R, E).astype(jnp.float32)
    out2 = _layernorm(ff + x_res2, ln2_g_ref[...], ln2_b_ref[...])
    o_ref[...] = out2.reshape(Bt, S, E).astype(o_ref.dtype)


def _tpu_memory_budget():
    """Generation-aware (vmem_limit_bytes, target_rows)."""
    try:
        info = pltpu.get_tpu_info()
        cap = int(getattr(info, 'vmem_capacity_bytes', 0) or 0)
    except Exception:
        cap = 0
    if cap <= 0:
        # Conservative defaults that fit every generation (v7x has 64 MiB).
        return 48 * 1024 * 1024, 256
    if cap <= 64 * 1024 * 1024:
        # v7x-class: 64 MiB per TensorCore -> leave headroom for internal
        # scratch and the double-buffered activation blocks.
        return max(cap - 16 * 1024 * 1024, 32 * 1024 * 1024), 256
    # v5e / v6e: 128 MiB physical -> allow bigger row slabs.
    return min(cap - 24 * 1024 * 1024, 104 * 1024 * 1024), 512


def _pick_batch_tile(B, S, target_rows=256, min_rows=128):
    """Largest Bt dividing B with Bt*S ~<= target_rows; prefer >=2 grid steps
    (v7x has 2 TensorCores) when each step would still have >= min_rows rows."""
    bt = max(1, min(B, max(1, target_rows // max(S, 1))))
    while B % bt:
        bt -= 1
    if bt == B and B >= 2 and (B // 2) * S >= min_rows:
        bt2 = B // 2
        while B % bt2:
            bt2 -= 1
        bt = bt2
    return bt


def transformer_forward(x, w, n_heads, *, matmul_dtype=jnp.bfloat16,
                        batch_tile=None, exp_dtype=None):
    B, S, E = x.shape
    H = w['w1'].shape[1]
    assert E % n_heads == 0

    vmem_limit, target_rows = _tpu_memory_budget()
    Bt = batch_tile if batch_tile is not None else _pick_batch_tile(B, S, target_rows)
    assert B % Bt == 0

    perf_path = (matmul_dtype != jnp.float32)
    approx_recip = perf_path
    if exp_dtype is None:
        # bf16 exp only on the performance path (v6e/v7x win; neutral on v5e);
        # the strict f32 path stays exact end-to-end.
        exp_dtype = jnp.bfloat16 if perf_path else jnp.float32

    # Fuse QKV weights; cast matmul weights to the matmul dtype once here.
    wqkv = jnp.concatenate([w['wq'], w['wk'], w['wv']], axis=1).astype(matmul_dtype)
    wo = w['wo'].astype(matmul_dtype)
    w1 = w['w1'].astype(matmul_dtype)
    w2 = w['w2'].astype(matmul_dtype)

    ws = [wqkv, wo, w['bo'],
          w['ln1_g'], w['ln1_b'],
          w['ffln1_g'], w['ffln1_b'], w1, w['b1'],
          w['ffln2_g'], w['ffln2_b'], w2, w['b2'],
          w['ln2_g'], w['ln2_b']]

    flops = int(2 * B * S * E * (3 * E)          # fused QKV projection
                + 4 * B * S * S * E              # q@k^T and p@v over all heads
                + 2 * B * S * E * E              # output projection
                + 4 * B * S * E * H)             # two FFN matmuls
    transcendentals = int(B * n_heads * S * S + 2 * B * S * (E + H))
    bytes_accessed = int(2 * x.size * x.dtype.itemsize
                         + sum(a.size * a.dtype.itemsize for a in ws))

    kernel = functools.partial(transformer_kernel, n_heads, matmul_dtype,
                               exp_dtype, approx_recip)

    def call(single_buffer_weights):
        def full_spec(arr):
            nd = arr.ndim
            if single_buffer_weights:
                # Constant index_map -> DMA'd once; a single VMEM buffer is
                # enough (halves the resident-weight footprint).
                return pl.BlockSpec(arr.shape, lambda b, _nd=nd: (0,) * _nd,
                                    pipeline_mode=pl.Buffered(1))
            return pl.BlockSpec(arr.shape, lambda b, _nd=nd: (0,) * _nd)

        in_specs = ([pl.BlockSpec((Bt, S, E), lambda b: (b, 0, 0))]
                    + [full_spec(a) for a in ws])
        out_spec = pl.BlockSpec((Bt, S, E), lambda b: (b, 0, 0))

        return pl.pallas_call(
            kernel,
            out_shape=jax.ShapeDtypeStruct((B, S, E), x.dtype),
            grid=(B // Bt,),
            in_specs=in_specs,
            out_specs=out_spec,
            compiler_params=pltpu.CompilerParams(
                dimension_semantics=("parallel",),
                vmem_limit_bytes=int(vmem_limit)),
            cost_estimate=pl.CostEstimate(flops=flops,
                                          transcendentals=transcendentals,
                                          bytes_accessed=bytes_accessed),
        )(x, *ws)

    try:
        return call(True)
    except Exception:
        # Fallback if this jax version rejects pipeline_mode=pl.Buffered(1)
        # on top-level BlockSpecs: use the default double-buffered specs.
        return call(False)


def ref_forward(x, w, n_heads):
    # Pure-JAX reference mirroring the PyTorch forward (f32 everywhere).
    B, S, E = x.shape
    hd = E // n_heads
    q = (x @ w['wq']).reshape(B, S, n_heads, hd)
    k = (x @ w['wk']).reshape(B, S, n_heads, hd)
    v = (x @ w['wv']).reshape(B, S, n_heads, hd)
    scores = jnp.einsum('bqhd,bkhd->bhqk', q, k)
    scores = jax.nn.softmax(scores, axis=-1)
    out = jnp.einsum('bhqk,bkhd->bqhd', scores, v).reshape(B, S, E)
    out = out @ w['wo'] + w['bo']
    out = _layernorm(out + x, w['ln1_g'], w['ln1_b'])
    h1 = _gelu_exact(out)
    h1 = _layernorm(h1, w['ffln1_g'], w['ffln1_b'])
    h1 = h1 @ w['w1'] + w['b1']
    h1 = _gelu_exact(h1)
    h1 = _layernorm(h1, w['ffln2_g'], w['ffln2_b'])
    ff = h1 @ w['w2'] + w['b2']
    return _layernorm(ff + x, w['ln2_g'], w['ln2_b'])


def init_weights(key, E, H):
    ks = jax.random.split(key, 8)
    s = 0.05
    return {
        'wq': jax.random.normal(ks[0], (E, E), jnp.float32) * s,
        'wk': jax.random.normal(ks[1], (E, E), jnp.float32) * s,
        'wv': jax.random.normal(ks[2], (E, E), jnp.float32) * s,
        'wo': jax.random.normal(ks[3], (E, E), jnp.float32) * s,
        'bo': jax.random.normal(ks[4], (1, E), jnp.float32) * s,
        'ln1_g': jnp.ones((1, E), jnp.float32),
        'ln1_b': jnp.zeros((1, E), jnp.float32),
        'ffln1_g': jnp.ones((1, E), jnp.float32),
        'ffln1_b': jnp.zeros((1, E), jnp.float32),
        'w1': jax.random.normal(ks[5], (E, H), jnp.float32) * s,
        'b1': jax.random.normal(ks[6], (1, H), jnp.float32) * s,
        'ffln2_g': jnp.ones((1, H), jnp.float32),
        'ffln2_b': jnp.zeros((1, H), jnp.float32),
        'w2': jax.random.normal(ks[7], (H, E), jnp.float32) * s,
        'b2': jnp.zeros((1, E), jnp.float32),
        'ln2_g': jnp.ones((1, E), jnp.float32),
        'ln2_b': jnp.zeros((1, E), jnp.float32),
    }


if __name__ == "__main__":
    # Small shapes consistent with the module: (batch, seq_len, embed_size),
    # hidden = 2 * embed and head_dim = 32 (like 512/1024/16 in the reference).
    B, S, E, H, N_HEADS = 2, 8, 128, 256, 4

    key = jax.random.PRNGKey(0)
    kx, kw = jax.random.split(key)
    x = jax.random.normal(kx, (B, S, E), jnp.float32)
    weights = init_weights(kw, E, H)

    ref = jax.block_until_ready(ref_forward(x, weights, N_HEADS))

    # Strict-correctness path: f32 matmuls, f32 exp, exact divide.
    out_f32 = jax.block_until_ready(
        transformer_forward(x, weights, N_HEADS, matmul_dtype=jnp.float32))
    assert out_f32.shape == (B, S, E)
    assert jnp.allclose(out_f32, ref, rtol=1e-3, atol=1e-3), (
        f"f32 mismatch: max abs err {jnp.max(jnp.abs(out_f32 - ref))}")

    # Performance path: bf16 matmul operands + bf16 exp, f32 accumulation.
    out_bf16 = jax.block_until_ready(
        transformer_forward(x, weights, N_HEADS, matmul_dtype=jnp.bfloat16))
    max_err = float(jnp.max(jnp.abs(out_bf16.astype(jnp.float32) - ref)))
    assert max_err < 0.3, f"bf16 path drifted too far: max abs err {max_err}"

    print("KERNEL_OK")
</pallas_src>

<mosaic_0001>
module attributes {stable_mosaic.version = 11 : i64} {
  func.func @transformer_kernel(%arg0: i32, %arg1: memref<2x8x128xf32, #tpu.memory_space<vmem>>, %arg2: memref<128x384xf32, #tpu.memory_space<vmem>>, %arg3: memref<128x128xf32, #tpu.memory_space<vmem>>, %arg4: memref<1x128xf32, #tpu.memory_space<vmem>>, %arg5: memref<1x128xf32, #tpu.memory_space<vmem>>, %arg6: memref<1x128xf32, #tpu.memory_space<vmem>>, %arg7: memref<1x128xf32, #tpu.memory_space<vmem>>, %arg8: memref<1x128xf32, #tpu.memory_space<vmem>>, %arg9: memref<128x256xf32, #tpu.memory_space<vmem>>, %arg10: memref<1x256xf32, #tpu.memory_space<vmem>>, %arg11: memref<1x256xf32, #tpu.memory_space<vmem>>, %arg12: memref<1x256xf32, #tpu.memory_space<vmem>>, %arg13: memref<256x128xf32, #tpu.memory_space<vmem>>, %arg14: memref<1x128xf32, #tpu.memory_space<vmem>>, %arg15: memref<1x128xf32, #tpu.memory_space<vmem>>, %arg16: memref<1x128xf32, #tpu.memory_space<vmem>>, %arg17: memref<2x8x128xf32, #tpu.memory_space<vmem>>) attributes {dimension_semantics = [#tpu.dimension_semantics<parallel>], iteration_bounds = array<i64: 1>, scalar_prefetch = 0 : i64, scratch_operands = 0 : i64, tpu.core_type = #tpu.core_type<tc>, window_params = [{transform_indices = @transform_0, window_bounds = array<i64: 2, 8, 128>}, {pipeline_mode = #tpu.pipeline_mode<synchronous>, transform_indices = @transform_1, window_bounds = array<i64: 128, 384>}, {pipeline_mode = #tpu.pipeline_mode<synchronous>, transform_indices = @transform_2, window_bounds = array<i64: 128, 128>}, {pipeline_mode = #tpu.pipeline_mode<synchronous>, transform_indices = @transform_3, window_bounds = array<i64: 1, 128>}, {pipeline_mode = #tpu.pipeline_mode<synchronous>, transform_indices = @transform_4, window_bounds = array<i64: 1, 128>}, {pipeline_mode = #tpu.pipeline_mode<synchronous>, transform_indices = @transform_5, window_bounds = array<i64: 1, 128>}, {pipeline_mode = #tpu.pipeline_mode<synchronous>, transform_indices = @transform_6, window_bounds = array<i64: 1, 128>}, {pipeline_mode = #tpu.pipeline_mode<synchronous>, transform_indices = @transform_7, window_bounds = array<i64: 1, 128>}, {pipeline_mode = #tpu.pipeline_mode<synchronous>, transform_indices = @transform_8, window_bounds = array<i64: 128, 256>}, {pipeline_mode = #tpu.pipeline_mode<synchronous>, transform_indices = @transform_9, window_bounds = array<i64: 1, 256>}, {pipeline_mode = #tpu.pipeline_mode<synchronous>, transform_indices = @transform_10, window_bounds = array<i64: 1, 256>}, {pipeline_mode = #tpu.pipeline_mode<synchronous>, transform_indices = @transform_11, window_bounds = array<i64: 1, 256>}, {pipeline_mode = #tpu.pipeline_mode<synchronous>, transform_indices = @transform_12, window_bounds = array<i64: 256, 128>}, {pipeline_mode = #tpu.pipeline_mode<synchronous>, transform_indices = @transform_13, window_bounds = array<i64: 1, 128>}, {pipeline_mode = #tpu.pipeline_mode<synchronous>, transform_indices = @transform_14, window_bounds = array<i64: 1, 128>}, {pipeline_mode = #tpu.pipeline_mode<synchronous>, transform_indices = @transform_15, window_bounds = array<i64: 1, 128>}, {transform_indices = @transform_16, window_bounds = array<i64: 2, 8, 128>}]} {
    %c0 = arith.constant 0 : index
    %c0_0 = arith.constant 0 : index
    %c0_1 = arith.constant 0 : index
    %0 = vector.load %arg1[%c0, %c0_0, %c0_1] : memref<2x8x128xf32, #tpu.memory_space<vmem>>, vector<2x8x128xf32>
    %1 = vector.shape_cast %0 : vector<2x8x128xf32> to vector<16x128xf32>
    %c0_2 = arith.constant 0 : index
    %c0_3 = arith.constant 0 : index
    %2 = vector.load %arg2[%c0_2, %c0_3] : memref<128x384xf32, #tpu.memory_space<vmem>>, vector<128x384xf32>
    %cst = arith.constant dense<0.000000e+00> : vector<16x384xf32>
    %3 = tpu.matmul %1, %2, %cst {dimension_numbers = #tpu.dot_dimension_numbers<[1], [0], [0], [1], [0, 0, 1, 1], [], []>} : vector<16x128xf32>, vector<128x384xf32>, vector<16x384xf32> -> vector<16x384xf32>
    %4 = vector.extract_strided_slice %3 {offsets = [0, 0], sizes = [16, 128], strides = [1, 1]} : vector<16x384xf32> to vector<16x128xf32>
    %5 = vector.shape_cast %4 : vector<16x128xf32> to vector<2x8x128xf32>
    %6 = vector.extract_strided_slice %3 {offsets = [0, 128], sizes = [16, 128], strides = [1, 1]} : vector<16x384xf32> to vector<16x128xf32>
    %7 = vector.shape_cast %6 : vector<16x128xf32> to vector<2x8x128xf32>
    %8 = vector.extract_strided_slice %3 {offsets = [0, 256], sizes = [16, 128], strides = [1, 1]} : vector<16x384xf32> to vector<16x128xf32>
    %9 = vector.shape_cast %8 : vector<16x128xf32> to vector<2x8x128xf32>
    %cst_4 = arith.constant 0.000000e+00 : f32
    %10 = vector.broadcast %cst_4 : f32 to vector<16x128xf32>
    %11 = vector.extract_strided_slice %5 {offsets = [0, 0, 0], sizes = [2, 8, 32], strides = [1, 1, 1]} : vector<2x8x128xf32> to vector<2x8x32xf32>
    %12 = vector.extract_strided_slice %7 {offsets = [0, 0, 0], sizes = [2, 8, 32], strides = [1, 1, 1]} : vector<2x8x128xf32> to vector<2x8x32xf32>
    %13 = vector.extract_strided_slice %9 {offsets = [0, 0, 0], sizes = [2, 8, 32], strides = [1, 1, 1]} : vector<2x8x128xf32> to vector<2x8x32xf32>
    "tpu.trace_start"() <{level = 10 : i32, message = "bqd,bkd->bqk"}> : () -> ()
    %cst_5 = arith.constant dense<0.000000e+00> : vector<2x8x8xf32>
    %14 = tpu.matmul %11, %12, %cst_5 {dimension_numbers = #tpu.dot_dimension_numbers<[2], [2], [1], [1], [0, 0, 0, 1, 1, 1], [0], [0]>} : vector<2x8x32xf32>, vector<2x8x32xf32>, vector<2x8x8xf32> -> vector<2x8x8xf32>
    "tpu.trace_stop"() : () -> ()
    %cst_6 = arith.constant dense<0xFF800000> : vector<2x8xf32>
    %15 = vector.multi_reduction <maximumf>, %14, %cst_6 [2] : vector<2x8x8xf32> to vector<2x8xf32>
    %16 = vector.shape_cast %15 : vector<2x8xf32> to vector<2x8x1xf32>
    %17 = vector.broadcast %16 : vector<2x8x1xf32> to vector<2x8x8xf32>
    %18 = arith.subf %14, %17 : vector<2x8x8xf32>
    %19 = math.exp %18 : vector<2x8x8xf32>
    %cst_7 = arith.constant dense<0.000000e+00> : vector<2x8xf32>
    %20 = vector.multi_reduction <add>, %19, %cst_7 [2] : vector<2x8x8xf32> to vector<2x8xf32>
    %21 = vector.shape_cast %20 : vector<2x8xf32> to vector<2x8x1xf32>
    "tpu.trace_start"() <{level = 10 : i32, message = "bqk,bkd->bqd"}> : () -> ()
    %cst_8 = arith.constant dense<0.000000e+00> : vector<2x8x32xf32>
    %22 = tpu.matmul %19, %13, %cst_8 {dimension_numbers = #tpu.dot_dimension_numbers<[2], [1], [1], [2], [0, 0, 0, 1, 1, 2], [0], [0]>} : vector<2x8x8xf32>, vector<2x8x32xf32>, vector<2x8x32xf32> -> vector<2x8x32xf32>
    "tpu.trace_stop"() : () -> ()
    %23 = vector.broadcast %21 : vector<2x8x1xf32> to vector<2x8x32xf32>
    %24 = arith.divf %22, %23 : vector<2x8x32xf32>
    %25 = vector.shape_cast %24 : vector<2x8x32xf32> to vector<16x32xf32>
    %c0_9 = arith.constant 0 : index
    %c0_10 = arith.constant 0 : index
    %26 = vector.load %arg3[%c0_9, %c0_10] : memref<128x128xf32, #tpu.memory_space<vmem>>, vector<32x128xf32>
    %cst_11 = arith.constant dense<0.000000e+00> : vector<16x128xf32>
    %27 = tpu.matmul %25, %26, %cst_11 {dimension_numbers = #tpu.dot_dimension_numbers<[1], [0], [0], [1], [0, 0, 1, 1], [], []>} : vector<16x32xf32>, vector<32x128xf32>, vector<16x128xf32> -> vector<16x128xf32>
    %28 = arith.addf %10, %27 : vector<16x128xf32>
    %29 = vector.extract_strided_slice %5 {offsets = [0, 0, 32], sizes = [2, 8, 32], strides = [1, 1, 1]} : vector<2x8x128xf32> to vector<2x8x32xf32>
    %30 = vector.extract_strided_slice %7 {offsets = [0, 0, 32], sizes = [2, 8, 32], strides = [1, 1, 1]} : vector<2x8x128xf32> to vector<2x8x32xf32>
    %31 = vector.extract_strided_slice %9 {offsets = [0, 0, 32], sizes = [2, 8, 32], strides = [1, 1, 1]} : vector<2x8x128xf32> to vector<2x8x32xf32>
    "tpu.trace_start"() <{level = 10 : i32, message = "bqd,bkd->bqk"}> : () -> ()
    %cst_12 = arith.constant dense<0.000000e+00> : vector<2x8x8xf32>
    %32 = tpu.matmul %29, %30, %cst_12 {dimension_numbers = #tpu.dot_dimension_numbers<[2], [2], [1], [1], [0, 0, 0, 1, 1, 1], [0], [0]>} : vector<2x8x32xf32>, vector<2x8x32xf32>, vector<2x8x8xf32> -> vector<2x8x8xf32>
    "tpu.trace_stop"() : () -> ()
    %cst_13 = arith.constant dense<0xFF800000> : vector<2x8xf32>
    %33 = vector.multi_reduction <maximumf>, %32, %cst_13 [2] : vector<2x8x8xf32> to vector<2x8xf32>
    %34 = vector.shape_cast %33 : vector<2x8xf32> to vector<2x8x1xf32>
    %35 = vector.broadcast %34 : vector<2x8x1xf32> to vector<2x8x8xf32>
    %36 = arith.subf %32, %35 : vector<2x8x8xf32>
    %37 = math.exp %36 : vector<2x8x8xf32>
    %cst_14 = arith.constant dense<0.000000e+00> : vector<2x8xf32>
    %38 = vector.multi_reduction <add>, %37, %cst_14 [2] : vector<2x8x8xf32> to vector<2x8xf32>
    %39 = vector.shape_cast %38 : vector<2x8xf32> to vector<2x8x1xf32>
    "tpu.trace_start"() <{level = 10 : i32, message = "bqk,bkd->bqd"}> : () -> ()
    %cst_15 = arith.constant dense<0.000000e+00> : vector<2x8x32xf32>
    %40 = tpu.matmul %37, %31, %cst_15 {dimension_numbers = #tpu.dot_dimension_numbers<[2], [1], [1], [2], [0, 0, 0, 1, 1, 2], [0], [0]>} : vector<2x8x8xf32>, vector<2x8x32xf32>, vector<2x8x32xf32> -> vector<2x8x32xf32>
    "tpu.trace_stop"() : () -> ()
    %41 = vector.broadcast %39 : vector<2x8x1xf32> to vector<2x8x32xf32>
    %42 = arith.divf %40, %41 : vector<2x8x32xf32>
    %43 = vector.shape_cast %42 : vector<2x8x32xf32> to vector<16x32xf32>
    %c32 = arith.constant 32 : index
    %c0_16 = arith.constant 0 : index
    %44 = vector.load %arg3[%c32, %c0_16] : memref<128x128xf32, #tpu.memory_space<vmem>>, vector<32x128xf32>
    %cst_17 = arith.constant dense<0.000000e+00> : vector<16x128xf32>
    %45 = tpu.matmul %43, %44, %cst_17 {dimension_numbers = #tpu.dot_dimension_numbers<[1], [0], [0], [1], [0, 0, 1, 1], [], []>} : vector<16x32xf32>, vector<32x128xf32>, vector<16x128xf32> -> vector<16x128xf32>
    %46 = arith.addf %28, %45 : vector<16x128xf32>
    %47 = vector.extract_strided_slice %5 {offsets = [0, 0, 64], sizes = [2, 8, 32], strides = [1, 1, 1]} : vector<2x8x128xf32> to vector<2x8x32xf32>
    %48 = vector.extract_strided_slice %7 {offsets = [0, 0, 64], sizes = [2, 8, 32], strides = [1, 1, 1]} : vector<2x8x128xf32> to vector<2x8x32xf32>
    %49 = vector.extract_strided_slice %9 {offsets = [0, 0, 64], sizes = [2, 8, 32], strides = [1, 1, 1]} : vector<2x8x128xf32> to vector<2x8x32xf32>
    "tpu.trace_start"() <{level = 10 : i32, message = "bqd,bkd->bqk"}> : () -> ()
    %cst_18 = arith.constant dense<0.000000e+00> : vector<2x8x8xf32>
    %50 = tpu.matmul %47, %48, %cst_18 {dimension_numbers = #tpu.dot_dimension_numbers<[2], [2], [1], [1], [0, 0, 0, 1, 1, 1], [0], [0]>} : vector<2x8x32xf32>, vector<2x8x32xf32>, vector<2x8x8xf32> -> vector<2x8x8xf32>
    "tpu.trace_stop"() : () -> ()
    %cst_19 = arith.constant dense<0xFF800000> : vector<2x8xf32>
    %51 = vector.multi_reduction <maximumf>, %50, %cst_19 [2] : vector<2x8x8xf32> to vector<2x8xf32>
    %52 = vector.shape_cast %51 : vector<2x8xf32> to vector<2x8x1xf32>
    %53 = vector.broadcast %52 : vector<2x8x1xf32> to vector<2x8x8xf32>
    %54 = arith.subf %50, %53 : vector<2x8x8xf32>
    %55 = math.exp %54 : vector<2x8x8xf32>
    %cst_20 = arith.constant dense<0.000000e+00> : vector<2x8xf32>
    %56 = vector.multi_reduction <add>, %55, %cst_20 [2] : vector<2x8x8xf32> to vector<2x8xf32>
    %57 = vector.shape_cast %56 : vector<2x8xf32> to vector<2x8x1xf32>
    "tpu.trace_start"() <{level = 10 : i32, message = "bqk,bkd->bqd"}> : () -> ()
    %cst_21 = arith.constant dense<0.000000e+00> : vector<2x8x32xf32>
    %58 = tpu.matmul %55, %49, %cst_21 {dimension_numbers = #tpu.dot_dimension_numbers<[2], [1], [1], [2], [0, 0, 0, 1, 1, 2], [0], [0]>} : vector<2x8x8xf32>, vector<2x8x32xf32>, vector<2x8x32xf32> -> vector<2x8x32xf32>
    "tpu.trace_stop"() : () -> ()
    %59 = vector.broadcast %57 : vector<2x8x1xf32> to vector<2x8x32xf32>
    %60 = arith.divf %58, %59 : vector<2x8x32xf32>
    %61 = vector.shape_cast %60 : vector<2x8x32xf32> to vector<16x32xf32>
    %c64 = arith.constant 64 : index
    %c0_22 = arith.constant 0 : index
    %62 = vector.load %arg3[%c64, %c0_22] : memref<128x128xf32, #tpu.memory_space<vmem>>, vector<32x128xf32>
    %cst_23 = arith.constant dense<0.000000e+00> : vector<16x128xf32>
    %63 = tpu.matmul %61, %62, %cst_23 {dimension_numbers = #tpu.dot_dimension_numbers<[1], [0], [0], [1], [0, 0, 1, 1], [], []>} : vector<16x32xf32>, vector<32x128xf32>, vector<16x128xf32> -> vector<16x128xf32>
    %64 = arith.addf %46, %63 : vector<16x128xf32>
    %65 = vector.extract_strided_slice %5 {offsets = [0, 0, 96], sizes = [2, 8, 32], strides = [1, 1, 1]} : vector<2x8x128xf32> to vector<2x8x32xf32>
    %66 = vector.extract_strided_slice %7 {offsets = [0, 0, 96], sizes = [2, 8, 32], strides = [1, 1, 1]} : vector<2x8x128xf32> to vector<2x8x32xf32>
    %67 = vector.extract_strided_slice %9 {offsets = [0, 0, 96], sizes = [2, 8, 32], strides = [1, 1, 1]} : vector<2x8x128xf32> to vector<2x8x32xf32>
    "tpu.trace_start"() <{level = 10 : i32, message = "bqd,bkd->bqk"}> : () -> ()
    %cst_24 = arith.constant dense<0.000000e+00> : vector<2x8x8xf32>
    %68 = tpu.matmul %65, %66, %cst_24 {dimension_numbers = #tpu.dot_dimension_numbers<[2], [2], [1], [1], [0, 0, 0, 1, 1, 1], [0], [0]>} : vector<2x8x32xf32>, vector<2x8x32xf32>, vector<2x8x8xf32> -> vector<2x8x8xf32>
    "tpu.trace_stop"() : () -> ()
    %cst_25 = arith.constant dense<0xFF800000> : vector<2x8xf32>
    %69 = vector.multi_reduction <maximumf>, %68, %cst_25 [2] : vector<2x8x8xf32> to vector<2x8xf32>
    %70 = vector.shape_cast %69 : vector<2x8xf32> to vector<2x8x1xf32>
    %71 = vector.broadcast %70 : vector<2x8x1xf32> to vector<2x8x8xf32>
    %72 = arith.subf %68, %71 : vector<2x8x8xf32>
    %73 = math.exp %72 : vector<2x8x8xf32>
    %cst_26 = arith.constant dense<0.000000e+00> : vector<2x8xf32>
    %74 = vector.multi_reduction <add>, %73, %cst_26 [2] : vector<2x8x8xf32> to vector<2x8xf32>
    %75 = vector.shape_cast %74 : vector<2x8xf32> to vector<2x8x1xf32>
    "tpu.trace_start"() <{level = 10 : i32, message = "bqk,bkd->bqd"}> : () -> ()
    %cst_27 = arith.constant dense<0.000000e+00> : vector<2x8x32xf32>
    %76 = tpu.matmul %73, %67, %cst_27 {dimension_numbers = #tpu.dot_dimension_numbers<[2], [1], [1], [2], [0, 0, 0, 1, 1, 2], [0], [0]>} : vector<2x8x8xf32>, vector<2x8x32xf32>, vector<2x8x32xf32> -> vector<2x8x32xf32>
    "tpu.trace_stop"() : () -> ()
    %77 = vector.broadcast %75 : vector<2x8x1xf32> to vector<2x8x32xf32>
    %78 = arith.divf %76, %77 : vector<2x8x32xf32>
    %79 = vector.shape_cast %78 : vector<2x8x32xf32> to vector<16x32xf32>
    %c96 = arith.constant 96 : index
    %c0_28 = arith.constant 0 : index
    %80 = vector.load %arg3[%c96, %c0_28] : memref<128x128xf32, #tpu.memory_space<vmem>>, vector<32x128xf32>
    %cst_29 = arith.constant dense<0.000000e+00> : vector<16x128xf32>
    %81 = tpu.matmul %79, %80, %cst_29 {dimension_numbers = #tpu.dot_dimension_numbers<[1], [0], [0], [1], [0, 0, 1, 1], [], []>} : vector<16x32xf32>, vector<32x128xf32>, vector<16x128xf32> -> vector<16x128xf32>
    %82 = arith.addf %64, %81 : vector<16x128xf32>
    %c0_30 = arith.constant 0 : index
    %c0_31 = arith.constant 0 : index
    %c0_32 = arith.constant 0 : index
    %83 = vector.load %arg1[%c0_30, %c0_31, %c0_32] : memref<2x8x128xf32, #tpu.memory_space<vmem>>, vector<2x8x128xf32>
    %84 = vector.shape_cast %83 : vector<2x8x128xf32> to vector<16x128xf32>
    %c0_33 = arith.constant 0 : index
    %c0_34 = arith.constant 0 : index
    %85 = vector.load %arg4[%c0_33, %c0_34] : memref<1x128xf32, #tpu.memory_space<vmem>>, vector<1x128xf32>
    %86 = vector.broadcast %85 : vector<1x128xf32> to vector<16x128xf32>
    %87 = arith.addf %82, %86 : vector<16x128xf32>
    %88 = arith.addf %87, %84 : vector<16x128xf32>
    %c0_35 = arith.constant 0 : index
    %c0_36 = arith.constant 0 : index
    %89 = vector.load %arg5[%c0_35, %c0_36] : memref<1x128xf32, #tpu.memory_space<vmem>>, vector<1x128xf32>
    %c0_37 = arith.constant 0 : index
    %c0_38 = arith.constant 0 : index
    %90 = vector.load %arg6[%c0_37, %c0_38] : memref<1x128xf32, #tpu.memory_space<vmem>>, vector<1x128xf32>
    %cst_39 = arith.constant dense<0.000000e+00> : vector<16xf32>
    %91 = vector.multi_reduction <add>, %88, %cst_39 [1] : vector<16x128xf32> to vector<16xf32>
    %92 = vector.shape_cast %91 : vector<16xf32> to vector<16x1xf32>
    %cst_40 = arith.constant 1.280000e+02 : f32
    %93 = vector.broadcast %cst_40 : f32 to vector<16x1xf32>
    %94 = arith.divf %92, %93 : vector<16x1xf32>
    %95 = vector.broadcast %94 : vector<16x1xf32> to vector<16x128xf32>
    %96 = arith.subf %88, %95 : vector<16x128xf32>
    %97 = arith.mulf %96, %96 : vector<16x128xf32>
    %cst_41 = arith.constant dense<0.000000e+00> : vector<16xf32>
    %98 = vector.multi_reduction <add>, %97, %cst_41 [1] : vector<16x128xf32> to vector<16xf32>
    %99 = vector.shape_cast %98 : vector<16xf32> to vector<16x1xf32>
    %cst_42 = arith.constant 1.280000e+02 : f32
    %100 = vector.broadcast %cst_42 : f32 to vector<16x1xf32>
    %101 = arith.divf %99, %100 : vector<16x1xf32>
    %cst_43 = arith.constant 9.99999974E-6 : f32
    %102 = vector.broadcast %cst_43 : f32 to vector<16x1xf32>
    %103 = arith.addf %101, %102 : vector<16x1xf32>
    %104 = math.rsqrt %103 : vector<16x1xf32>
    %105 = vector.broadcast %94 : vector<16x1xf32> to vector<16x128xf32>
    %106 = arith.subf %88, %105 : vector<16x128xf32>
    %107 = vector.broadcast %104 : vector<16x1xf32> to vector<16x128xf32>
    %108 = arith.mulf %106, %107 : vector<16x128xf32>
    %109 = vector.broadcast %89 : vector<1x128xf32> to vector<16x128xf32>
    %110 = arith.mulf %108, %109 : vector<16x128xf32>
    %111 = vector.broadcast %90 : vector<1x128xf32> to vector<16x128xf32>
    %112 = arith.addf %110, %111 : vector<16x128xf32>
    %cst_44 = arith.constant 5.000000e-01 : f32
    %113 = vector.broadcast %cst_44 : f32 to vector<16x128xf32>
    %114 = arith.mulf %113, %112 : vector<16x128xf32>
    %cst_45 = arith.constant 0.707106769 : f32
    %115 = vector.broadcast %cst_45 : f32 to vector<16x128xf32>
    %116 = arith.mulf %112, %115 : vector<16x128xf32>
    %117 = math.erf %116 : vector<16x128xf32>
    %cst_46 = arith.constant 1.000000e+00 : f32
    %118 = vector.broadcast %cst_46 : f32 to vector<16x128xf32>
    %119 = arith.addf %118, %117 : vector<16x128xf32>
    %120 = arith.mulf %114, %119 : vector<16x128xf32>
    %c0_47 = arith.constant 0 : index
    %c0_48 = arith.constant 0 : index
    %121 = vector.load %arg7[%c0_47, %c0_48] : memref<1x128xf32, #tpu.memory_space<vmem>>, vector<1x128xf32>
    %c0_49 = arith.constant 0 : index
    %c0_50 = arith.constant 0 : index
    %122 = vector.load %arg8[%c0_49, %c0_50] : memref<1x128xf32, #tpu.memory_space<vmem>>, vector<1x128xf32>
    %cst_51 = arith.constant dense<0.000000e+00> : vector<16xf32>
    %123 = vector.multi_reduction <add>, %120, %cst_51 [1] : vector<16x128xf32> to vector<16xf32>
    %124 = vector.shape_cast %123 : vector<16xf32> to vector<16x1xf32>
    %cst_52 = arith.constant 1.280000e+02 : f32
    %125 = vector.broadcast %cst_52 : f32 to vector<16x1xf32>
    %126 = arith.divf %124, %125 : vector<16x1xf32>
    %127 = vector.broadcast %126 : vector<16x1xf32> to vector<16x128xf32>
    %128 = arith.subf %120, %127 : vector<16x128xf32>
    %129 = arith.mulf %128, %128 : vector<16x128xf32>
    %cst_53 = arith.constant dense<0.000000e+00> : vector<16xf32>
    %130 = vector.multi_reduction <add>, %129, %cst_53 [1] : vector<16x128xf32> to vector<16xf32>
    %131 = vector.shape_cast %130 : vector<16xf32> to vector<16x1xf32>
    %cst_54 = arith.constant 1.280000e+02 : f32
    %132 = vector.broadcast %cst_54 : f32 to vector<16x1xf32>
    %133 = arith.divf %131, %132 : vector<16x1xf32>
    %cst_55 = arith.constant 9.99999974E-6 : f32
    %134 = vector.broadcast %cst_55 : f32 to vector<16x1xf32>
    %135 = arith.addf %133, %134 : vector<16x1xf32>
    %136 = math.rsqrt %135 : vector<16x1xf32>
    %137 = vector.broadcast %126 : vector<16x1xf32> to vector<16x128xf32>
    %138 = arith.subf %120, %137 : vector<16x128xf32>
    %139 = vector.broadcast %136 : vector<16x1xf32> to vector<16x128xf32>
    %140 = arith.mulf %138, %139 : vector<16x128xf32>
    %141 = vector.broadcast %121 : vector<1x128xf32> to vector<16x128xf32>
    %142 = arith.mulf %140, %141 : vector<16x128xf32>
    %143 = vector.broadcast %122 : vector<1x128xf32> to vector<16x128xf32>
    %144 = arith.addf %142, %143 : vector<16x128xf32>
    %c0_56 = arith.constant 0 : index
    %c0_57 = arith.constant 0 : index
    %145 = vector.load %arg9[%c0_56, %c0_57] : memref<128x256xf32, #tpu.memory_space<vmem>>, vector<128x256xf32>
    %cst_58 = arith.constant dense<0.000000e+00> : vector<16x256xf32>
    %146 = tpu.matmul %144, %145, %cst_58 {dimension_numbers = #tpu.dot_dimension_numbers<[1], [0], [0], [1], [0, 0, 1, 1], [], []>} : vector<16x128xf32>, vector<128x256xf32>, vector<16x256xf32> -> vector<16x256xf32>
    %c0_59 = arith.constant 0 : index
    %c0_60 = arith.constant 0 : index
    %147 = vector.load %arg10[%c0_59, %c0_60] : memref<1x256xf32, #tpu.memory_space<vmem>>, vector<1x256xf32>
    %148 = vector.broadcast %147 : vector<1x256xf32> to vector<16x256xf32>
    %149 = arith.addf %146, %148 : vector<16x256xf32>
    %cst_61 = arith.constant 5.000000e-01 : f32
    %150 = vector.broadcast %cst_61 : f32 to vector<16x256xf32>
    %151 = arith.mulf %150, %149 : vector<16x256xf32>
    %cst_62 = arith.constant 0.707106769 : f32
    %152 = vector.broadcast %cst_62 : f32 to vector<16x256xf32>
    %153 = arith.mulf %149, %152 : vector<16x256xf32>
    %154 = math.erf %153 : vector<16x256xf32>
    %cst_63 = arith.constant 1.000000e+00 : f32
    %155 = vector.broadcast %cst_63 : f32 to vector<16x256xf32>
    %156 = arith.addf %155, %154 : vector<16x256xf32>
    %157 = arith.mulf %151, %156 : vector<16x256xf32>
    %c0_64 = arith.constant 0 : index
    %c0_65 = arith.constant 0 : index
    %158 = vector.load %arg11[%c0_64, %c0_65] : memref<1x256xf32, #tpu.memory_space<vmem>>, vector<1x256xf32>
    %c0_66 = arith.constant 0 : index
    %c0_67 = arith.constant 0 : index
    %159 = vector.load %arg12[%c0_66, %c0_67] : memref<1x256xf32, #tpu.memory_space<vmem>>, vector<1x256xf32>
    %cst_68 = arith.constant dense<0.000000e+00> : vector<16xf32>
    %160 = vector.multi_reduction <add>, %157, %cst_68 [1] : vector<16x256xf32> to vector<16xf32>
    %161 = vector.shape_cast %160 : vector<16xf32> to vector<16x1xf32>
    %cst_69 = arith.constant 2.560000e+02 : f32
    %162 = vector.broadcast %cst_69 : f32 to vector<16x1xf32>
    %163 = arith.divf %161, %162 : vector<16x1xf32>
    %164 = vector.broadcast %163 : vector<16x1xf32> to vector<16x256xf32>
    %165 = arith.subf %157, %164 : vector<16x256xf32>
    %166 = arith.mulf %165, %165 : vector<16x256xf32>
    %cst_70 = arith.constant dense<0.000000e+00> : vector<16xf32>
    %167 = vector.multi_reduction <add>, %166, %cst_70 [1] : vector<16x256xf32> to vector<16xf32>
    %168 = vector.shape_cast %167 : vector<16xf32> to vector<16x1xf32>
    %cst_71 = arith.constant 2.560000e+02 : f32
    %169 = vector.broadcast %cst_71 : f32 to vector<16x1xf32>
    %170 = arith.divf %168, %169 : vector<16x1xf32>
    %cst_72 = arith.constant 9.99999974E-6 : f32
    %171 = vector.broadcast %cst_72 : f32 to vector<16x1xf32>
    %172 = arith.addf %170, %171 : vector<16x1xf32>
    %173 = math.rsqrt %172 : vector<16x1xf32>
    %174 = vector.broadcast %163 : vector<16x1xf32> to vector<16x256xf32>
    %175 = arith.subf %157, %174 : vector<16x256xf32>
    %176 = vector.broadcast %173 : vector<16x1xf32> to vector<16x256xf32>
    %177 = arith.mulf %175, %176 : vector<16x256xf32>
    %178 = vector.broadcast %158 : vector<1x256xf32> to vector<16x256xf32>
    %179 = arith.mulf %177, %178 : vector<16x256xf32>
    %180 = vector.broadcast %159 : vector<1x256xf32> to vector<16x256xf32>
    %181 = arith.addf %179, %180 : vector<16x256xf32>
    %c0_73 = arith.constant 0 : index
    %c0_74 = arith.constant 0 : index
    %182 = vector.load %arg13[%c0_73, %c0_74] : memref<256x128xf32, #tpu.memory_space<vmem>>, vector<256x128xf32>
    %cst_75 = arith.constant dense<0.000000e+00> : vector<16x128xf32>
    %183 = tpu.matmul %181, %182, %cst_75 {dimension_numbers = #tpu.dot_dimension_numbers<[1], [0], [0], [1], [0, 0, 1, 1], [], []>} : vector<16x256xf32>, vector<256x128xf32>, vector<16x128xf32> -> vector<16x128xf32>
    %c0_76 = arith.constant 0 : index
    %c0_77 = arith.constant 0 : index
    %184 = vector.load %arg14[%c0_76, %c0_77] : memref<1x128xf32, #tpu.memory_space<vmem>>, vector<1x128xf32>
    %185 = vector.broadcast %184 : vector<1x128xf32> to vector<16x128xf32>
    %186 = arith.addf %183, %185 : vector<16x128xf32>
    %c0_78 = arith.constant 0 : index
    %c0_79 = arith.constant 0 : index
    %c0_80 = arith.constant 0 : index
    %187 = vector.load %arg1[%c0_78, %c0_79, %c0_80] : memref<2x8x128xf32, #tpu.memory_space<vmem>>, vector<2x8x128xf32>
    %188 = vector.shape_cast %187 : vector<2x8x128xf32> to vector<16x128xf32>
    %189 = arith.addf %186, %188 : vector<16x128xf32>
    %c0_81 = arith.constant 0 : index
    %c0_82 = arith.constant 0 : index
    %190 = vector.load %arg15[%c0_81, %c0_82] : memref<1x128xf32, #tpu.memory_space<vmem>>, vector<1x128xf32>
    %c0_83 = arith.constant 0 : index
    %c0_84 = arith.constant 0 : index
    %191 = vector.load %arg16[%c0_83, %c0_84] : memref<1x128xf32, #tpu.memory_space<vmem>>, vector<1x128xf32>
    %cst_85 = arith.constant dense<0.000000e+00> : vector<16xf32>
    %192 = vector.multi_reduction <add>, %189, %cst_85 [1] : vector<16x128xf32> to vector<16xf32>
    %193 = vector.shape_cast %192 : vector<16xf32> to vector<16x1xf32>
    %cst_86 = arith.constant 1.280000e+02 : f32
    %194 = vector.broadcast %cst_86 : f32 to vector<16x1xf32>
    %195 = arith.divf %193, %194 : vector<16x1xf32>
    %196 = vector.broadcast %195 : vector<16x1xf32> to vector<16x128xf32>
    %197 = arith.subf %189, %196 : vector<16x128xf32>
    %198 = arith.mulf %197, %197 : vector<16x128xf32>
    %cst_87 = arith.constant dense<0.000000e+00> : vector<16xf32>
    %199 = vector.multi_reduction <add>, %198, %cst_87 [1] : vector<16x128xf32> to vector<16xf32>
    %200 = vector.shape_cast %199 : vector<16xf32> to vector<16x1xf32>
    %cst_88 = arith.constant 1.280000e+02 : f32
    %201 = vector.broadcast %cst_88 : f32 to vector<16x1xf32>
    %202 = arith.divf %200, %201 : vector<16x1xf32>
    %cst_89 = arith.constant 9.99999974E-6 : f32
    %203 = vector.broadcast %cst_89 : f32 to vector<16x1xf32>
    %204 = arith.addf %202, %203 : vector<16x1xf32>
    %205 = math.rsqrt %204 : vector<16x1xf32>
    %206 = vector.broadcast %195 : vector<16x1xf32> to vector<16x128xf32>
    %207 = arith.subf %189, %206 : vector<16x128xf32>
    %208 = vector.broadcast %205 : vector<16x1xf32> to vector<16x128xf32>
    %209 = arith.mulf %207, %208 : vector<16x128xf32>
    %210 = vector.broadcast %190 : vector<1x128xf32> to vector<16x128xf32>
    %211 = arith.mulf %209, %210 : vector<16x128xf32>
    %212 = vector.broadcast %191 : vector<1x128xf32> to vector<16x128xf32>
    %213 = arith.addf %211, %212 : vector<16x128xf32>
    %214 = vector.shape_cast %213 : vector<16x128xf32> to vector<2x8x128xf32>
    %c0_90 = arith.constant 0 : index
    %c0_91 = arith.constant 0 : index
    %c0_92 = arith.constant 0 : index
    %215 = vector.load %arg17[%c0_90, %c0_91, %c0_92] : memref<2x8x128xf32, #tpu.memory_space<vmem>>, vector<2x8x128xf32>
    tpu.vector_store %arg17[%c0_90, %c0_91, %c0_92], %214 {strides = array<i32>} : memref<2x8x128xf32, #tpu.memory_space<vmem>>, vector<2x8x128xf32>,
    return
  }
  func.func @transform_0(%arg0: i32) -> (i32, i32, i32) {
    %c0_i32 = arith.constant 0 : i32
    %c0_i32_0 = arith.constant 0 : i32
    %c0_i32_1 = arith.constant 0 : i32
    return %arg0, %c0_i32, %c0_i32_0 : i32, i32, i32
  }
  func.func @transform_1(%arg0: i32) -> (i32, i32) {
    %c0_i32 = arith.constant 0 : i32
    %c0_i32_0 = arith.constant 0 : i32
    %c0_i32_1 = arith.constant 0 : i32
    return %c0_i32, %c0_i32_0 : i32, i32
  }
  func.func @transform_2(%arg0: i32) -> (i32, i32) {
    %c0_i32 = arith.constant 0 : i32
    %c0_i32_0 = arith.constant 0 : i32
    %c0_i32_1 = arith.constant 0 : i32
    return %c0_i32, %c0_i32_0 : i32, i32
  }
  func.func @transform_3(%arg0: i32) -> (i32, i32) {
    %c0_i32 = arith.constant 0 : i32
    %c0_i32_0 = arith.constant 0 : i32
    %c0_i32_1 = arith.constant 0 : i32
    return %c0_i32, %c0_i32_0 : i32, i32
  }
  func.func @transform_4(%arg0: i32) -> (i32, i32) {
    %c0_i32 = arith.constant 0 : i32
    %c0_i32_0 = arith.constant 0 : i32
    %c0_i32_1 = arith.constant 0 : i32
    return %c0_i32, %c0_i32_0 : i32, i32
  }
  func.func @transform_5(%arg0: i32) -> (i32, i32) {
    %c0_i32 = arith.constant 0 : i32
    %c0_i32_0 = arith.constant 0 : i32
    %c0_i32_1 = arith.constant 0 : i32
    return %c0_i32, %c0_i32_0 : i32, i32
  }
  func.func @transform_6(%arg0: i32) -> (i32, i32) {
    %c0_i32 = arith.constant 0 : i32
    %c0_i32_0 = arith.constant 0 : i32
    %c0_i32_1 = arith.constant 0 : i32
    return %c0_i32, %c0_i32_0 : i32, i32
  }
  func.func @transform_7(%arg0: i32) -> (i32, i32) {
    %c0_i32 = arith.constant 0 : i32
    %c0_i32_0 = arith.constant 0 : i32
    %c0_i32_1 = arith.constant 0 : i32
    return %c0_i32, %c0_i32_0 : i32, i32
  }
  func.func @transform_8(%arg0: i32) -> (i32, i32) {
    %c0_i32 = arith.constant 0 : i32
    %c0_i32_0 = arith.constant 0 : i32
    %c0_i32_1 = arith.constant 0 : i32
    return %c0_i32, %c0_i32_0 : i32, i32
  }
  func.func @transform_9(%arg0: i32) -> (i32, i32) {
    %c0_i32 = arith.constant 0 : i32
    %c0_i32_0 = arith.constant 0 : i32
    %c0_i32_1 = arith.constant 0 : i32
    return %c0_i32, %c0_i32_0 : i32, i32
  }
  func.func @transform_10(%arg0: i32) -> (i32, i32) {
    %c0_i32 = arith.constant 0 : i32
    %c0_i32_0 = arith.constant 0 : i32
    %c0_i32_1 = arith.constant 0 : i32
    return %c0_i32, %c0_i32_0 : i32, i32
  }
  func.func @transform_11(%arg0: i32) -> (i32, i32) {
    %c0_i32 = arith.constant 0 : i32
    %c0_i32_0 = arith.constant 0 : i32
    %c0_i32_1 = arith.constant 0 : i32
    return %c0_i32, %c0_i32_0 : i32, i32
  }
  func.func @transform_12(%arg0: i32) -> (i32, i32) {
    %c0_i32 = arith.constant 0 : i32
    %c0_i32_0 = arith.constant 0 : i32
    %c0_i32_1 = arith.constant 0 : i32
    return %c0_i32, %c0_i32_0 : i32, i32
  }
  func.func @transform_13(%arg0: i32) -> (i32, i32) {
    %c0_i32 = arith.constant 0 : i32
    %c0_i32_0 = arith.constant 0 : i32
    %c0_i32_1 = arith.constant 0 : i32
    return %c0_i32, %c0_i32_0 : i32, i32
  }
  func.func @transform_14(%arg0: i32) -> (i32, i32) {
    %c0_i32 = arith.constant 0 : i32
    %c0_i32_0 = arith.constant 0 : i32
    %c0_i32_1 = arith.constant 0 : i32
    return %c0_i32, %c0_i32_0 : i32, i32
  }
  func.func @transform_15(%arg0: i32) -> (i32, i32) {
    %c0_i32 = arith.constant 0 : i32
    %c0_i32_0 = arith.constant 0 : i32
    %c0_i32_1 = arith.constant 0 : i32
    return %c0_i32, %c0_i32_0 : i32, i32
  }
  func.func @transform_16(%arg0: i32) -> (i32, i32, i32) {
    %c0_i32 = arith.constant 0 : i32
    %c0_i32_0 = arith.constant 0 : i32
    %c0_i32_1 = arith.constant 0 : i32
    return %arg0, %c0_i32, %c0_i32_0 : i32, i32, i32
  }
}

module attributes {stable_mosaic.version = 11 : i64} {
  func.func @transformer_kernel(%arg0: i32, %arg1: memref<2x8x128xf32, #tpu.memory_space<vmem>>, %arg2: memref<128x384xf32, #tpu.memory_space<vmem>>, %arg3: memref<128x128xf32, #tpu.memory_space<vmem>>, %arg4: memref<1x128xf32, #tpu.memory_space<vmem>>, %arg5: memref<1x128xf32, #tpu.memory_space<vmem>>, %arg6: memref<1x128xf32, #tpu.memory_space<vmem>>, %arg7: memref<1x128xf32, #tpu.memory_space<vmem>>, %arg8: memref<1x128xf32, #tpu.memory_space<vmem>>, %arg9: memref<128x256xf32, #tpu.memory_space<vmem>>, %arg10: memref<1x256xf32, #tpu.memory_space<vmem>>, %arg11: memref<1x256xf32, #tpu.memory_space<vmem>>, %arg12: memref<1x256xf32, #tpu.memory_space<vmem>>, %arg13: memref<256x128xf32, #tpu.memory_space<vmem>>, %arg14: memref<1x128xf32, #tpu.memory_space<vmem>>, %arg15: memref<1x128xf32, #tpu.memory_space<vmem>>, %arg16: memref<1x128xf32, #tpu.memory_space<vmem>>, %arg17: memref<2x8x128xf32, #tpu.memory_space<vmem>>) attributes {dimension_semantics = [#tpu.dimension_semantics<parallel>], iteration_bounds = array<i64: 1>, scalar_prefetch = 0 : i64, scratch_operands = 0 : i64, tpu.core_type = #tpu.core_type<tc>, window_params = [{transform_indices = @transform_0, window_bounds = array<i64: 2, 8, 128>}, {pipeline_mode = #tpu.pipeline_mode<synchronous>, transform_indices = @transform_1, window_bounds = array<i64: 128, 384>}, {pipeline_mode = #tpu.pipeline_mode<synchronous>, transform_indices = @transform_2, window_bounds = array<i64: 128, 128>}, {pipeline_mode = #tpu.pipeline_mode<synchronous>, transform_indices = @transform_3, window_bounds = array<i64: 1, 128>}, {pipeline_mode = #tpu.pipeline_mode<synchronous>, transform_indices = @transform_4, window_bounds = array<i64: 1, 128>}, {pipeline_mode = #tpu.pipeline_mode<synchronous>, transform_indices = @transform_5, window_bounds = array<i64: 1, 128>}, {pipeline_mode = #tpu.pipeline_mode<synchronous>, transform_indices = @transform_6, window_bounds = array<i64: 1, 128>}, {pipeline_mode = #tpu.pipeline_mode<synchronous>, transform_indices = @transform_7, window_bounds = array<i64: 1, 128>}, {pipeline_mode = #tpu.pipeline_mode<synchronous>, transform_indices = @transform_8, window_bounds = array<i64: 128, 256>}, {pipeline_mode = #tpu.pipeline_mode<synchronous>, transform_indices = @transform_9, window_bounds = array<i64: 1, 256>}, {pipeline_mode = #tpu.pipeline_mode<synchronous>, transform_indices = @transform_10, window_bounds = array<i64: 1, 256>}, {pipeline_mode = #tpu.pipeline_mode<synchronous>, transform_indices = @transform_11, window_bounds = array<i64: 1, 256>}, {pipeline_mode = #tpu.pipeline_mode<synchronous>, transform_indices = @transform_12, window_bounds = array<i64: 256, 128>}, {pipeline_mode = #tpu.pipeline_mode<synchronous>, transform_indices = @transform_13, window_bounds = array<i64: 1, 128>}, {pipeline_mode = #tpu.pipeline_mode<synchronous>, transform_indices = @transform_14, window_bounds = array<i64: 1, 128>}, {pipeline_mode = #tpu.pipeline_mode<synchronous>, transform_indices = @transform_15, window_bounds = array<i64: 1, 128>}, {transform_indices = @transform_16, window_bounds = array<i64: 2, 8, 128>}]} {
    %c0 = arith.constant 0 : index
    %c0_0 = arith.constant 0 : index
    %c0_1 = arith.constant 0 : index
    %0 = vector.load %arg1[%c0, %c0_0, %c0_1] : memref<2x8x128xf32, #tpu.memory_space<vmem>>, vector<2x8x128xf32>
    %1 = vector.shape_cast %0 : vector<2x8x128xf32> to vector<16x128xf32>
    %c0_2 = arith.constant 0 : index
    %c0_3 = arith.constant 0 : index
    %2 = vector.load %arg2[%c0_2, %c0_3] : memref<128x384xf32, #tpu.memory_space<vmem>>, vector<128x384xf32>
    %cst = arith.constant dense<0.000000e+00> : vector<16x384xf32>
    %3 = tpu.matmul %1, %2, %cst {dimension_numbers = #tpu.dot_dimension_numbers<[1], [0], [0], [1], [0, 0, 1, 1], [], []>} : vector<16x128xf32>, vector<128x384xf32>, vector<16x384xf32> -> vector<16x384xf32>
    %4 = vector.extract_strided_slice %3 {offsets = [0, 0], sizes = [16, 128], strides = [1, 1]} : vector<16x384xf32> to vector<16x128xf32>
    %5 = vector.shape_cast %4 : vector<16x128xf32> to vector<2x8x128xf32>
    %6 = vector.extract_strided_slice %3 {offsets = [0, 128], sizes = [16, 128], strides = [1, 1]} : vector<16x384xf32> to vector<16x128xf32>
    %7 = vector.shape_cast %6 : vector<16x128xf32> to vector<2x8x128xf32>
    %8 = vector.extract_strided_slice %3 {offsets = [0, 256], sizes = [16, 128], strides = [1, 1]} : vector<16x384xf32> to vector<16x128xf32>
    %9 = vector.shape_cast %8 : vector<16x128xf32> to vector<2x8x128xf32>
    %cst_4 = arith.constant 0.000000e+00 : f32
    %10 = vector.broadcast %cst_4 : f32 to vector<16x128xf32>
    %11 = vector.extract_strided_slice %5 {offsets = [0, 0, 0], sizes = [2, 8, 32], strides = [1, 1, 1]} : vector<2x8x128xf32> to vector<2x8x32xf32>
    %12 = vector.extract_strided_slice %7 {offsets = [0, 0, 0], sizes = [2, 8, 32], strides = [1, 1, 1]} : vector<2x8x128xf32> to vector<2x8x32xf32>
    %13 = vector.extract_strided_slice %9 {offsets = [0, 0, 0], sizes = [2, 8, 32], strides = [1, 1, 1]} : vector<2x8x128xf32> to vector<2x8x32xf32>
    "tpu.trace_start"() <{level = 10 : i32, message = "bqd,bkd->bqk"}> : () -> ()
    %cst_5 = arith.constant dense<0.000000e+00> : vector<2x8x8xf32>
    %14 = tpu.matmul %11, %12, %cst_5 {dimension_numbers = #tpu.dot_dimension_numbers<[2], [2], [1], [1], [0, 0, 0, 1, 1, 1], [0], [0]>} : vector<2x8x32xf32>, vector<2x8x32xf32>, vector<2x8x8xf32> -> vector<2x8x8xf32>
    "tpu.trace_stop"() : () -> ()
    %cst_6 = arith.constant dense<0xFF800000> : vector<2x8xf32>
    %15 = vector.multi_reduction <maximumf>, %14, %cst_6 [2] : vector<2x8x8xf32> to vector<2x8xf32>
    %16 = vector.shape_cast %15 : vector<2x8xf32> to vector<2x8x1xf32>
    %17 = vector.broadcast %16 : vector<2x8x1xf32> to vector<2x8x8xf32>
    %18 = arith.subf %14, %17 : vector<2x8x8xf32>
    %19 = math.exp %18 : vector<2x8x8xf32>
    %cst_7 = arith.constant dense<0.000000e+00> : vector<2x8xf32>
    %20 = vector.multi_reduction <add>, %19, %cst_7 [2] : vector<2x8x8xf32> to vector<2x8xf32>
    %21 = vector.shape_cast %20 : vector<2x8xf32> to vector<2x8x1xf32>
    "tpu.trace_start"() <{level = 10 : i32, message = "bqk,bkd->bqd"}> : () -> ()
    %cst_8 = arith.constant dense<0.000000e+00> : vector<2x8x32xf32>
    %22 = tpu.matmul %19, %13, %cst_8 {dimension_numbers = #tpu.dot_dimension_numbers<[2], [1], [1], [2], [0, 0, 0, 1, 1, 2], [0], [0]>} : vector<2x8x8xf32>, vector<2x8x32xf32>, vector<2x8x32xf32> -> vector<2x8x32xf32>
    "tpu.trace_stop"() : () -> ()
    %23 = vector.broadcast %21 : vector<2x8x1xf32> to vector<2x8x32xf32>
    %24 = arith.divf %22, %23 : vector<2x8x32xf32>
    %25 = vector.shape_cast %24 : vector<2x8x32xf32> to vector<16x32xf32>
    %c0_9 = arith.constant 0 : index
    %c0_10 = arith.constant 0 : index
    %26 = vector.load %arg3[%c0_9, %c0_10] : memref<128x128xf32, #tpu.memory_space<vmem>>, vector<32x128xf32>
    %cst_11 = arith.constant dense<0.000000e+00> : vector<16x128xf32>
    %27 = tpu.matmul %25, %26, %cst_11 {dimension_numbers = #tpu.dot_dimension_numbers<[1], [0], [0], [1], [0, 0, 1, 1], [], []>} : vector<16x32xf32>, vector<32x128xf32>, vector<16x128xf32> -> vector<16x128xf32>
    %28 = arith.addf %10, %27 : vector<16x128xf32>
    %29 = vector.extract_strided_slice %5 {offsets = [0, 0, 32], sizes = [2, 8, 32], strides = [1, 1, 1]} : vector<2x8x128xf32> to vector<2x8x32xf32>
    %30 = vector.extract_strided_slice %7 {offsets = [0, 0, 32], sizes = [2, 8, 32], strides = [1, 1, 1]} : vector<2x8x128xf32> to vector<2x8x32xf32>
    %31 = vector.extract_strided_slice %9 {offsets = [0, 0, 32], sizes = [2, 8, 32], strides = [1, 1, 1]} : vector<2x8x128xf32> to vector<2x8x32xf32>
    "tpu.trace_start"() <{level = 10 : i32, message = "bqd,bkd->bqk"}> : () -> ()
    %cst_12 = arith.constant dense<0.000000e+00> : vector<2x8x8xf32>
    %32 = tpu.matmul %29, %30, %cst_12 {dimension_numbers = #tpu.dot_dimension_numbers<[2], [2], [1], [1], [0, 0, 0, 1, 1, 1], [0], [0]>} : vector<2x8x32xf32>, vector<2x8x32xf32>, vector<2x8x8xf32> -> vector<2x8x8xf32>
    "tpu.trace_stop"() : () -> ()
    %cst_13 = arith.constant dense<0xFF800000> : vector<2x8xf32>
    %33 = vector.multi_reduction <maximumf>, %32, %cst_13 [2] : vector<2x8x8xf32> to vector<2x8xf32>
    %34 = vector.shape_cast %33 : vector<2x8xf32> to vector<2x8x1xf32>
    %35 = vector.broadcast %34 : vector<2x8x1xf32> to vector<2x8x8xf32>
    %36 = arith.subf %32, %35 : vector<2x8x8xf32>
    %37 = math.exp %36 : vector<2x8x8xf32>
    %cst_14 = arith.constant dense<0.000000e+00> : vector<2x8xf32>
    %38 = vector.multi_reduction <add>, %37, %cst_14 [2] : vector<2x8x8xf32> to vector<2x8xf32>
    %39 = vector.shape_cast %38 : vector<2x8xf32> to vector<2x8x1xf32>
    "tpu.trace_start"() <{level = 10 : i32, message = "bqk,bkd->bqd"}> : () -> ()
    %cst_15 = arith.constant dense<0.000000e+00> : vector<2x8x32xf32>
    %40 = tpu.matmul %37, %31, %cst_15 {dimension_numbers = #tpu.dot_dimension_numbers<[2], [1], [1], [2], [0, 0, 0, 1, 1, 2], [0], [0]>} : vector<2x8x8xf32>, vector<2x8x32xf32>, vector<2x8x32xf32> -> vector<2x8x32xf32>
    "tpu.trace_stop"() : () -> ()
    %41 = vector.broadcast %39 : vector<2x8x1xf32> to vector<2x8x32xf32>
    %42 = arith.divf %40, %41 : vector<2x8x32xf32>
    %43 = vector.shape_cast %42 : vector<2x8x32xf32> to vector<16x32xf32>
    %c32 = arith.constant 32 : index
    %c0_16 = arith.constant 0 : index
    %44 = vector.load %arg3[%c32, %c0_16] : memref<128x128xf32, #tpu.memory_space<vmem>>, vector<32x128xf32>
    %cst_17 = arith.constant dense<0.000000e+00> : vector<16x128xf32>
    %45 = tpu.matmul %43, %44, %cst_17 {dimension_numbers = #tpu.dot_dimension_numbers<[1], [0], [0], [1], [0, 0, 1, 1], [], []>} : vector<16x32xf32>, vector<32x128xf32>, vector<16x128xf32> -> vector<16x128xf32>
    %46 = arith.addf %28, %45 : vector<16x128xf32>
    %47 = vector.extract_strided_slice %5 {offsets = [0, 0, 64], sizes = [2, 8, 32], strides = [1, 1, 1]} : vector<2x8x128xf32> to vector<2x8x32xf32>
    %48 = vector.extract_strided_slice %7 {offsets = [0, 0, 64], sizes = [2, 8, 32], strides = [1, 1, 1]} : vector<2x8x128xf32> to vector<2x8x32xf32>
    %49 = vector.extract_strided_slice %9 {offsets = [0, 0, 64], sizes = [2, 8, 32], strides = [1, 1, 1]} : vector<2x8x128xf32> to vector<2x8x32xf32>
    "tpu.trace_start"() <{level = 10 : i32, message = "bqd,bkd->bqk"}> : () -> ()
    %cst_18 = arith.constant dense<0.000000e+00> : vector<2x8x8xf32>
    %50 = tpu.matmul %47, %48, %cst_18 {dimension_numbers = #tpu.dot_dimension_numbers<[2], [2], [1], [1], [0, 0, 0, 1, 1, 1], [0], [0]>} : vector<2x8x32xf32>, vector<2x8x32xf32>, vector<2x8x8xf32> -> vector<2x8x8xf32>
    "tpu.trace_stop"() : () -> ()
    %cst_19 = arith.constant dense<0xFF800000> : vector<2x8xf32>
    %51 = vector.multi_reduction <maximumf>, %50, %cst_19 [2] : vector<2x8x8xf32> to vector<2x8xf32>
    %52 = vector.shape_cast %51 : vector<2x8xf32> to vector<2x8x1xf32>
    %53 = vector.broadcast %52 : vector<2x8x1xf32> to vector<2x8x8xf32>
    %54 = arith.subf %50, %53 : vector<2x8x8xf32>
    %55 = math.exp %54 : vector<2x8x8xf32>
    %cst_20 = arith.constant dense<0.000000e+00> : vector<2x8xf32>
    %56 = vector.multi_reduction <add>, %55, %cst_20 [2] : vector<2x8x8xf32> to vector<2x8xf32>
    %57 = vector.shape_cast %56 : vector<2x8xf32> to vector<2x8x1xf32>
    "tpu.trace_start"() <{level = 10 : i32, message = "bqk,bkd->bqd"}> : () -> ()
    %cst_21 = arith.constant dense<0.000000e+00> : vector<2x8x32xf32>
    %58 = tpu.matmul %55, %49, %cst_21 {dimension_numbers = #tpu.dot_dimension_numbers<[2], [1], [1], [2], [0, 0, 0, 1, 1, 2], [0], [0]>} : vector<2x8x8xf32>, vector<2x8x32xf32>, vector<2x8x32xf32> -> vector<2x8x32xf32>
    "tpu.trace_stop"() : () -> ()
    %59 = vector.broadcast %57 : vector<2x8x1xf32> to vector<2x8x32xf32>
    %60 = arith.divf %58, %59 : vector<2x8x32xf32>
    %61 = vector.shape_cast %60 : vector<2x8x32xf32> to vector<16x32xf32>
    %c64 = arith.constant 64 : index
    %c0_22 = arith.constant 0 : index
    %62 = vector.load %arg3[%c64, %c0_22] : memref<128x128xf32, #tpu.memory_space<vmem>>, vector<32x128xf32>
    %cst_23 = arith.constant dense<0.000000e+00> : vector<16x128xf32>
    %63 = tpu.matmul %61, %62, %cst_23 {dimension_numbers = #tpu.dot_dimension_numbers<[1], [0], [0], [1], [0, 0, 1, 1], [], []>} : vector<16x32xf32>, vector<32x128xf32>, vector<16x128xf32> -> vector<16x128xf32>
    %64 = arith.addf %46, %63 : vector<16x128xf32>
    %65 = vector.extract_strided_slice %5 {offsets = [0, 0, 96], sizes = [2, 8, 32], strides = [1, 1, 1]} : vector<2x8x128xf32> to vector<2x8x32xf32>
    %66 = vector.extract_strided_slice %7 {offsets = [0, 0, 96], sizes = [2, 8, 32], strides = [1, 1, 1]} : vector<2x8x128xf32> to vector<2x8x32xf32>
    %67 = vector.extract_strided_slice %9 {offsets = [0, 0, 96], sizes = [2, 8, 32], strides = [1, 1, 1]} : vector<2x8x128xf32> to vector<2x8x32xf32>
    "tpu.trace_start"() <{level = 10 : i32, message = "bqd,bkd->bqk"}> : () -> ()
    %cst_24 = arith.constant dense<0.000000e+00> : vector<2x8x8xf32>
    %68 = tpu.matmul %65, %66, %cst_24 {dimension_numbers = #tpu.dot_dimension_numbers<[2], [2], [1], [1], [0, 0, 0, 1, 1, 1], [0], [0]>} : vector<2x8x32xf32>, vector<2x8x32xf32>, vector<2x8x8xf32> -> vector<2x8x8xf32>
    "tpu.trace_stop"() : () -> ()
    %cst_25 = arith.constant dense<0xFF800000> : vector<2x8xf32>
    %69 = vector.multi_reduction <maximumf>, %68, %cst_25 [2] : vector<2x8x8xf32> to vector<2x8xf32>
    %70 = vector.shape_cast %69 : vector<2x8xf32> to vector<2x8x1xf32>
    %71 = vector.broadcast %70 : vector<2x8x1xf32> to vector<2x8x8xf32>
    %72 = arith.subf %68, %71 : vector<2x8x8xf32>
    %73 = math.exp %72 : vector<2x8x8xf32>
    %cst_26 = arith.constant dense<0.000000e+00> : vector<2x8xf32>
    %74 = vector.multi_reduction <add>, %73, %cst_26 [2] : vector<2x8x8xf32> to vector<2x8xf32>
    %75 = vector.shape_cast %74 : vector<2x8xf32> to vector<2x8x1xf32>
    "tpu.trace_start"() <{level = 10 : i32, message = "bqk,bkd->bqd"}> : () -> ()
    %cst_27 = arith.constant dense<0.000000e+00> : vector<2x8x32xf32>
    %76 = tpu.matmul %73, %67, %cst_27 {dimension_numbers = #tpu.dot_dimension_numbers<[2], [1], [1], [2], [0, 0, 0, 1, 1, 2], [0], [0]>} : vector<2x8x8xf32>, vector<2x8x32xf32>, vector<2x8x32xf32> -> vector<2x8x32xf32>
    "tpu.trace_stop"() : () -> ()
    %77 = vector.broadcast %75 : vector<2x8x1xf32> to vector<2x8x32xf32>
    %78 = arith.divf %76, %77 : vector<2x8x32xf32>
    %79 = vector.shape_cast %78 : vector<2x8x32xf32> to vector<16x32xf32>
    %c96 = arith.constant 96 : index
    %c0_28 = arith.constant 0 : index
    %80 = vector.load %arg3[%c96, %c0_28] : memref<128x128xf32, #tpu.memory_space<vmem>>, vector<32x128xf32>
    %cst_29 = arith.constant dense<0.000000e+00> : vector<16x128xf32>
    %81 = tpu.matmul %79, %80, %cst_29 {dimension_numbers = #tpu.dot_dimension_numbers<[1], [0], [0], [1], [0, 0, 1, 1], [], []>} : vector<16x32xf32>, vector<32x128xf32>, vector<16x128xf32> -> vector<16x128xf32>
    %82 = arith.addf %64, %81 : vector<16x128xf32>
    %c0_30 = arith.constant 0 : index
    %c0_31 = arith.constant 0 : index
    %c0_32 = arith.constant 0 : index
    %83 = vector.load %arg1[%c0_30, %c0_31, %c0_32] : memref<2x8x128xf32, #tpu.memory_space<vmem>>, vector<2x8x128xf32>
    %84 = vector.shape_cast %83 : vector<2x8x128xf32> to vector<16x128xf32>
    %c0_33 = arith.constant 0 : index
    %c0_34 = arith.constant 0 : index
    %85 = vector.load %arg4[%c0_33, %c0_34] : memref<1x128xf32, #tpu.memory_space<vmem>>, vector<1x128xf32>
    %86 = vector.broadcast %85 : vector<1x128xf32> to vector<16x128xf32>
    %87 = arith.addf %82, %86 : vector<16x128xf32>
    %88 = arith.addf %87, %84 : vector<16x128xf32>
    %c0_35 = arith.constant 0 : index
    %c0_36 = arith.constant 0 : index
    %89 = vector.load %arg5[%c0_35, %c0_36] : memref<1x128xf32, #tpu.memory_space<vmem>>, vector<1x128xf32>
    %c0_37 = arith.constant 0 : index
    %c0_38 = arith.constant 0 : index
    %90 = vector.load %arg6[%c0_37, %c0_38] : memref<1x128xf32, #tpu.memory_space<vmem>>, vector<1x128xf32>
    %cst_39 = arith.constant dense<0.000000e+00> : vector<16xf32>
    %91 = vector.multi_reduction <add>, %88, %cst_39 [1] : vector<16x128xf32> to vector<16xf32>
    %92 = vector.shape_cast %91 : vector<16xf32> to vector<16x1xf32>
    %cst_40 = arith.constant 1.280000e+02 : f32
    %93 = vector.broadcast %cst_40 : f32 to vector<16x1xf32>
    %94 = arith.divf %92, %93 : vector<16x1xf32>
    %95 = vector.broadcast %94 : vector<16x1xf32> to vector<16x128xf32>
    %96 = arith.subf %88, %95 : vector<16x128xf32>
    %97 = arith.mulf %96, %96 : vector<16x128xf32>
    %cst_41 = arith.constant dense<0.000000e+00> : vector<16xf32>
    %98 = vector.multi_reduction <add>, %97, %cst_41 [1] : vector<16x128xf32> to vector<16xf32>
    %99 = vector.shape_cast %98 : vector<16xf32> to vector<16x1xf32>
    %cst_42 = arith.constant 1.280000e+02 : f32
    %100 = vector.broadcast %cst_42 : f32 to vector<16x1xf32>
    %101 = arith.divf %99, %100 : vector<16x1xf32>
    %cst_43 = arith.constant 9.99999974E-6 : f32
    %102 = vector.broadcast %cst_43 : f32 to vector<16x1xf32>
    %103 = arith.addf %101, %102 : vector<16x1xf32>
    %104 = math.rsqrt %103 : vector<16x1xf32>
    %105 = vector.broadcast %94 : vector<16x1xf32> to vector<16x128xf32>
    %106 = arith.subf %88, %105 : vector<16x128xf32>
    %107 = vector.broadcast %104 : vector<16x1xf32> to vector<16x128xf32>
    %108 = arith.mulf %106, %107 : vector<16x128xf32>
    %109 = vector.broadcast %89 : vector<1x128xf32> to vector<16x128xf32>
    %110 = arith.mulf %108, %109 : vector<16x128xf32>
    %111 = vector.broadcast %90 : vector<1x128xf32> to vector<16x128xf32>
    %112 = arith.addf %110, %111 : vector<16x128xf32>
    %cst_44 = arith.constant 5.000000e-01 : f32
    %113 = vector.broadcast %cst_44 : f32 to vector<16x128xf32>
    %114 = arith.mulf %113, %112 : vector<16x128xf32>
    %cst_45 = arith.constant 0.707106769 : f32
    %115 = vector.broadcast %cst_45 : f32 to vector<16x128xf32>
    %116 = arith.mulf %112, %115 : vector<16x128xf32>
    %117 = math.erf %116 : vector<16x128xf32>
    %cst_46 = arith.constant 1.000000e+00 : f32
    %118 = vector.broadcast %cst_46 : f32 to vector<16x128xf32>
    %119 = arith.addf %118, %117 : vector<16x128xf32>
    %120 = arith.mulf %114, %119 : vector<16x128xf32>
    %c0_47 = arith.constant 0 : index
    %c0_48 = arith.constant 0 : index
    %121 = vector.load %arg7[%c0_47, %c0_48] : memref<1x128xf32, #tpu.memory_space<vmem>>, vector<1x128xf32>
    %c0_49 = arith.constant 0 : index
    %c0_50 = arith.constant 0 : index
    %122 = vector.load %arg8[%c0_49, %c0_50] : memref<1x128xf32, #tpu.memory_space<vmem>>, vector<1x128xf32>
    %cst_51 = arith.constant dense<0.000000e+00> : vector<16xf32>
    %123 = vector.multi_reduction <add>, %120, %cst_51 [1] : vector<16x128xf32> to vector<16xf32>
    %124 = vector.shape_cast %123 : vector<16xf32> to vector<16x1xf32>
    %cst_52 = arith.constant 1.280000e+02 : f32
    %125 = vector.broadcast %cst_52 : f32 to vector<16x1xf32>
    %126 = arith.divf %124, %125 : vector<16x1xf32>
    %127 = vector.broadcast %126 : vector<16x1xf32> to vector<16x128xf32>
    %128 = arith.subf %120, %127 : vector<16x128xf32>
    %129 = arith.mulf %128, %128 : vector<16x128xf32>
    %cst_53 = arith.constant dense<0.000000e+00> : vector<16xf32>
    %130 = vector.multi_reduction <add>, %129, %cst_53 [1] : vector<16x128xf32> to vector<16xf32>
    %131 = vector.shape_cast %130 : vector<16xf32> to vector<16x1xf32>
    %cst_54 = arith.constant 1.280000e+02 : f32
    %132 = vector.broadcast %cst_54 : f32 to vector<16x1xf32>
    %133 = arith.divf %131, %132 : vector<16x1xf32>
    %cst_55 = arith.constant 9.99999974E-6 : f32
    %134 = vector.broadcast %cst_55 : f32 to vector<16x1xf32>
    %135 = arith.addf %133, %134 : vector<16x1xf32>
    %136 = math.rsqrt %135 : vector<16x1xf32>
    %137 = vector.broadcast %126 : vector<16x1xf32> to vector<16x128xf32>
    %138 = arith.subf %120, %137 : vector<16x128xf32>
    %139 = vector.broadcast %136 : vector<16x1xf32> to vector<16x128xf32>
    %140 = arith.mulf %138, %139 : vector<16x128xf32>
    %141 = vector.broadcast %121 : vector<1x128xf32> to vector<16x128xf32>
    %142 = arith.mulf %140, %141 : vector<16x128xf32>
    %143 = vector.broadcast %122 : vector<1x128xf32> to vector<16x128xf32>
    %144 = arith.addf %142, %143 : vector<16x128xf32>
    %c0_56 = arith.constant 0 : index
    %c0_57 = arith.constant 0 : index
    %145 = vector.load %arg9[%c0_56, %c0_57] : memref<128x256xf32, #tpu.memory_space<vmem>>, vector<128x256xf32>
    %cst_58 = arith.constant dense<0.000000e+00> : vector<16x256xf32>
    %146 = tpu.matmul %144, %145, %cst_58 {dimension_numbers = #tpu.dot_dimension_numbers<[1], [0], [0], [1], [0, 0, 1, 1], [], []>} : vector<16x128xf32>, vector<128x256xf32>, vector<16x256xf32> -> vector<16x256xf32>
    %c0_59 = arith.constant 0 : index
    %c0_60 = arith.constant 0 : index
    %147 = vector.load %arg10[%c0_59, %c0_60] : memref<1x256xf32, #tpu.memory_space<vmem>>, vector<1x256xf32>
    %148 = vector.broadcast %147 : vector<1x256xf32> to vector<16x256xf32>
    %149 = arith.addf %146, %148 : vector<16x256xf32>
    %cst_61 = arith.constant 5.000000e-01 : f32
    %150 = vector.broadcast %cst_61 : f32 to vector<16x256xf32>
    %151 = arith.mulf %150, %149 : vector<16x256xf32>
    %cst_62 = arith.constant 0.707106769 : f32
    %152 = vector.broadcast %cst_62 : f32 to vector<16x256xf32>
    %153 = arith.mulf %149, %152 : vector<16x256xf32>
    %154 = math.erf %153 : vector<16x256xf32>
    %cst_63 = arith.constant 1.000000e+00 : f32
    %155 = vector.broadcast %cst_63 : f32 to vector<16x256xf32>
    %156 = arith.addf %155, %154 : vector<16x256xf32>
    %157 = arith.mulf %151, %156 : vector<16x256xf32>
    %c0_64 = arith.constant 0 : index
    %c0_65 = arith.constant 0 : index
    %158 = vector.load %arg11[%c0_64, %c0_65] : memref<1x256xf32, #tpu.memory_space<vmem>>, vector<1x256xf32>
    %c0_66 = arith.constant 0 : index
    %c0_67 = arith.constant 0 : index
    %159 = vector.load %arg12[%c0_66, %c0_67] : memref<1x256xf32, #tpu.memory_space<vmem>>, vector<1x256xf32>
    %cst_68 = arith.constant dense<0.000000e+00> : vector<16xf32>
    %160 = vector.multi_reduction <add>, %157, %cst_68 [1] : vector<16x256xf32> to vector<16xf32>
    %161 = vector.shape_cast %160 : vector<16xf32> to vector<16x1xf32>
    %cst_69 = arith.constant 2.560000e+02 : f32
    %162 = vector.broadcast %cst_69 : f32 to vector<16x1xf32>
    %163 = arith.divf %161, %162 : vector<16x1xf32>
    %164 = vector.broadcast %163 : vector<16x1xf32> to vector<16x256xf32>
    %165 = arith.subf %157, %164 : vector<16x256xf32>
    %166 = arith.mulf %165, %165 : vector<16x256xf32>
    %cst_70 = arith.constant dense<0.000000e+00> : vector<16xf32>
    %167 = vector.multi_reduction <add>, %166, %cst_70 [1] : vector<16x256xf32> to vector<16xf32>
    %168 = vector.shape_cast %167 : vector<16xf32> to vector<16x1xf32>
    %cst_71 = arith.constant 2.560000e+02 : f32
    %169 = vector.broadcast %cst_71 : f32 to vector<16x1xf32>
    %170 = arith.divf %168, %169 : vector<16x1xf32>
    %cst_72 = arith.constant 9.99999974E-6 : f32
    %171 = vector.broadcast %cst_72 : f32 to vector<16x1xf32>
    %172 = arith.addf %170, %171 : vector<16x1xf32>
    %173 = math.rsqrt %172 : vector<16x1xf32>
    %174 = vector.broadcast %163 : vector<16x1xf32> to vector<16x256xf32>
    %175 = arith.subf %157, %174 : vector<16x256xf32>
    %176 = vector.broadcast %173 : vector<16x1xf32> to vector<16x256xf32>
    %177 = arith.mulf %175, %176 : vector<16x256xf32>
    %178 = vector.broadcast %158 : vector<1x256xf32> to vector<16x256xf32>
    %179 = arith.mulf %177, %178 : vector<16x256xf32>
    %180 = vector.broadcast %159 : vector<1x256xf32> to vector<16x256xf32>
    %181 = arith.addf %179, %180 : vector<16x256xf32>
    %c0_73 = arith.constant 0 : index
    %c0_74 = arith.constant 0 : index
    %182 = vector.load %arg13[%c0_73, %c0_74] : memref<256x128xf32, #tpu.memory_space<vmem>>, vector<256x128xf32>
    %cst_75 = arith.constant dense<0.000000e+00> : vector<16x128xf32>
    %183 = tpu.matmul %181, %182, %cst_75 {dimension_numbers = #tpu.dot_dimension_numbers<[1], [0], [0], [1], [0, 0, 1, 1], [], []>} : vector<16x256xf32>, vector<256x128xf32>, vector<16x128xf32> -> vector<16x128xf32>
    %c0_76 = arith.constant 0 : index
    %c0_77 = arith.constant 0 : index
    %184 = vector.load %arg14[%c0_76, %c0_77] : memref<1x128xf32, #tpu.memory_space<vmem>>, vector<1x128xf32>
    %185 = vector.broadcast %184 : vector<1x128xf32> to vector<16x128xf32>
    %186 = arith.addf %183, %185 : vector<16x128xf32>
    %c0_78 = arith.constant 0 : index
    %c0_79 = arith.constant 0 : index
    %c0_80 = arith.constant 0 : index
    %187 = vector.load %arg1[%c0_78, %c0_79, %c0_80] : memref<2x8x128xf32, #tpu.memory_space<vmem>>, vector<2x8x128xf32>
    %188 = vector.shape_cast %187 : vector<2x8x128xf32> to vector<16x128xf32>
    %189 = arith.addf %186, %188 : vector<16x128xf32>
    %c0_81 = arith.constant 0 : index
    %c0_82 = arith.constant 0 : index
    %190 = vector.load %arg15[%c0_81, %c0_82] : memref<1x128xf32, #tpu.memory_space<vmem>>, vector<1x128xf32>
    %c0_83 = arith.constant 0 : index
    %c0_84 = arith.constant 0 : index
    %191 = vector.load %arg16[%c0_83, %c0_84] : memref<1x128xf32, #tpu.memory_space<vmem>>, vector<1x128xf32>
    %cst_85 = arith.constant dense<0.000000e+00> : vector<16xf32>
    %192 = vector.multi_reduction <add>, %189, %cst_85 [1] : vector<16x128xf32> to vector<16xf32>
    %193 = vector.shape_cast %192 : vector<16xf32> to vector<16x1xf32>
    %cst_86 = arith.constant 1.280000e+02 : f32
    %194 = vector.broadcast %cst_86 : f32 to vector<16x1xf32>
    %195 = arith.divf %193, %194 : vector<16x1xf32>
    %196 = vector.broadcast %195 : vector<16x1xf32> to vector<16x128xf32>
    %197 = arith.subf %189, %196 : vector<16x128xf32>
    %198 = arith.mulf %197, %197 : vector<16x128xf32>
    %cst_87 = arith.constant dense<0.000000e+00> : vector<16xf32>
    %199 = vector.multi_reduction <add>, %198, %cst_87 [1] : vector<16x128xf32> to vector<16xf32>
    %200 = vector.shape_cast %199 : vector<16xf32> to vector<16x1xf32>
    %cst_88 = arith.constant 1.280000e+02 : f32
    %201 = vector.broadcast %cst_88 : f32 to vector<16x1xf32>
    %202 = arith.divf %200, %201 : vector<16x1xf32>
    %cst_89 = arith.constant 9.99999974E-6 : f32
    %203 = vector.broadcast %cst_89 : f32 to vector<16x1xf32>
    %204 = arith.addf %202, %203 : vector<16x1xf32>
    %205 = math.rsqrt %204 : vector<16x1xf32>
    %206 = vector.broadcast %195 : vector<16x1xf32> to vector<16x128xf32>
    %207 = arith.subf %189, %206 : vector<16x128xf32>
    %208 = vector.broadcast %205 : vector<16x1xf32> to vector<16x128xf32>
    %209 = arith.mulf %207, %208 : vector<16x128xf32>
    %210 = vector.broadcast %190 : vector<1x128xf32> to vector<16x128xf32>
    %211 = arith.mulf %209, %210 : vector<16x128xf32>
    %212 = vector.broadcast %191 : vector<1x128xf32> to vector<16x128xf32>
    %213 = arith.addf %211, %212 : vector<16x128xf32>
    %214 = vector.shape_cast %213 : vector<16x128xf32> to vector<2x8x128xf32>
    %c0_90 = arith.constant 0 : index
    %c0_91 = arith.constant 0 : index
    %c0_92 = arith.constant 0 : index
    %215 = vector.load %arg17[%c0_90, %c0_91, %c0_92] : memref<2x8x128xf32, #tpu.memory_space<vmem>>, vector<2x8x128xf32>
    tpu.vector_store %arg17[%c0_90, %c0_91, %c0_92], %214 {strides = array<i32>} : memref<2x8x128xf32, #tpu.memory_space<vmem>>, vector<2x8x128xf32>,
    return
  }
  func.func @transform_0(%arg0: i32) -> (i32, i32, i32) {
    %c0_i32 = arith.constant 0 : i32
    %c0_i32_0 = arith.constant 0 : i32
    %c0_i32_1 = arith.constant 0 : i32
    return %arg0, %c0_i32, %c0_i32_0 : i32, i32, i32
  }
  func.func @transform_1(%arg0: i32) -> (i32, i32) {
    %c0_i32 = arith.constant 0 : i32
    %c0_i32_0 = arith.constant 0 : i32
    %c0_i32_1 = arith.constant 0 : i32
    return %c0_i32, %c0_i32_0 : i32, i32
  }
  func.func @transform_2(%arg0: i32) -> (i32, i32) {
    %c0_i32 = arith.constant 0 : i32
    %c0_i32_0 = arith.constant 0 : i32
    %c0_i32_1 = arith.constant 0 : i32
    return %c0_i32, %c0_i32_0 : i32, i32
  }
  func.func @transform_3(%arg0: i32) -> (i32, i32) {
    %c0_i32 = arith.constant 0 : i32
    %c0_i32_0 = arith.constant 0 : i32
    %c0_i32_1 = arith.constant 0 : i32
    return %c0_i32, %c0_i32_0 : i32, i32
  }
  func.func @transform_4(%arg0: i32) -> (i32, i32) {
    %c0_i32 = arith.constant 0 : i32
    %c0_i32_0 = arith.constant 0 : i32
    %c0_i32_1 = arith.constant 0 : i32
    return %c0_i32, %c0_i32_0 : i32, i32
  }
  func.func @transform_5(%arg0: i32) -> (i32, i32) {
    %c0_i32 = arith.constant 0 : i32
    %c0_i32_0 = arith.constant 0 : i32
    %c0_i32_1 = arith.constant 0 : i32
    return %c0_i32, %c0_i32_0 : i32, i32
  }
  func.func @transform_6(%arg0: i32) -> (i32, i32) {
    %c0_i32 = arith.constant 0 : i32
    %c0_i32_0 = arith.constant 0 : i32
    %c0_i32_1 = arith.constant 0 : i32
    return %c0_i32, %c0_i32_0 : i32, i32
  }
  func.func @transform_7(%arg0: i32) -> (i32, i32) {
    %c0_i32 = arith.constant 0 : i32
    %c0_i32_0 = arith.constant 0 : i32
    %c0_i32_1 = arith.constant 0 : i32
    return %c0_i32, %c0_i32_0 : i32, i32
  }
  func.func @transform_8(%arg0: i32) -> (i32, i32) {
    %c0_i32 = arith.constant 0 : i32
    %c0_i32_0 = arith.constant 0 : i32
    %c0_i32_1 = arith.constant 0 : i32
    return %c0_i32, %c0_i32_0 : i32, i32
  }
  func.func @transform_9(%arg0: i32) -> (i32, i32) {
    %c0_i32 = arith.constant 0 : i32
    %c0_i32_0 = arith.constant 0 : i32
    %c0_i32_1 = arith.constant 0 : i32
    return %c0_i32, %c0_i32_0 : i32, i32
  }
  func.func @transform_10(%arg0: i32) -> (i32, i32) {
    %c0_i32 = arith.constant 0 : i32
    %c0_i32_0 = arith.constant 0 : i32
    %c0_i32_1 = arith.constant 0 : i32
    return %c0_i32, %c0_i32_0 : i32, i32
  }
  func.func @transform_11(%arg0: i32) -> (i32, i32) {
    %c0_i32 = arith.constant 0 : i32
    %c0_i32_0 = arith.constant 0 : i32
    %c0_i32_1 = arith.constant 0 : i32
    return %c0_i32, %c0_i32_0 : i32, i32
  }
  func.func @transform_12(%arg0: i32) -> (i32, i32) {
    %c0_i32 = arith.constant 0 : i32
    %c0_i32_0 = arith.constant 0 : i32
    %c0_i32_1 = arith.constant 0 : i32
    return %c0_i32, %c0_i32_0 : i32, i32
  }
  func.func @transform_13(%arg0: i32) -> (i32, i32) {
    %c0_i32 = arith.constant 0 : i32
    %c0_i32_0 = arith.constant 0 : i32
    %c0_i32_1 = arith.constant 0 : i32
    return %c0_i32, %c0_i32_0 : i32, i32
  }
  func.func @transform_14(%arg0: i32) -> (i32, i32) {
    %c0_i32 = arith.constant 0 : i32
    %c0_i32_0 = arith.constant 0 : i32
    %c0_i32_1 = arith.constant 0 : i32
    return %c0_i32, %c0_i32_0 : i32, i32
  }
  func.func @transform_15(%arg0: i32) -> (i32, i32) {
    %c0_i32 = arith.constant 0 : i32
    %c0_i32_0 = arith.constant 0 : i32
    %c0_i32_1 = arith.constant 0 : i32
    return %c0_i32, %c0_i32_0 : i32, i32
  }
  func.func @transform_16(%arg0: i32) -> (i32, i32, i32) {
    %c0_i32 = arith.constant 0 : i32
    %c0_i32_0 = arith.constant 0 : i32
    %c0_i32_1 = arith.constant 0 : i32
    return %arg0, %c0_i32, %c0_i32_0 : i32, i32, i32
  }
}

</mosaic_0001>

<llo_original>
// kernel: tpu_custom_call.1
$region0: #{tpu_custom_call.1}
  #allocation0 [shape = 'u32[]', space=smem, size = 0x4, offset = 0x4, fixed_abs, tag = 'smem constant byte address 0x4 - core index']
  #allocation1 [shape = 'u32[144,128]{1,0:T(1,128)}', space=vmem, size = 0x12000, scoped, tag = 'internal scratch']
  %s0 = inlined_call_operand.hbm [shape: f32[2,8,128], index: 0, kind: input, shape index: {}]
  %s1 = inlined_call_operand.hbm [shape: f32[128,384], index: 1, kind: input, shape index: {}]
  %s2 = inlined_call_operand.hbm [shape: f32[128,128], index: 2, kind: input, shape index: {}]
  %s3 = inlined_call_operand.vmem [shape: f32[1,128], index: 3, kind: input, shape index: {}]
  %s4 = inlined_call_operand.hbm [shape: f32[1,128], index: 4, kind: input, shape index: {}]
  %s5 = inlined_call_operand.vmem [shape: f32[1,128], index: 5, kind: input, shape index: {}]
  %s6 = inlined_call_operand.vmem [shape: f32[1,128], index: 6, kind: input, shape index: {}]
  %s7 = inlined_call_operand.vmem [shape: f32[1,128], index: 7, kind: input, shape index: {}]
  %s8 = inlined_call_operand.hbm [shape: f32[128,256], index: 8, kind: input, shape index: {}]
  %s9 = inlined_call_operand.vmem [shape: f32[1,256], index: 9, kind: input, shape index: {}]
  %s10 = inlined_call_operand.vmem [shape: f32[1,256], index: 10, kind: input, shape index: {}]
  %s11 = inlined_call_operand.vmem [shape: f32[1,256], index: 11, kind: input, shape index: {}]
  %s12 = inlined_call_operand.hbm [shape: f32[256,128], index: 12, kind: input, shape index: {}]
  %s13 = inlined_call_operand.vmem [shape: f32[1,128], index: 13, kind: input, shape index: {}]
  %s14 = inlined_call_operand.vmem [shape: f32[1,128], index: 14, kind: input, shape index: {}]
  %s15 = inlined_call_operand.vmem [shape: f32[1,128], index: 15, kind: input, shape index: {}]
  %s16 = inlined_call_operand.hbm [shape: f32[2,8,128], index: 16, kind: output, shape index: {}]
  %s17 = sld [smem:[#allocation0]]
  $region98: #{tpu_custom_call.1} parent=0
    _
  %s19 = ssub.s32 1, %s17
  %s20 = scalar_select 0, %s19, %s17
  $region1: #{tpu_custom_call.1} parent=0
    #allocation2 [shape = 'u8[8192]{0}', space=vmem, size = 0x2000, scoped, tag = 'input window, operand 0, single buffered']
    #allocation3 [shape = 's32[1]{0}', space=sflag, size = 0x4, scoped, tag = 'scoped memory for tpu_custom_call.1']
    #allocation4 [shape = 's32[1]{0}', space=sflag, size = 0x4, scoped, tag = 'scoped memory for tpu_custom_call.1']
    #allocation5 [shape = 'u8[196608]{0}', space=vmem, size = 0x30000, scoped, tag = 'input window, operand 1, single buffered']
    #allocation6 [shape = 's32[1]{0}', space=sflag, size = 0x4, scoped, tag = 'scoped memory for tpu_custom_call.1']
    #allocation7 [shape = 'u8[65536]{0}', space=vmem, size = 0x10000, scoped, tag = 'input window, operand 2, single buffered']
    #allocation8 [shape = 'u8[512]{0}', space=vmem, size = 0x400, scoped, tag = 'input window, operand 4, single buffered']
    #allocation9 [shape = 's32[1]{0}', space=sflag, size = 0x4, scoped, tag = 'scoped memory for tpu_custom_call.1']
    #allocation10 [shape = 'u8[131072]{0}', space=vmem, size = 0x20000, scoped, tag = 'input window, operand 8, single buffered']
    #allocation11 [shape = 'u8[131072]{0}', space=vmem, size = 0x20000, scoped, tag = 'input window, operand 12, single buffered']
    #allocation12 [shape = 's32[1]{0}', space=sflag, size = 0x4, scoped, tag = 'scoped memory for tpu_custom_call.1']
    #allocation13 [shape = 'u8[8192]{0}', space=vmem, size = 0x2000, scoped, tag = 'output window, operand 0, single buffered']
    %21 = vsyncpa [#allocation3], 0
    %22 = vsyncpa [#allocation6], 0
    %23 = vsyncpa [#allocation9], 0
    %24 = vsyncpa [#allocation12], 0
    %25 = vsyncpa [#allocation4], 0
    // Predicated region
    $region2: #{tpu_custom_call.1} parent=1 // pred_check
      _
    $region3: #{tpu_custom_call.1} parent=1 // pred_check_branch
      %27 = sbr.rel (0) target = $region5
    $region4: #{tpu_custom_call.1} parent=1 // pred_region
      %s29 = ssub.s32 256, 256
      %30 = vsyncadd [#allocation3], %s29
      %s31 = sshll.u32 [#allocation2], 4
      %s32 = int_to_ptr.vmem [resolvable:$true] %s31
      %37 = dma.hbm_to_vmem [thread:$0]  %s0, 256, %s32, [#allocation3], 128, 128, 8
    $region5: #{tpu_custom_call.1} parent=1 // pred_fallthru
      _
    // Predicated region
    $region6: #{tpu_custom_call.1} parent=1 // pred_check
      _
    $region7: #{tpu_custom_call.1} parent=1 // pred_check_branch
      %39 = sbr.rel (0) target = $region9
    $region8: #{tpu_custom_call.1} parent=1 // pred_region
      %s41 = ssub.s32 6144, 6144
      %42 = vsyncadd [#allocation6], %s41
      %s43 = sshll.u32 [#allocation5], 4
      %s44 = int_to_ptr.vmem [resolvable:$true] %s43
      %49 = dma.hbm_to_vmem [thread:$0]  %s1, 6144, %s44, [#allocation6], 384, 384, 24
    $region9: #{tpu_custom_call.1} parent=1 // pred_fallthru
      _
    // Predicated region
    $region10: #{tpu_custom_call.1} parent=1 // pred_check
      _
    $region11: #{tpu_custom_call.1} parent=1 // pred_check_branch
      %51 = sbr.rel (0) target = $region13
    $region12: #{tpu_custom_call.1} parent=1 // pred_region
      %s53 = ssub.s32 2048, 2048
      %54 = vsyncadd [#allocation6], %s53
      %s55 = sshll.u32 [#allocation7], 4
      %s56 = int_to_ptr.vmem [resolvable:$true] %s55
      %61 = dma.hbm_to_vmem [thread:$0]  %s2, 2048, %s56, [#allocation6], 128, 128, 8
    $region13: #{tpu_custom_call.1} parent=1 // pred_fallthru
      _
    // Predicated region
    $region14: #{tpu_custom_call.1} parent=1 // pred_check
      _
    $region15: #{tpu_custom_call.1} parent=1 // pred_check_branch
      %63 = sbr.rel (0) target = $region17
    $region16: #{tpu_custom_call.1} parent=1 // pred_region
      _
    $region17: #{tpu_custom_call.1} parent=1 // pred_fallthru
      _
    // Predicated region
    $region18: #{tpu_custom_call.1} parent=1 // pred_check
      _
    $region19: #{tpu_custom_call.1} parent=1 // pred_check_branch
      %65 = sbr.rel (0) target = $region21
    $region20: #{tpu_custom_call.1} parent=1 // pred_region
      %s67 = ssub.s32 16, 16
      %68 = vsyncadd [#allocation9], %s67
      %s70 = sshll.u32 [#allocation8], 4
      %s71 = int_to_ptr.vmem [resolvable:$true] %s70
      %73 = dma.hbm_to_vmem [thread:$0]  %s4, 16, %s71, [#allocation9]
    $region21: #{tpu_custom_call.1} parent=1 // pred_fallthru
      _
    // Predicated region
    $region22: #{tpu_custom_call.1} parent=1 // pred_check
      _
    $region23: #{tpu_custom_call.1} parent=1 // pred_check_branch
      %75 = sbr.rel (0) target = $region25
    $region24: #{tpu_custom_call.1} parent=1 // pred_region
      _
    $region25: #{tpu_custom_call.1} parent=1 // pred_fallthru
      _
    // Predicated region
    $region26: #{tpu_custom_call.1} parent=1 // pred_check
      _
    $region27: #{tpu_custom_call.1} parent=1 // pred_check_branch
      %77 = sbr.rel (0) target = $region29
    $region28: #{tpu_custom_call.1} parent=1 // pred_region
      _
    $region29: #{tpu_custom_call.1} parent=1 // pred_fallthru
      _
    // Predicated region
    $region30: #{tpu_custom_call.1} parent=1 // pred_check
      _
    $region31: #{tpu_custom_call.1} parent=1 // pred_check_branch
      %79 = sbr.rel (0) target = $region33
    $region32: #{tpu_custom_call.1} parent=1 // pred_region
      _
    $region33: #{tpu_custom_call.1} parent=1 // pred_fallthru
      _
    // Predicated region
    $region34: #{tpu_custom_call.1} parent=1 // pred_check
      _
    $region35: #{tpu_custom_call.1} parent=1 // pred_check_branch
      %81 = sbr.rel (0) target = $region37
    $region36: #{tpu_custom_call.1} parent=1 // pred_region
      %s83 = ssub.s32 4096, 4096
      %84 = vsyncadd [#allocation9], %s83
      %s85 = sshll.u32 [#allocation10], 4
      %s86 = int_to_ptr.vmem [resolvable:$true] %s85
      %91 = dma.hbm_to_vmem [thread:$0]  %s8, 4096, %s86, [#allocation9], 256, 256, 16
    $region37: #{tpu_custom_call.1} parent=1 // pred_fallthru
      _
    // Predicated region
    $region38: #{tpu_custom_call.1} parent=1 // pred_check
      _
    $region39: #{tpu_custom_call.1} parent=1 // pred_check_branch
      %93 = sbr.rel (0) target = $region41
    $region40: #{tpu_custom_call.1} parent=1 // pred_region
      _
    $region41: #{tpu_custom_call.1} parent=1 // pred_fallthru
      _
    // Predicated region
    $region42: #{tpu_custom_call.1} parent=1 // pred_check
      _
    $region43: #{tpu_custom_call.1} parent=1 // pred_check_branch
      %95 = sbr.rel (0) target = $region45
    $region44: #{tpu_custom_call.1} parent=1 // pred_region
      _
    $region45: #{tpu_custom_call.1} parent=1 // pred_fallthru
      _
    // Predicated region
    $region46: #{tpu_custom_call.1} parent=1 // pred_check
      _
    $region47: #{tpu_custom_call.1} parent=1 // pred_check_branch
      %97 = sbr.rel (0) target = $region49
    $region48: #{tpu_custom_call.1} parent=1 // pred_region
      _
    $region49: #{tpu_custom_call.1} parent=1 // pred_fallthru
      _
    // Predicated region
    $region50: #{tpu_custom_call.1} parent=1 // pred_check
      _
    $region51: #{tpu_custom_call.1} parent=1 // pred_check_branch
      %99 = sbr.rel (0) target = $region53
    $region52: #{tpu_custom_call.1} parent=1 // pred_region
      %s101 = ssub.s32 4096, 4096
      %102 = vsyncadd [#allocation12], %s101
      %s103 = sshll.u32 [#allocation11], 4
      %s104 = int_to_ptr.vmem [resolvable:$true] %s103
      %109 = dma.hbm_to_vmem [thread:$0]  %s12, 4096, %s104, [#allocation12], 128, 128, 8
    $region53: #{tpu_custom_call.1} parent=1 // pred_fallthru
      _
    // Predicated region
    $region54: #{tpu_custom_call.1} parent=1 // pred_check
      _
    $region55: #{tpu_custom_call.1} parent=1 // pred_check_branch
      %111 = sbr.rel (0) target = $region57
    $region56: #{tpu_custom_call.1} parent=1 // pred_region
      _
    $region57: #{tpu_custom_call.1} parent=1 // pred_fallthru
      _
    // Predicated region
    $region58: #{tpu_custom_call.1} parent=1 // pred_check
      _
    $region59: #{tpu_custom_call.1} parent=1 // pred_check_branch
      %113 = sbr.rel (0) target = $region61
    $region60: #{tpu_custom_call.1} parent=1 // pred_region
      _
    $region61: #{tpu_custom_call.1} parent=1 // pred_fallthru
      _
    // Predicated region
    $region62: #{tpu_custom_call.1} parent=1 // pred_check
      _
    $region63: #{tpu_custom_call.1} parent=1 // pred_check_branch
      %115 = sbr.rel (0) target = $region65
    $region64: #{tpu_custom_call.1} parent=1 // pred_region
      _
    $region65: #{tpu_custom_call.1} parent=1 // pred_fallthru
      _
    // Predicated region
    $region66: #{tpu_custom_call.1} parent=1 // pred_check
      _
    $region67: #{tpu_custom_call.1} parent=1 // pred_check_branch
      %117 = sbr.rel (0) target = $region69
    $region68: #{tpu_custom_call.1} parent=1 // pred_region
      %118 = dma.done [#allocation3], 256
    $region69: #{tpu_custom_call.1} parent=1 // pred_fallthru
      _
    // Predicated region
    $region70: #{tpu_custom_call.1} parent=1 // pred_check
      _
    $region71: #{tpu_custom_call.1} parent=1 // pred_check_branch
      %120 = sbr.rel (0) target = $region73
    $region72: #{tpu_custom_call.1} parent=1 // pred_region
      %121 = dma.done [#allocation6], 6144
    $region73: #{tpu_custom_call.1} parent=1 // pred_fallthru
      _
    // Predicated region
    $region74: #{tpu_custom_call.1} parent=1 // pred_check
      _
    $region75: #{tpu_custom_call.1} parent=1 // pred_check_branch
      %123 = sbr.rel (0) target = $region77
    $region76: #{tpu_custom_call.1} parent=1 // pred_region
      %124 = dma.done [#allocation6], 2048
    $region77: #{tpu_custom_call.1} parent=1 // pred_fallthru
      _
    // Predicated region
    $region78: #{tpu_custom_call.1} parent=1 // pred_check
      _
    $region79: #{tpu_custom_call.1} parent=1 // pred_check_branch
      %126 = sbr.rel (0) target = $region81
    $region80: #{tpu_custom_call.1} parent=1 // pred_region
      %127 = dma.done [#allocation9], 16
    $region81: #{tpu_custom_call.1} parent=1 // pred_fallthru
      _
    // Predicated region
    $region82: #{tpu_custom_call.1} parent=1 // pred_check
      _
    $region83: #{tpu_custom_call.1} parent=1 // pred_check_branch
      %129 = sbr.rel (0) target = $region85
    $region84: #{tpu_custom_call.1} parent=1 // pred_region
      %130 = dma.done [#allocation9], 4096
    $region85: #{tpu_custom_call.1} parent=1 // pred_fallthru
      _
    // Predicated region
    $region86: #{tpu_custom_call.1} parent=1 // pred_check
      _
    $region87: #{tpu_custom_call.1} parent=1 // pred_check_branch
      %132 = sbr.rel (0) target = $region89
    $region88: #{tpu_custom_call.1} parent=1 // pred_region
      %133 = dma.done [#allocation12], 4096
    $region89: #{tpu_custom_call.1} parent=1 // pred_fallthru
      _
    %v134 = vld [vmem:[#allocation2] sm:$0xff]
    %v135 = vld [vmem:[#allocation2 + $0x8] sm:$0xff]
    %v136 = vld [vmem:[#allocation5] sm:$0xff]
    %v137 = vld [vmem:[#allocation5 + $0x8] sm:$0xff]
    %v138 = vld [vmem:[#allocation5 + $0x10] sm:$0xff]
    %v139 = vld [vmem:[#allocation5 + $0x18] sm:$0xff]
    %v140 = vld [vmem:[#allocation5 + $0x20] sm:$0xff]
    %v141 = vld [vmem:[#allocation5 + $0x28] sm:$0xff]
    %v142 = vld [vmem:[#allocation5 + $0x30] sm:$0xff]
    %v143 = vld [vmem:[#allocation5 + $0x38] sm:$0xff]
    %v144 = vld [vmem:[#allocation5 + $0x40] sm:$0xff]
    %v145 = vld [vmem:[#allocation5 + $0x48] sm:$0xff]
    %v146 = vld [vmem:[#allocation5 + $0x50] sm:$0xff]
    %v147 = vld [vmem:[#allocation5 + $0x58] sm:$0xff]
    %v148 = vld [vmem:[#allocation5 + $0x60] sm:$0xff]
    %v149 = vld [vmem:[#allocation5 + $0x68] sm:$0xff]
    %v150 = vld [vmem:[#allocation5 + $0x70] sm:$0xff]
    %v151 = vld [vmem:[#allocation5 + $0x78] sm:$0xff]
    %v152 = vld [vmem:[#allocation5 + $0x80] sm:$0xff]
    %v153 = vld [vmem:[#allocation5 + $0x88] sm:$0xff]
    %v154 = vld [vmem:[#allocation5 + $0x90] sm:$0xff]
    %v155 = vld [vmem:[#allocation5 + $0x98] sm:$0xff]
    %v156 = vld [vmem:[#allocation5 + $0xa0] sm:$0xff]
    %v157 = vld [vmem:[#allocation5 + $0xa8] sm:$0xff]
    %v158 = vld [vmem:[#allocation5 + $0xb0] sm:$0xff]
    %v159 = vld [vmem:[#allocation5 + $0xb8] sm:$0xff]
    %v160 = vld [vmem:[#allocation5 + $0xc0] sm:$0xff]
    %v161 = vld [vmem:[#allocation5 + $0xc8] sm:$0xff]
    %v162 = vld [vmem:[#allocation5 + $0xd0] sm:$0xff]
    %v163 = vld [vmem:[#allocation5 + $0xd8] sm:$0xff]
    %v164 = vld [vmem:[#allocation5 + $0xe0] sm:$0xff]
    %v165 = vld [vmem:[#allocation5 + $0xe8] sm:$0xff]
    %v166 = vld [vmem:[#allocation5 + $0xf0] sm:$0xff]
    %v167 = vld [vmem:[#allocation5 + $0xf8] sm:$0xff]
    %v168 = vld [vmem:[#allocation5 + $0x100] sm:$0xff]
    %v169 = vld [vmem:[#allocation5 + $0x108] sm:$0xff]
    %v170 = vld [vmem:[#allocation5 + $0x110] sm:$0xff]
    %v171 = vld [vmem:[#allocation5 + $0x118] sm:$0xff]
    %v172 = vld [vmem:[#allocation5 + $0x120] sm:$0xff]
    %v173 = vld [vmem:[#allocation5 + $0x128] sm:$0xff]
    %v174 = vld [vmem:[#allocation5 + $0x130] sm:$0xff]
    %v175 = vld [vmem:[#allocation5 + $0x138] sm:$0xff]
    %v176 = vld [vmem:[#allocation5 + $0x140] sm:$0xff]
    %v177 = vld [vmem:[#allocation5 + $0x148] sm:$0xff]
    %v178 = vld [vmem:[#allocation5 + $0x150] sm:$0xff]
    %v179 = vld [vmem:[#allocation5 + $0x158] sm:$0xff]
    %v180 = vld [vmem:[#allocation5 + $0x160] sm:$0xff]
    %v181 = vld [vmem:[#allocation5 + $0x168] sm:$0xff]
    %v182 = vld [vmem:[#allocation5 + $0x170] sm:$0xff]
    %v183 = vld [vmem:[#allocation5 + $0x178] sm:$0xff]
    %184 = vmatprep.subr.mxu0 %v182
    %185 = vmatpush1.msra.mxu0 %v181
    %186 = vmatprep.subr.mxu0 %v179
    %187 = vmatpush1.msra.mxu0 %v178
    %188 = vmatprep.subr.mxu0 %v176
    %189 = vmatpush1.msra.mxu0 %v175
    %190 = vmatprep.subr.mxu0 %v173
    %191 = vmatpush1.msra.mxu0 %v172
    %192 = vmatprep.subr.mxu0 %v170
    %193 = vmatpush1.msra.mxu0 %v169
    %194 = vmatprep.subr.mxu0 %v167
    %195 = vmatpush1.msra.mxu0 %v166
    %196 = vmatprep.subr.mxu0 %v164
    %197 = vmatpush1.msra.mxu0 %v163
    %198 = vmatprep.subr.mxu0 %v161
    %199 = vmatpush1.msra.mxu0 %v160
    %200 = vmatprep.subr.mxu0 %v158
    %201 = vmatpush1.msra.mxu0 %v157
    %202 = vmatprep.subr.mxu0 %v155
    %203 = vmatpush1.msra.mxu0 %v154
    %204 = vmatprep.subr.mxu0 %v152
    %205 = vmatpush1.msra.mxu0 %v151
    %206 = vmatprep.subr.mxu0 %v149
    %207 = vmatpush1.msra.mxu0 %v148
    %208 = vmatprep.subr.mxu0 %v146
    %209 = vmatpush1.msra.mxu0 %v145
    %210 = vmatprep.subr.mxu0 %v143
    %211 = vmatpush1.msra.mxu0 %v142
    %212 = vmatprep.subr.mxu0 %v140
    %213 = vmatpush1.msra.mxu0 %v139
    %214 = vmatprep.subr.mxu0 %v137
    %215 = vmatpush1.msra.mxu0 %v136
    %216 = vmatprep.subr.mxu0 0.0
    %217 = vmatpush2.msra.mxu0 0.0
    %218 = vmatprep.subr.mxu0 0.0
    %219 = vmatpush2.msra.mxu0 0.0
    %220 = vmatprep.subr.mxu0 0.0
    %221 = vmatpush2.msra.mxu0 0.0
    %222 = vmatprep.subr.mxu0 0.0
    %223 = vmatpush2.msra.mxu0 0.0
    %224 = vmatprep.subr.mxu0 0.0
    %225 = vmatpush2.msra.mxu0 0.0
    %226 = vmatprep.subr.mxu0 0.0
    %227 = vmatpush2.msra.mxu0 0.0
    %228 = vmatprep.subr.mxu0 0.0
    %229 = vmatpush2.msra.mxu0 0.0
    %230 = vmatprep.subr.mxu0 0.0
    %231 = vmatpush2.msra.mxu0 0.0
    %232 = vmatprep.subr.mxu0 0.0
    %233 = vmatpush2.msra.mxu0 0.0
    %234 = vmatprep.subr.mxu0 0.0
    %235 = vmatpush2.msra.mxu0 0.0
    %236 = vmatprep.subr.mxu0 0.0
    %237 = vmatpush2.msra.mxu0 0.0
    %238 = vmatprep.subr.mxu0 0.0
    %239 = vmatpush2.msra.mxu0 0.0
    %240 = vmatprep.subr.mxu0 0.0
    %241 = vmatpush2.msra.mxu0 0.0
    %242 = vmatprep.subr.mxu0 0.0
    %243 = vmatpush2.msra.mxu0 0.0
    %244 = vmatprep.subr.mxu0 0.0
    %245 = vmatpush2.msra.mxu0 0.0
    %246 = vmatprep.subr.mxu0 0.0
    %247 = vmatpush2.msra.mxu0 0.0
    %248 = vmatprep.mubr.f32.mxu0 0.0
    %249 = vmatmul.mubr.f32.gmra.mxu0 %v134
    %v250 = vpop.f32.mrf.mxu0
    %v251 = vadd.f32 0.0, %v250
    %v252 = vpop.f32.mrf.mxu0
    %v253 = vadd.f32 0.0, %v252
    %254 = vmatprep.mubr.f32.mxu0 0.0
    %255 = vmatmul.mubr.f32.gmra.mxu0 %v135
    %v256 = vpop.f32.mrf.mxu0
    %v257 = vadd.f32 0.0, %v256
    %v258 = vpop.f32.mrf.mxu0
    %v259 = vadd.f32 0.0, %v258
    %260 = vdwg.mxu0
    %261 = vmatprep.subr.mxu0 0.0
    %262 = vmatpush1.msra.mxu0 %v183
    %263 = vmatprep.subr.mxu0 0.0
    %264 = vmatpush1.msra.mxu0 %v180
    %265 = vmatprep.subr.mxu0 0.0
    %266 = vmatpush1.msra.mxu0 %v177
    %267 = vmatprep.subr.mxu0 0.0
    %268 = vmatpush1.msra.mxu0 %v174
    %269 = vmatprep.subr.mxu0 0.0
    %270 = vmatpush1.msra.mxu0 %v171
    %271 = vmatprep.subr.mxu0 0.0
    %272 = vmatpush1.msra.mxu0 %v168
    %273 = vmatprep.subr.mxu0 0.0
    %274 = vmatpush1.msra.mxu0 %v165
    %275 = vmatprep.subr.mxu0 0.0
    %276 = vmatpush1.msra.mxu0 %v162
    %277 = vmatprep.subr.mxu0 0.0
    %278 = vmatpush1.msra.mxu0 %v159
    %279 = vmatprep.subr.mxu0 0.0
    %280 = vmatpush1.msra.mxu0 %v156
    %281 = vmatprep.subr.mxu0 0.0
    %282 = vmatpush1.msra.mxu0 %v153
    %283 = vmatprep.subr.mxu0 0.0
    %284 = vmatpush1.msra.mxu0 %v150
    %285 = vmatprep.subr.mxu0 0.0
    %286 = vmatpush1.msra.mxu0 %v147
    %287 = vmatprep.subr.mxu0 0.0
    %288 = vmatpush1.msra.mxu0 %v144
    %289 = vmatprep.subr.mxu0 0.0
    %290 = vmatpush1.msra.mxu0 %v141
    %291 = vmatprep.subr.mxu0 0.0
    %292 = vmatpush1.msra.mxu0 %v138
    %293 = vmatprep.subr.mxu0 0.0
    %294 = vmatpush2.msra.mxu0 0.0
    %295 = vmatprep.subr.mxu0 0.0
    %296 = vmatpush2.msra.mxu0 0.0
    %297 = vmatprep.subr.mxu0 0.0
    %298 = vmatpush2.msra.mxu0 0.0
    %299 = vmatprep.subr.mxu0 0.0
    %300 = vmatpush2.msra.mxu0 0.0
    %301 = vmatprep.subr.mxu0 0.0
    %302 = vmatpush2.msra.mxu0 0.0
    %303 = vmatprep.subr.mxu0 0.0
    %304 = vmatpush2.msra.mxu0 0.0
    %305 = vmatprep.subr.mxu0 0.0
    %306 = vmatpush2.msra.mxu0 0.0
    %307 = vmatprep.subr.mxu0 0.0
    %308 = vmatpush2.msra.mxu0 0.0
    %309 = vmatprep.subr.mxu0 0.0
    %310 = vmatpush2.msra.mxu0 0.0
    %311 = vmatprep.subr.mxu0 0.0
    %312 = vmatpush2.msra.mxu0 0.0
    %313 = vmatprep.subr.mxu0 0.0
    %314 = vmatpush2.msra.mxu0 0.0
    %315 = vmatprep.subr.mxu0 0.0
    %316 = vmatpush2.msra.mxu0 0.0
    %317 = vmatprep.subr.mxu0 0.0
    %318 = vmatpush2.msra.mxu0 0.0
    %319 = vmatprep.subr.mxu0 0.0
    %320 = vmatpush2.msra.mxu0 0.0
    %321 = vmatprep.subr.mxu0 0.0
    %322 = vmatpush2.msra.mxu0 0.0
    %323 = vmatprep.subr.mxu0 0.0
    %324 = vmatpush2.msra.mxu0 0.0
    %325 = vmatprep.mubr.f32.mxu0 0.0
    %326 = vmatmul.mubr.f32.gmra.mxu0 %v134
    %v327 = vpop.f32.mrf.mxu0
    %v328 = vadd.f32 0.0, %v327
    %v329 = vpop.f32.mrf.mxu0
    %330 = vmatprep.mubr.f32.mxu0 0.0
    %331 = vmatmul.mubr.f32.gmra.mxu0 %v135
    %v332 = vpop.f32.mrf.mxu0
    %v333 = vadd.f32 0.0, %v332
    %v334 = vpop.f32.mrf.mxu0
    %335 = vdwg.mxu0
    %vm336 = vcmask 261120
    %v338 = vsel %vm336, %v251, 0
    %v341 = vsel %vm336, %v253, 0
    %343 = vmatprep.subr.mxu0 0.0
    %344 = vmatpush1.xpose.msra.mxu0 0.0
    %345 = vmatprep.subr.mxu0 0.0
    %346 = vmatpush1.xpose.msra.mxu0 0.0
    %347 = vmatprep.subr.mxu0 0.0
    %348 = vmatpush1.xpose.msra.mxu0 0.0
    %349 = vmatprep.subr.mxu0 0.0
    %350 = vmatpush1.xpose.msra.mxu0 0.0
    %351 = vmatprep.subr.mxu0 0.0
    %352 = vmatpush1.xpose.msra.mxu0 0.0
    %353 = vmatprep.subr.mxu0 0.0
    %354 = vmatpush1.xpose.msra.mxu0 0.0
    %355 = vmatprep.subr.mxu0 0.0
    %356 = vmatpush1.xpose.msra.mxu0 0.0
    %357 = vmatprep.subr.mxu0 0.0
    %358 = vmatpush1.xpose.msra.mxu0 0.0
    %359 = vmatprep.subr.mxu0 0.0
    %360 = vmatpush1.xpose.msra.mxu0 0.0
    %361 = vmatprep.subr.mxu0 0.0
    %362 = vmatpush1.xpose.msra.mxu0 0.0
    %363 = vmatprep.subr.mxu0 0.0
    %364 = vmatpush1.xpose.msra.mxu0 0.0
    %365 = vmatprep.subr.mxu0 0.0
    %366 = vmatpush1.xpose.msra.mxu0 0.0
    %367 = vmatprep.subr.mxu0 0.0
    %368 = vmatpush1.xpose.msra.mxu0 0.0
    %369 = vmatprep.subr.mxu0 0.0
    %370 = vmatpush1.xpose.msra.mxu0 0.0
    %371 = vmatprep.subr.mxu0 0.0
    %372 = vmatpush1.xpose.msra.mxu0 0.0
    %373 = vmatprep.subr.mxu0 0.0
    %374 = vmatpush1.xpose.msra.mxu0 %v341
    %375 = vmatprep.subr.mxu0 0.0
    %376 = vmatpush2.xpose.msra.mxu0 0.0
    %377 = vmatprep.subr.mxu0 0.0
    %378 = vmatpush2.xpose.msra.mxu0 0.0
    %379 = vmatprep.subr.mxu0 0.0
    %380 = vmatpush2.xpose.msra.mxu0 0.0
    %381 = vmatprep.subr.mxu0 0.0
    %382 = vmatpush2.xpose.msra.mxu0 0.0
    %383 = vmatprep.subr.mxu0 0.0
    %384 = vmatpush2.xpose.msra.mxu0 0.0
    %385 = vmatprep.subr.mxu0 0.0
    %386 = vmatpush2.xpose.msra.mxu0 0.0
    %387 = vmatprep.subr.mxu0 0.0
    %388 = vmatpush2.xpose.msra.mxu0 0.0
    %389 = vmatprep.subr.mxu0 0.0
    %390 = vmatpush2.xpose.msra.mxu0 0.0
    %391 = vmatprep.subr.mxu0 0.0
    %392 = vmatpush2.xpose.msra.mxu0 0.0
    %393 = vmatprep.subr.mxu0 0.0
    %394 = vmatpush2.xpose.msra.mxu0 0.0
    %395 = vmatprep.subr.mxu0 0.0
    %396 = vmatpush2.xpose.msra.mxu0 0.0
    %397 = vmatprep.subr.mxu0 0.0
    %398 = vmatpush2.xpose.msra.mxu0 0.0
    %399 = vmatprep.subr.mxu0 0.0
    %400 = vmatpush2.xpose.msra.mxu0 0.0
    %401 = vmatprep.subr.mxu0 0.0
    %402 = vmatpush2.xpose.msra.mxu0 0.0
    %403 = vmatprep.subr.mxu0 0.0
    %404 = vmatpush2.xpose.msra.mxu0 0.0
    %405 = vmatprep.subr.mxu0 0.0
    %406 = vmatpush2.xpose.msra.mxu0 0.0
    %407 = vmatprep.mubr.f32.mxu0 0.0
    %408 = vmatmul.mubr.f32.gmra.mxu0 %v338
    %v409 = vpop.f32.mrf.mxu0
    %v410 = vadd.f32 0.0, %v409
    %v411 = vpop.f32.mrf.mxu0
    %412 = vdwg.mxu0
    %v414 = vsel %vm336, %v257, 0
    %v417 = vsel %vm336, %v259, 0
    %419 = vmatprep.subr.mxu0 0.0
    %420 = vmatpush1.xpose.msra.mxu0 0.0
    %421 = vmatprep.subr.mxu0 0.0
    %422 = vmatpush1.xpose.msra.mxu0 0.0
    %423 = vmatprep.subr.mxu0 0.0
    %424 = vmatpush1.xpose.msra.mxu0 0.0
    %425 = vmatprep.subr.mxu0 0.0
    %426 = vmatpush1.xpose.msra.mxu0 0.0
    %427 = vmatprep.subr.mxu0 0.0
    %428 = vmatpush1.xpose.msra.mxu0 0.0
    %429 = vmatprep.subr.mxu0 0.0
    %430 = vmatpush1.xpose.msra.mxu0 0.0
    %431 = vmatprep.subr.mxu0 0.0
    %432 = vmatpush1.xpose.msra.mxu0 0.0
    %433 = vmatprep.subr.mxu0 0.0
    %434 = vmatpush1.xpose.msra.mxu0 0.0
    %435 = vmatprep.subr.mxu0 0.0
    %436 = vmatpush1.xpose.msra.mxu0 0.0
    %437 = vmatprep.subr.mxu0 0.0
    %438 = vmatpush1.xpose.msra.mxu0 0.0
    %439 = vmatprep.subr.mxu0 0.0
    %440 = vmatpush1.xpose.msra.mxu0 0.0
    %441 = vmatprep.subr.mxu0 0.0
    %442 = vmatpush1.xpose.msra.mxu0 0.0
    %443 = vmatprep.subr.mxu0 0.0
    %444 = vmatpush1.xpose.msra.mxu0 0.0
    %445 = vmatprep.subr.mxu0 0.0
    %446 = vmatpush1.xpose.msra.mxu0 0.0
    %447 = vmatprep.subr.mxu0 0.0
    %448 = vmatpush1.xpose.msra.mxu0 0.0
    %449 = vmatprep.subr.mxu0 0.0
    %450 = vmatpush1.xpose.msra.mxu0 %v417
    %451 = vmatprep.subr.mxu0 0.0
    %452 = vmatpush2.xpose.msra.mxu0 0.0
    %453 = vmatprep.subr.mxu0 0.0
    %454 = vmatpush2.xpose.msra.mxu0 0.0
    %455 = vmatprep.subr.mxu0 0.0
    %456 = vmatpush2.xpose.msra.mxu0 0.0
    %457 = vmatprep.subr.mxu0 0.0
    %458 = vmatpush2.xpose.msra.mxu0 0.0
    %459 = vmatprep.subr.mxu0 0.0
    %460 = vmatpush2.xpose.msra.mxu0 0.0
    %461 = vmatprep.subr.mxu0 0.0
    %462 = vmatpush2.xpose.msra.mxu0 0.0
    %463 = vmatprep.subr.mxu0 0.0
    %464 = vmatpush2.xpose.msra.mxu0 0.0
    %465 = vmatprep.subr.mxu0 0.0
    %466 = vmatpush2.xpose.msra.mxu0 0.0
    %467 = vmatprep.subr.mxu0 0.0
    %468 = vmatpush2.xpose.msra.mxu0 0.0
    %469 = vmatprep.subr.mxu0 0.0
    %470 = vmatpush2.xpose.msra.mxu0 0.0
    %471 = vmatprep.subr.mxu0 0.0
    %472 = vmatpush2.xpose.msra.mxu0 0.0
    %473 = vmatprep.subr.mxu0 0.0
    %474 = vmatpush2.xpose.msra.mxu0 0.0
    %475 = vmatprep.subr.mxu0 0.0
    %476 = vmatpush2.xpose.msra.mxu0 0.0
    %477 = vmatprep.subr.mxu0 0.0
    %478 = vmatpush2.xpose.msra.mxu0 0.0
    %479 = vmatprep.subr.mxu0 0.0
    %480 = vmatpush2.xpose.msra.mxu0 0.0
    %481 = vmatprep.subr.mxu0 0.0
    %482 = vmatpush2.xpose.msra.mxu0 0.0
    %483 = vmatprep.mubr.f32.mxu0 0.0
    %484 = vmatmul.mubr.f32.gmra.mxu0 %v414
    %v485 = vpop.f32.mrf.mxu0
    %v486 = vadd.f32 0.0, %v485
    %v487 = vpop.f32.mrf.mxu0
    %488 = vdwg.mxu0
    %vm489 = vcmask 64512
    %v490 = vsel %vm489, %v410, -inf
    %491 = vmax.xlane.f32.xlu0 %v490
    %v492 = vpop.xlane.xlu0 %491
    %v493 = vsel %vm489, %v486, -inf
    %494 = vmax.xlane.f32.xlu0 %v493
    %v495 = vpop.xlane.xlu0 %494
    %v496 = vsub.f32 %v410, %v492
    %v497 = vsub.f32 %v486, %v495
    %v498 = vmul.f32 %v496, 1.442695
    %v499 = vpow.pop %v498
    %v500 = vmul.f32 %v497, 1.442695
    %v501 = vpow.pop %v500
    %v502 = vsel %vm489, %v499, 0.0
    %503 = vadd.xlane.f32.xlu0 %v502
    %v504 = vpop.xlane.xlu0 %503
    %v505 = vsel %vm489, %v501, 0.0
    %506 = vadd.xlane.f32.xlu0 %v505
    %v507 = vpop.xlane.xlu0 %506
    %v509 = vsel %vm489, %v499, 0
    %511 = vmatprep.subr.mxu0 0.0
    %512 = vmatpush1.msra.mxu0 0.0
    %513 = vmatprep.subr.mxu0 0.0
    %514 = vmatpush1.msra.mxu0 0.0
    %515 = vmatprep.subr.mxu0 0.0
    %516 = vmatpush1.msra.mxu0 0.0
    %517 = vmatprep.subr.mxu0 0.0
    %518 = vmatpush1.msra.mxu0 0.0
    %519 = vmatprep.subr.mxu0 0.0
    %520 = vmatpush1.msra.mxu0 0.0
    %521 = vmatprep.subr.mxu0 0.0
    %522 = vmatpush1.msra.mxu0 0.0
    %523 = vmatprep.subr.mxu0 0.0
    %524 = vmatpush1.msra.mxu0 0.0
    %525 = vmatprep.subr.mxu0 0.0
    %526 = vmatpush1.msra.mxu0 0.0
    %527 = vmatprep.subr.mxu0 0.0
    %528 = vmatpush1.msra.mxu0 0.0
    %529 = vmatprep.subr.mxu0 0.0
    %530 = vmatpush1.msra.mxu0 0.0
    %531 = vmatprep.subr.mxu0 0.0
    %532 = vmatpush1.msra.mxu0 0.0
    %533 = vmatprep.subr.mxu0 0.0
    %534 = vmatpush1.msra.mxu0 0.0
    %535 = vmatprep.subr.mxu0 0.0
    %536 = vmatpush1.msra.mxu0 0.0
    %537 = vmatprep.subr.mxu0 0.0
    %538 = vmatpush1.msra.mxu0 0.0
    %539 = vmatprep.subr.mxu0 0.0
    %540 = vmatpush1.msra.mxu0 0.0
    %541 = vmatprep.subr.mxu0 0.0
    %542 = vmatpush1.msra.mxu0 %v328
    %543 = vmatprep.subr.mxu0 0.0
    %544 = vmatpush2.msra.mxu0 0.0
    %545 = vmatprep.subr.mxu0 0.0
    %546 = vmatpush2.msra.mxu0 0.0
    %547 = vmatprep.subr.mxu0 0.0
    %548 = vmatpush2.msra.mxu0 0.0
    %549 = vmatprep.subr.mxu0 0.0
    %550 = vmatpush2.msra.mxu0 0.0
    %551 = vmatprep.subr.mxu0 0.0
    %552 = vmatpush2.msra.mxu0 0.0
    %553 = vmatprep.subr.mxu0 0.0
    %554 = vmatpush2.msra.mxu0 0.0
    %555 = vmatprep.subr.mxu0 0.0
    %556 = vmatpush2.msra.mxu0 0.0
    %557 = vmatprep.subr.mxu0 0.0
    %558 = vmatpush2.msra.mxu0 0.0
    %559 = vmatprep.subr.mxu0 0.0
    %560 = vmatpush2.msra.mxu0 0.0
    %561 = vmatprep.subr.mxu0 0.0
    %562 = vmatpush2.msra.mxu0 0.0
    %563 = vmatprep.subr.mxu0 0.0
    %564 = vmatpush2.msra.mxu0 0.0
    %565 = vmatprep.subr.mxu0 0.0
    %566 = vmatpush2.msra.mxu0 0.0
    %567 = vmatprep.subr.mxu0 0.0
    %568 = vmatpush2.msra.mxu0 0.0
    %569 = vmatprep.subr.mxu0 0.0
    %570 = vmatpush2.msra.mxu0 0.0
    %571 = vmatprep.subr.mxu0 0.0
    %572 = vmatpush2.msra.mxu0 0.0
    %573 = vmatprep.subr.mxu0 0.0
    %574 = vmatpush2.msra.mxu0 0.0
    %575 = vmatprep.mubr.f32.mxu0 0.0
    %576 = vmatmul.mubr.f32.gmra.mxu0 %v509
    %v577 = vpop.f32.mrf.mxu0
    %v578 = vadd.f32 0.0, %v577
    %v579 = vpop.f32.mrf.mxu0
    %580 = vdwg.mxu0
    %v582 = vsel %vm489, %v501, 0
    %584 = vmatprep.subr.mxu0 0.0
    %585 = vmatpush1.msra.mxu0 0.0
    %586 = vmatprep.subr.mxu0 0.0
    %587 = vmatpush1.msra.mxu0 0.0
    %588 = vmatprep.subr.mxu0 0.0
    %589 = vmatpush1.msra.mxu0 0.0
    %590 = vmatprep.subr.mxu0 0.0
    %591 = vmatpush1.msra.mxu0 0.0
    %592 = vmatprep.subr.mxu0 0.0
    %593 = vmatpush1.msra.mxu0 0.0
    %594 = vmatprep.subr.mxu0 0.0
    %595 = vmatpush1.msra.mxu0 0.0
    %596 = vmatprep.subr.mxu0 0.0
    %597 = vmatpush1.msra.mxu0 0.0
    %598 = vmatprep.subr.mxu0 0.0
    %599 = vmatpush1.msra.mxu0 0.0
    %600 = vmatprep.subr.mxu0 0.0
    %601 = vmatpush1.msra.mxu0 0.0
    %602 = vmatprep.subr.mxu0 0.0
    %603 = vmatpush1.msra.mxu0 0.0
    %604 = vmatprep.subr.mxu0 0.0
    %605 = vmatpush1.msra.mxu0 0.0
    %606 = vmatprep.subr.mxu0 0.0
    %607 = vmatpush1.msra.mxu0 0.0
    %608 = vmatprep.subr.mxu0 0.0
    %609 = vmatpush1.msra.mxu0 0.0
    %610 = vmatprep.subr.mxu0 0.0
    %611 = vmatpush1.msra.mxu0 0.0
    %612 = vmatprep.subr.mxu0 0.0
    %613 = vmatpush1.msra.mxu0 0.0
    %614 = vmatprep.subr.mxu0 0.0
    %615 = vmatpush1.msra.mxu0 %v333
    %616 = vmatprep.subr.mxu0 0.0
    %617 = vmatpush2.msra.mxu0 0.0
    %618 = vmatprep.subr.mxu0 0.0
    %619 = vmatpush2.msra.mxu0 0.0
    %620 = vmatprep.subr.mxu0 0.0
    %621 = vmatpush2.msra.mxu0 0.0
    %622 = vmatprep.subr.mxu0 0.0
    %623 = vmatpush2.msra.mxu0 0.0
    %624 = vmatprep.subr.mxu0 0.0
    %625 = vmatpush2.msra.mxu0 0.0
    %626 = vmatprep.subr.mxu0 0.0
    %627 = vmatpush2.msra.mxu0 0.0
    %628 = vmatprep.subr.mxu0 0.0
    %629 = vmatpush2.msra.mxu0 0.0
    %630 = vmatprep.subr.mxu0 0.0
    %631 = vmatpush2.msra.mxu0 0.0
    %632 = vmatprep.subr.mxu0 0.0
    %633 = vmatpush2.msra.mxu0 0.0
    %634 = vmatprep.subr.mxu0 0.0
    %635 = vmatpush2.msra.mxu0 0.0
    %636 = vmatprep.subr.mxu0 0.0
    %637 = vmatpush2.msra.mxu0 0.0
    %638 = vmatprep.subr.mxu0 0.0
    %639 = vmatpush2.msra.mxu0 0.0
    %640 = vmatprep.subr.mxu0 0.0
    %641 = vmatpush2.msra.mxu0 0.0
    %642 = vmatprep.subr.mxu0 0.0
    %643 = vmatpush2.msra.mxu0 0.0
    %644 = vmatprep.subr.mxu0 0.0
    %645 = vmatpush2.msra.mxu0 0.0
    %646 = vmatprep.subr.mxu0 0.0
    %647 = vmatpush2.msra.mxu0 0.0
    %648 = vmatprep.mubr.f32.mxu0 0.0
    %649 = vmatmul.mubr.f32.gmra.mxu0 %v582
    %v650 = vpop.f32.mrf.mxu0
    %v651 = vadd.f32 0.0, %v650
    %v652 = vpop.f32.mrf.mxu0
    %653 = vdwg.mxu0
    %v654 = vrcp.pop %v504
    %v655 = vmul.f32 %v578, %v654
    %v656 = vrcp.pop %v507
    %v657 = vmul.f32 %v651, %v656
    %v658 = vld [vmem:[#allocation7] sm:$0xff]
    %v659 = vld [vmem:[#allocation7 + $0x8] sm:$0xff]
    %v660 = vld [vmem:[#allocation7 + $0x10] sm:$0xff]
    %v661 = vld [vmem:[#allocation7 + $0x18] sm:$0xff]
    %662 = vrot.lane.b32.xlu0 %v251, 96
    %v663 = vpop.permute.xlu0 %662
    %664 = vrot.lane.b32.xlu0 %v253, 96
    %v665 = vpop.permute.xlu0 %664
    %v666 = vsel %vm336, %v663, 0
    %v668 = vsel %vm336, %v665, 0
    %670 = vmatprep.subr.mxu0 0.0
    %671 = vmatpush1.xpose.msra.mxu0 0.0
    %672 = vmatprep.subr.mxu0 0.0
    %673 = vmatpush1.xpose.msra.mxu0 0.0
    %674 = vmatprep.subr.mxu0 0.0
    %675 = vmatpush1.xpose.msra.mxu0 0.0
    %676 = vmatprep.subr.mxu0 0.0
    %677 = vmatpush1.xpose.msra.mxu0 0.0
    %678 = vmatprep.subr.mxu0 0.0
    %679 = vmatpush1.xpose.msra.mxu0 0.0
    %680 = vmatprep.subr.mxu0 0.0
    %681 = vmatpush1.xpose.msra.mxu0 0.0
    %682 = vmatprep.subr.mxu0 0.0
    %683 = vmatpush1.xpose.msra.mxu0 0.0
    %684 = vmatprep.subr.mxu0 0.0
    %685 = vmatpush1.xpose.msra.mxu0 0.0
    %686 = vmatprep.subr.mxu0 0.0
    %687 = vmatpush1.xpose.msra.mxu0 0.0
    %688 = vmatprep.subr.mxu0 0.0
    %689 = vmatpush1.xpose.msra.mxu0 0.0
    %690 = vmatprep.subr.mxu0 0.0
    %691 = vmatpush1.xpose.msra.mxu0 0.0
    %692 = vmatprep.subr.mxu0 0.0
    %693 = vmatpush1.xpose.msra.mxu0 0.0
    %694 = vmatprep.subr.mxu0 0.0
    %695 = vmatpush1.xpose.msra.mxu0 0.0
    %696 = vmatprep.subr.mxu0 0.0
    %697 = vmatpush1.xpose.msra.mxu0 0.0
    %698 = vmatprep.subr.mxu0 0.0
    %699 = vmatpush1.xpose.msra.mxu0 0.0
    %700 = vmatprep.subr.mxu0 0.0
    %701 = vmatpush1.xpose.msra.mxu0 %v668
    %702 = vmatprep.subr.mxu0 0.0
    %703 = vmatpush2.xpose.msra.mxu0 0.0
    %704 = vmatprep.subr.mxu0 0.0
    %705 = vmatpush2.xpose.msra.mxu0 0.0
    %706 = vmatprep.subr.mxu0 0.0
    %707 = vmatpush2.xpose.msra.mxu0 0.0
    %708 = vmatprep.subr.mxu0 0.0
    %709 = vmatpush2.xpose.msra.mxu0 0.0
    %710 = vmatprep.subr.mxu0 0.0
    %711 = vmatpush2.xpose.msra.mxu0 0.0
    %712 = vmatprep.subr.mxu0 0.0
    %713 = vmatpush2.xpose.msra.mxu0 0.0
    %714 = vmatprep.subr.mxu0 0.0
    %715 = vmatpush2.xpose.msra.mxu0 0.0
    %716 = vmatprep.subr.mxu0 0.0
    %717 = vmatpush2.xpose.msra.mxu0 0.0
    %718 = vmatprep.subr.mxu0 0.0
    %719 = vmatpush2.xpose.msra.mxu0 0.0
    %720 = vmatprep.subr.mxu0 0.0
    %721 = vmatpush2.xpose.msra.mxu0 0.0
    %722 = vmatprep.subr.mxu0 0.0
    %723 = vmatpush2.xpose.msra.mxu0 0.0
    %724 = vmatprep.subr.mxu0 0.0
    %725 = vmatpush2.xpose.msra.mxu0 0.0
    %726 = vmatprep.subr.mxu0 0.0
    %727 = vmatpush2.xpose.msra.mxu0 0.0
    %728 = vmatprep.subr.mxu0 0.0
    %729 = vmatpush2.xpose.msra.mxu0 0.0
    %730 = vmatprep.subr.mxu0 0.0
    %731 = vmatpush2.xpose.msra.mxu0 0.0
    %732 = vmatprep.subr.mxu0 0.0
    %733 = vmatpush2.xpose.msra.mxu0 0.0
    %734 = vmatprep.mubr.f32.mxu0 0.0
    %735 = vmatmul.mubr.f32.gmra.mxu0 %v666
    %v736 = vpop.f32.mrf.mxu0
    %v737 = vadd.f32 0.0, %v736
    %v738 = vpop.f32.mrf.mxu0
    %739 = vdwg.mxu0
    %740 = vrot.lane.b32.xlu0 %v257, 96
    %v741 = vpop.permute.xlu0 %740
    %742 = vrot.lane.b32.xlu0 %v259, 96
    %v743 = vpop.permute.xlu0 %742
    %v744 = vsel %vm336, %v741, 0
    %v746 = vsel %vm336, %v743, 0
    %748 = vmatprep.subr.mxu0 0.0
    %749 = vmatpush1.xpose.msra.mxu0 0.0
    %750 = vmatprep.subr.mxu0 0.0
    %751 = vmatpush1.xpose.msra.mxu0 0.0
    %752 = vmatprep.subr.mxu0 0.0
    %753 = vmatpush1.xpose.msra.mxu0 0.0
    %754 = vmatprep.subr.mxu0 0.0
    %755 = vmatpush1.xpose.msra.mxu0 0.0
    %756 = vmatprep.subr.mxu0 0.0
    %757 = vmatpush1.xpose.msra.mxu0 0.0
    %758 = vmatprep.subr.mxu0 0.0
    %759 = vmatpush1.xpose.msra.mxu0 0.0
    %760 = vmatprep.subr.mxu0 0.0
    %761 = vmatpush1.xpose.msra.mxu0 0.0
    %762 = vmatprep.subr.mxu0 0.0
    %763 = vmatpush1.xpose.msra.mxu0 0.0
    %764 = vmatprep.subr.mxu0 0.0
    %765 = vmatpush1.xpose.msra.mxu0 0.0
    %766 = vmatprep.subr.mxu0 0.0
    %767 = vmatpush1.xpose.msra.mxu0 0.0
    %768 = vmatprep.subr.mxu0 0.0
    %769 = vmatpush1.xpose.msra.mxu0 0.0
    %770 = vmatprep.subr.mxu0 0.0
    %771 = vmatpush1.xpose.msra.mxu0 0.0
    %772 = vmatprep.subr.mxu0 0.0
    %773 = vmatpush1.xpose.msra.mxu0 0.0
    %774 = vmatprep.subr.mxu0 0.0
    %775 = vmatpush1.xpose.msra.mxu0 0.0
    %776 = vmatprep.subr.mxu0 0.0
    %777 = vmatpush1.xpose.msra.mxu0 0.0
    %778 = vmatprep.subr.mxu0 0.0
    %779 = vmatpush1.xpose.msra.mxu0 %v746
    %780 = vmatprep.subr.mxu0 0.0
    %781 = vmatpush2.xpose.msra.mxu0 0.0
    %782 = vmatprep.subr.mxu0 0.0
    %783 = vmatpush2.xpose.msra.mxu0 0.0
    %784 = vmatprep.subr.mxu0 0.0
    %785 = vmatpush2.xpose.msra.mxu0 0.0
    %786 = vmatprep.subr.mxu0 0.0
    %787 = vmatpush2.xpose.msra.mxu0 0.0
    %788 = vmatprep.subr.mxu0 0.0
    %789 = vmatpush2.xpose.msra.mxu0 0.0
    %790 = vmatprep.subr.mxu0 0.0
    %791 = vmatpush2.xpose.msra.mxu0 0.0
    %792 = vmatprep.subr.mxu0 0.0
    %793 = vmatpush2.xpose.msra.mxu0 0.0
    %794 = vmatprep.subr.mxu0 0.0
    %795 = vmatpush2.xpose.msra.mxu0 0.0
    %796 = vmatprep.subr.mxu0 0.0
    %797 = vmatpush2.xpose.msra.mxu0 0.0
    %798 = vmatprep.subr.mxu0 0.0
    %799 = vmatpush2.xpose.msra.mxu0 0.0
    %800 = vmatprep.subr.mxu0 0.0
    %801 = vmatpush2.xpose.msra.mxu0 0.0
    %802 = vmatprep.subr.mxu0 0.0
    %803 = vmatpush2.xpose.msra.mxu0 0.0
    %804 = vmatprep.subr.mxu0 0.0
    %805 = vmatpush2.xpose.msra.mxu0 0.0
    %806 = vmatprep.subr.mxu0 0.0
    %807 = vmatpush2.xpose.msra.mxu0 0.0
    %808 = vmatprep.subr.mxu0 0.0
    %809 = vmatpush2.xpose.msra.mxu0 0.0
    %810 = vmatprep.subr.mxu0 0.0
    %811 = vmatpush2.xpose.msra.mxu0 0.0
    %812 = vmatprep.mubr.f32.mxu0 0.0
    %813 = vmatmul.mubr.f32.gmra.mxu0 %v744
    %v814 = vpop.f32.mrf.mxu0
    %v815 = vadd.f32 0.0, %v814
    %v816 = vpop.f32.mrf.mxu0
    %817 = vdwg.mxu0
    %v818 = vsel %vm489, %v737, -inf
    %819 = vmax.xlane.f32.xlu0 %v818
    %v820 = vpop.xlane.xlu0 %819
    %v821 = vsel %vm489, %v815, -inf
    %822 = vmax.xlane.f32.xlu0 %v821
    %v823 = vpop.xlane.xlu0 %822
    %v824 = vsub.f32 %v737, %v820
    %v825 = vsub.f32 %v815, %v823
    %v826 = vmul.f32 %v824, 1.442695
    %v827 = vpow.pop %v826
    %v828 = vmul.f32 %v825, 1.442695
    %v829 = vpow.pop %v828
    %v830 = vsel %vm489, %v827, 0.0
    %831 = vadd.xlane.f32.xlu0 %v830
    %v832 = vpop.xlane.xlu0 %831
    %v833 = vsel %vm489, %v829, 0.0
    %834 = vadd.xlane.f32.xlu0 %v833
    %v835 = vpop.xlane.xlu0 %834
    %837 = vrot.lane.b32.xlu0 %v328, 96
    %v838 = vpop.permute.xlu0 %837
    %v841 = vsel %vm489, %v827, 0
    %843 = vmatprep.subr.mxu0 0.0
    %844 = vmatpush1.msra.mxu0 0.0
    %845 = vmatprep.subr.mxu0 0.0
    %846 = vmatpush1.msra.mxu0 0.0
    %847 = vmatprep.subr.mxu0 0.0
    %848 = vmatpush1.msra.mxu0 0.0
    %849 = vmatprep.subr.mxu0 0.0
    %850 = vmatpush1.msra.mxu0 0.0
    %851 = vmatprep.subr.mxu0 0.0
    %852 = vmatpush1.msra.mxu0 0.0
    %853 = vmatprep.subr.mxu0 0.0
    %854 = vmatpush1.msra.mxu0 0.0
    %855 = vmatprep.subr.mxu0 0.0
    %856 = vmatpush1.msra.mxu0 0.0
    %857 = vmatprep.subr.mxu0 0.0
    %858 = vmatpush1.msra.mxu0 0.0
    %859 = vmatprep.subr.mxu0 0.0
    %860 = vmatpush1.msra.mxu0 0.0
    %861 = vmatprep.subr.mxu0 0.0
    %862 = vmatpush1.msra.mxu0 0.0
    %863 = vmatprep.subr.mxu0 0.0
    %864 = vmatpush1.msra.mxu0 0.0
    %865 = vmatprep.subr.mxu0 0.0
    %866 = vmatpush1.msra.mxu0 0.0
    %867 = vmatprep.subr.mxu0 0.0
    %868 = vmatpush1.msra.mxu0 0.0
    %869 = vmatprep.subr.mxu0 0.0
    %870 = vmatpush1.msra.mxu0 0.0
    %871 = vmatprep.subr.mxu0 0.0
    %872 = vmatpush1.msra.mxu0 0.0
    %873 = vmatprep.subr.mxu0 0.0
    %874 = vmatpush1.msra.mxu0 %v838
    %875 = vmatprep.subr.mxu0 0.0
    %876 = vmatpush2.msra.mxu0 0.0
    %877 = vmatprep.subr.mxu0 0.0
    %878 = vmatpush2.msra.mxu0 0.0
    %879 = vmatprep.subr.mxu0 0.0
    %880 = vmatpush2.msra.mxu0 0.0
    %881 = vmatprep.subr.mxu0 0.0
    %882 = vmatpush2.msra.mxu0 0.0
    %883 = vmatprep.subr.mxu0 0.0
    %884 = vmatpush2.msra.mxu0 0.0
    %885 = vmatprep.subr.mxu0 0.0
    %886 = vmatpush2.msra.mxu0 0.0
    %887 = vmatprep.subr.mxu0 0.0
    %888 = vmatpush2.msra.mxu0 0.0
    %889 = vmatprep.subr.mxu0 0.0
    %890 = vmatpush2.msra.mxu0 0.0
    %891 = vmatprep.subr.mxu0 0.0
    %892 = vmatpush2.msra.mxu0 0.0
    %893 = vmatprep.subr.mxu0 0.0
    %894 = vmatpush2.msra.mxu0 0.0
    %895 = vmatprep.subr.mxu0 0.0
    %896 = vmatpush2.msra.mxu0 0.0
    %897 = vmatprep.subr.mxu0 0.0
    %898 = vmatpush2.msra.mxu0 0.0
    %899 = vmatprep.subr.mxu0 0.0
    %900 = vmatpush2.msra.mxu0 0.0
    %901 = vmatprep.subr.mxu0 0.0
    %902 = vmatpush2.msra.mxu0 0.0
    %903 = vmatprep.subr.mxu0 0.0
    %904 = vmatpush2.msra.mxu0 0.0
    %905 = vmatprep.subr.mxu0 0.0
    %906 = vmatpush2.msra.mxu0 0.0
    %907 = vmatprep.mubr.f32.mxu0 0.0
    %908 = vmatmul.mubr.f32.gmra.mxu0 %v841
    %v909 = vpop.f32.mrf.mxu0
    %v910 = vadd.f32 0.0, %v909
    %v911 = vpop.f32.mrf.mxu0
    %912 = vdwg.mxu0
    %914 = vrot.lane.b32.xlu0 %v333, 96
    %v915 = vpop.permute.xlu0 %914
    %v918 = vsel %vm489, %v829, 0
    %920 = vmatprep.subr.mxu0 0.0
    %921 = vmatpush1.msra.mxu0 0.0
    %922 = vmatprep.subr.mxu0 0.0
    %923 = vmatpush1.msra.mxu0 0.0
    %924 = vmatprep.subr.mxu0 0.0
    %925 = vmatpush1.msra.mxu0 0.0
    %926 = vmatprep.subr.mxu0 0.0
    %927 = vmatpush1.msra.mxu0 0.0
    %928 = vmatprep.subr.mxu0 0.0
    %929 = vmatpush1.msra.mxu0 0.0
    %930 = vmatprep.subr.mxu0 0.0
    %931 = vmatpush1.msra.mxu0 0.0
    %932 = vmatprep.subr.mxu0 0.0
    %933 = vmatpush1.msra.mxu0 0.0
    %934 = vmatprep.subr.mxu0 0.0
    %935 = vmatpush1.msra.mxu0 0.0
    %936 = vmatprep.subr.mxu0 0.0
    %937 = vmatpush1.msra.mxu0 0.0
    %938 = vmatprep.subr.mxu0 0.0
    %939 = vmatpush1.msra.mxu0 0.0
    %940 = vmatprep.subr.mxu0 0.0
    %941 = vmatpush1.msra.mxu0 0.0
    %942 = vmatprep.subr.mxu0 0.0
    %943 = vmatpush1.msra.mxu0 0.0
    %944 = vmatprep.subr.mxu0 0.0
    %945 = vmatpush1.msra.mxu0 0.0
    %946 = vmatprep.subr.mxu0 0.0
    %947 = vmatpush1.msra.mxu0 0.0
    %948 = vmatprep.subr.mxu0 0.0
    %949 = vmatpush1.msra.mxu0 0.0
    %950 = vmatprep.subr.mxu0 0.0
    %951 = vmatpush1.msra.mxu0 %v915
    %952 = vmatprep.subr.mxu0 0.0
    %953 = vmatpush2.msra.mxu0 0.0
    %954 = vmatprep.subr.mxu0 0.0
    %955 = vmatpush2.msra.mxu0 0.0
    %956 = vmatprep.subr.mxu0 0.0
    %957 = vmatpush2.msra.mxu0 0.0
    %958 = vmatprep.subr.mxu0 0.0
    %959 = vmatpush2.msra.mxu0 0.0
    %960 = vmatprep.subr.mxu0 0.0
    %961 = vmatpush2.msra.mxu0 0.0
    %962 = vmatprep.subr.mxu0 0.0
    %963 = vmatpush2.msra.mxu0 0.0
    %964 = vmatprep.subr.mxu0 0.0
    %965 = vmatpush2.msra.mxu0 0.0
    %966 = vmatprep.subr.mxu0 0.0
    %967 = vmatpush2.msra.mxu0 0.0
    %968 = vmatprep.subr.mxu0 0.0
    %969 = vmatpush2.msra.mxu0 0.0
    %970 = vmatprep.subr.mxu0 0.0
    %971 = vmatpush2.msra.mxu0 0.0
    %972 = vmatprep.subr.mxu0 0.0
    %973 = vmatpush2.msra.mxu0 0.0
    %974 = vmatprep.subr.mxu0 0.0
    %975 = vmatpush2.msra.mxu0 0.0
    %976 = vmatprep.subr.mxu0 0.0
    %977 = vmatpush2.msra.mxu0 0.0
    %978 = vmatprep.subr.mxu0 0.0
    %979 = vmatpush2.msra.mxu0 0.0
    %980 = vmatprep.subr.mxu0 0.0
    %981 = vmatpush2.msra.mxu0 0.0
    %982 = vmatprep.subr.mxu0 0.0
    %983 = vmatpush2.msra.mxu0 0.0
    %984 = vmatprep.mubr.f32.mxu0 0.0
    %985 = vmatmul.mubr.f32.gmra.mxu0 %v918
    %v986 = vpop.f32.mrf.mxu0
    %v987 = vadd.f32 0.0, %v986
    %v988 = vpop.f32.mrf.mxu0
    %989 = vdwg.mxu0
    %v990 = vrcp.pop %v832
    %v991 = vmul.f32 %v910, %v990
    %v992 = vrcp.pop %v835
    %v993 = vmul.f32 %v987, %v992
    %v994 = vld [vmem:[#allocation7 + $0x20] sm:$0xff]
    %v995 = vld [vmem:[#allocation7 + $0x28] sm:$0xff]
    %v996 = vld [vmem:[#allocation7 + $0x30] sm:$0xff]
    %v997 = vld [vmem:[#allocation7 + $0x38] sm:$0xff]
    %v999 = vsel %vm336, %v991, 0
    %v1002 = vsel %vm336, %v993, 0
    %1004 = vmatprep.subr.mxu0 0.0
    %1005 = vmatpush1.msra.mxu0 0.0
    %1006 = vmatprep.subr.mxu0 0.0
    %1007 = vmatpush1.msra.mxu0 0.0
    %1008 = vmatprep.subr.mxu0 0.0
    %1009 = vmatpush1.msra.mxu0 0.0
    %1010 = vmatprep.subr.mxu0 0.0
    %1011 = vmatpush1.msra.mxu0 0.0
    %1012 = vmatprep.subr.mxu0 0.0
    %1013 = vmatpush1.msra.mxu0 0.0
    %1014 = vmatprep.subr.mxu0 0.0
    %1015 = vmatpush1.msra.mxu0 0.0
    %1016 = vmatprep.subr.mxu0 0.0
    %1017 = vmatpush1.msra.mxu0 0.0
    %1018 = vmatprep.subr.mxu0 0.0
    %1019 = vmatpush1.msra.mxu0 0.0
    %1020 = vmatprep.subr.mxu0 0.0
    %1021 = vmatpush1.msra.mxu0 0.0
    %1022 = vmatprep.subr.mxu0 0.0
    %1023 = vmatpush1.msra.mxu0 0.0
    %1024 = vmatprep.subr.mxu0 0.0
    %1025 = vmatpush1.msra.mxu0 0.0
    %1026 = vmatprep.subr.mxu0 0.0
    %1027 = vmatpush1.msra.mxu0 0.0
    %1028 = vmatprep.subr.mxu0 0.0
    %1029 = vmatpush1.msra.mxu0 %v997
    %1030 = vmatprep.subr.mxu0 0.0
    %1031 = vmatpush1.msra.mxu0 %v996
    %1032 = vmatprep.subr.mxu0 0.0
    %1033 = vmatpush1.msra.mxu0 %v995
    %1034 = vmatprep.subr.mxu0 0.0
    %1035 = vmatpush1.msra.mxu0 %v994
    %1036 = vmatprep.subr.mxu0 0.0
    %1037 = vmatpush2.msra.mxu0 0.0
    %1038 = vmatprep.subr.mxu0 0.0
    %1039 = vmatpush2.msra.mxu0 0.0
    %1040 = vmatprep.subr.mxu0 0.0
    %1041 = vmatpush2.msra.mxu0 0.0
    %1042 = vmatprep.subr.mxu0 0.0
    %1043 = vmatpush2.msra.mxu0 0.0
    %1044 = vmatprep.subr.mxu0 0.0
    %1045 = vmatpush2.msra.mxu0 0.0
    %1046 = vmatprep.subr.mxu0 0.0
    %1047 = vmatpush2.msra.mxu0 0.0
    %1048 = vmatprep.subr.mxu0 0.0
    %1049 = vmatpush2.msra.mxu0 0.0
    %1050 = vmatprep.subr.mxu0 0.0
    %1051 = vmatpush2.msra.mxu0 0.0
    %1052 = vmatprep.subr.mxu0 0.0
    %1053 = vmatpush2.msra.mxu0 0.0
    %1054 = vmatprep.subr.mxu0 0.0
    %1055 = vmatpush2.msra.mxu0 0.0
    %1056 = vmatprep.subr.mxu0 0.0
    %1057 = vmatpush2.msra.mxu0 0.0
    %1058 = vmatprep.subr.mxu0 0.0
    %1059 = vmatpush2.msra.mxu0 0.0
    %1060 = vmatprep.subr.mxu0 0.0
    %1061 = vmatpush2.msra.mxu0 0.0
    %1062 = vmatprep.subr.mxu0 0.0
    %1063 = vmatpush2.msra.mxu0 0.0
    %1064 = vmatprep.subr.mxu0 0.0
    %1065 = vmatpush2.msra.mxu0 0.0
    %1066 = vmatprep.subr.mxu0 0.0
    %1067 = vmatpush2.msra.mxu0 0.0
    %1068 = vmatprep.mubr.f32.mxu0 0.0
    %1069 = vmatmul.mubr.f32.gmra.mxu0 %v999
    %v1070 = vpop.f32.mrf.mxu0
    %v1071 = vadd.f32 0.0, %v1070
    %v1072 = vpop.f32.mrf.mxu0
    %1073 = vmatprep.mubr.f32.mxu0 0.0
    %1074 = vmatmul.mubr.f32.gmra.mxu0 %v1002
    %v1075 = vpop.f32.mrf.mxu0
    %v1076 = vadd.f32 0.0, %v1075
    %v1077 = vpop.f32.mrf.mxu0
    %1078 = vdwg.mxu0
    %v1080 = vsel %vm336, %v655, 0
    %v1083 = vsel %vm336, %v657, 0
    %1085 = vmatprep.subr.mxu0 0.0
    %1086 = vmatpush1.msra.mxu0 0.0
    %1087 = vmatprep.subr.mxu0 0.0
    %1088 = vmatpush1.msra.mxu0 0.0
    %1089 = vmatprep.subr.mxu0 0.0
    %1090 = vmatpush1.msra.mxu0 0.0
    %1091 = vmatprep.subr.mxu0 0.0
    %1092 = vmatpush1.msra.mxu0 0.0
    %1093 = vmatprep.subr.mxu0 0.0
    %1094 = vmatpush1.msra.mxu0 0.0
    %1095 = vmatprep.subr.mxu0 0.0
    %1096 = vmatpush1.msra.mxu0 0.0
    %1097 = vmatprep.subr.mxu0 0.0
    %1098 = vmatpush1.msra.mxu0 0.0
    %1099 = vmatprep.subr.mxu0 0.0
    %1100 = vmatpush1.msra.mxu0 0.0
    %1101 = vmatprep.subr.mxu0 0.0
    %1102 = vmatpush1.msra.mxu0 0.0
    %1103 = vmatprep.subr.mxu0 0.0
    %1104 = vmatpush1.msra.mxu0 0.0
    %1105 = vmatprep.subr.mxu0 0.0
    %1106 = vmatpush1.msra.mxu0 0.0
    %1107 = vmatprep.subr.mxu0 0.0
    %1108 = vmatpush1.msra.mxu0 0.0
    %1109 = vmatprep.subr.mxu0 0.0
    %1110 = vmatpush1.msra.mxu0 %v661
    %1111 = vmatprep.subr.mxu0 0.0
    %1112 = vmatpush1.msra.mxu0 %v660
    %1113 = vmatprep.subr.mxu0 0.0
    %1114 = vmatpush1.msra.mxu0 %v659
    %1115 = vmatprep.subr.mxu0 0.0
    %1116 = vmatpush1.msra.mxu0 %v658
    %1117 = vmatprep.subr.mxu0 0.0
    %1118 = vmatpush2.msra.mxu0 0.0
    %1119 = vmatprep.subr.mxu0 0.0
    %1120 = vmatpush2.msra.mxu0 0.0
    %1121 = vmatprep.subr.mxu0 0.0
    %1122 = vmatpush2.msra.mxu0 0.0
    %1123 = vmatprep.subr.mxu0 0.0
    %1124 = vmatpush2.msra.mxu0 0.0
    %1125 = vmatprep.subr.mxu0 0.0
    %1126 = vmatpush2.msra.mxu0 0.0
    %1127 = vmatprep.subr.mxu0 0.0
    %1128 = vmatpush2.msra.mxu0 0.0
    %1129 = vmatprep.subr.mxu0 0.0
    %1130 = vmatpush2.msra.mxu0 0.0
    %1131 = vmatprep.subr.mxu0 0.0
    %1132 = vmatpush2.msra.mxu0 0.0
    %1133 = vmatprep.subr.mxu0 0.0
    %1134 = vmatpush2.msra.mxu0 0.0
    %1135 = vmatprep.subr.mxu0 0.0
    %1136 = vmatpush2.msra.mxu0 0.0
    %1137 = vmatprep.subr.mxu0 0.0
    %1138 = vmatpush2.msra.mxu0 0.0
    %1139 = vmatprep.subr.mxu0 0.0
    %1140 = vmatpush2.msra.mxu0 0.0
    %1141 = vmatprep.subr.mxu0 0.0
    %1142 = vmatpush2.msra.mxu0 0.0
    %1143 = vmatprep.subr.mxu0 0.0
    %1144 = vmatpush2.msra.mxu0 0.0
    %1145 = vmatprep.subr.mxu0 0.0
    %1146 = vmatpush2.msra.mxu0 0.0
    %1147 = vmatprep.subr.mxu0 0.0
    %1148 = vmatpush2.msra.mxu0 0.0
    %1149 = vmatprep.mubr.f32.mxu0 0.0
    %1150 = vmatmul.mubr.f32.gmra.mxu0 %v1080
    %v1151 = vpop.f32.mrf.mxu0
    %v1152 = vadd.f32 %v1071, %v1151
    %v1153 = vpop.f32.mrf.mxu0
    %1154 = vmatprep.mubr.f32.mxu0 0.0
    %1155 = vmatmul.mubr.f32.gmra.mxu0 %v1083
    %v1156 = vpop.f32.mrf.mxu0
    %v1157 = vadd.f32 %v1076, %v1156
    %v1158 = vpop.f32.mrf.mxu0
    %1159 = vdwg.mxu0
    %1160 = vrot.lane.b32.xlu0 %v251, 64
    %v1161 = vpop.permute.xlu0 %1160
    %1162 = vrot.lane.b32.xlu0 %v253, 64
    %v1163 = vpop.permute.xlu0 %1162
    %v1164 = vsel %vm336, %v1161, 0
    %v1166 = vsel %vm336, %v1163, 0
    %1168 = vmatprep.subr.mxu0 0.0
    %1169 = vmatpush1.xpose.msra.mxu0 0.0
    %1170 = vmatprep.subr.mxu0 0.0
    %1171 = vmatpush1.xpose.msra.mxu0 0.0
    %1172 = vmatprep.subr.mxu0 0.0
    %1173 = vmatpush1.xpose.msra.mxu0 0.0
    %1174 = vmatprep.subr.mxu0 0.0
    %1175 = vmatpush1.xpose.msra.mxu0 0.0
    %1176 = vmatprep.subr.mxu0 0.0
    %1177 = vmatpush1.xpose.msra.mxu0 0.0
    %1178 = vmatprep.subr.mxu0 0.0
    %1179 = vmatpush1.xpose.msra.mxu0 0.0
    %1180 = vmatprep.subr.mxu0 0.0
    %1181 = vmatpush1.xpose.msra.mxu0 0.0
    %1182 = vmatprep.subr.mxu0 0.0
    %1183 = vmatpush1.xpose.msra.mxu0 0.0
    %1184 = vmatprep.subr.mxu0 0.0
    %1185 = vmatpush1.xpose.msra.mxu0 0.0
    %1186 = vmatprep.subr.mxu0 0.0
    %1187 = vmatpush1.xpose.msra.mxu0 0.0
    %1188 = vmatprep.subr.mxu0 0.0
    %1189 = vmatpush1.xpose.msra.mxu0 0.0
    %1190 = vmatprep.subr.mxu0 0.0
    %1191 = vmatpush1.xpose.msra.mxu0 0.0
    %1192 = vmatprep.subr.mxu0 0.0
    %1193 = vmatpush1.xpose.msra.mxu0 0.0
    %1194 = vmatprep.subr.mxu0 0.0
    %1195 = vmatpush1.xpose.msra.mxu0 0.0
    %1196 = vmatprep.subr.mxu0 0.0
    %1197 = vmatpush1.xpose.msra.mxu0 0.0
    %1198 = vmatprep.subr.mxu0 0.0
    %1199 = vmatpush1.xpose.msra.mxu0 %v1166
    %1200 = vmatprep.subr.mxu0 0.0
    %1201 = vmatpush2.xpose.msra.mxu0 0.0
    %1202 = vmatprep.subr.mxu0 0.0
    %1203 = vmatpush2.xpose.msra.mxu0 0.0
    %1204 = vmatprep.subr.mxu0 0.0
    %1205 = vmatpush2.xpose.msra.mxu0 0.0
    %1206 = vmatprep.subr.mxu0 0.0
    %1207 = vmatpush2.xpose.msra.mxu0 0.0
    %1208 = vmatprep.subr.mxu0 0.0
    %1209 = vmatpush2.xpose.msra.mxu0 0.0
    %1210 = vmatprep.subr.mxu0 0.0
    %1211 = vmatpush2.xpose.msra.mxu0 0.0
    %1212 = vmatprep.subr.mxu0 0.0
    %1213 = vmatpush2.xpose.msra.mxu0 0.0
    %1214 = vmatprep.subr.mxu0 0.0
    %1215 = vmatpush2.xpose.msra.mxu0 0.0
    %1216 = vmatprep.subr.mxu0 0.0
    %1217 = vmatpush2.xpose.msra.mxu0 0.0
    %1218 = vmatprep.subr.mxu0 0.0
    %1219 = vmatpush2.xpose.msra.mxu0 0.0
    %1220 = vmatprep.subr.mxu0 0.0
    %1221 = vmatpush2.xpose.msra.mxu0 0.0
    %1222 = vmatprep.subr.mxu0 0.0
    %1223 = vmatpush2.xpose.msra.mxu0 0.0
    %1224 = vmatprep.subr.mxu0 0.0
    %1225 = vmatpush2.xpose.msra.mxu0 0.0
    %1226 = vmatprep.subr.mxu0 0.0
    %1227 = vmatpush2.xpose.msra.mxu0 0.0
    %1228 = vmatprep.subr.mxu0 0.0
    %1229 = vmatpush2.xpose.msra.mxu0 0.0
    %1230 = vmatprep.subr.mxu0 0.0
    %1231 = vmatpush2.xpose.msra.mxu0 0.0
    %1232 = vmatprep.mubr.f32.mxu0 0.0
    %1233 = vmatmul.mubr.f32.gmra.mxu0 %v1164
    %v1234 = vpop.f32.mrf.mxu0
    %v1235 = vadd.f32 0.0, %v1234
    %v1236 = vpop.f32.mrf.mxu0
    %1237 = vdwg.mxu0
    %1238 = vrot.lane.b32.xlu0 %v257, 64
    %v1239 = vpop.permute.xlu0 %1238
    %1240 = vrot.lane.b32.xlu0 %v259, 64
    %v1241 = vpop.permute.xlu0 %1240
    %v1242 = vsel %vm336, %v1239, 0
    %v1244 = vsel %vm336, %v1241, 0
    %1246 = vmatprep.subr.mxu0 0.0
    %1247 = vmatpush1.xpose.msra.mxu0 0.0
    %1248 = vmatprep.subr.mxu0 0.0
    %1249 = vmatpush1.xpose.msra.mxu0 0.0
    %1250 = vmatprep.subr.mxu0 0.0
    %1251 = vmatpush1.xpose.msra.mxu0 0.0
    %1252 = vmatprep.subr.mxu0 0.0
    %1253 = vmatpush1.xpose.msra.mxu0 0.0
    %1254 = vmatprep.subr.mxu0 0.0
    %1255 = vmatpush1.xpose.msra.mxu0 0.0
    %1256 = vmatprep.subr.mxu0 0.0
    %1257 = vmatpush1.xpose.msra.mxu0 0.0
    %1258 = vmatprep.subr.mxu0 0.0
    %1259 = vmatpush1.xpose.msra.mxu0 0.0
    %1260 = vmatprep.subr.mxu0 0.0
    %1261 = vmatpush1.xpose.msra.mxu0 0.0
    %1262 = vmatprep.subr.mxu0 0.0
    %1263 = vmatpush1.xpose.msra.mxu0 0.0
    %1264 = vmatprep.subr.mxu0 0.0
    %1265 = vmatpush1.xpose.msra.mxu0 0.0
    %1266 = vmatprep.subr.mxu0 0.0
    %1267 = vmatpush1.xpose.msra.mxu0 0.0
    %1268 = vmatprep.subr.mxu0 0.0
    %1269 = vmatpush1.xpose.msra.mxu0 0.0
    %1270 = vmatprep.subr.mxu0 0.0
    %1271 = vmatpush1.xpose.msra.mxu0 0.0
    %1272 = vmatprep.subr.mxu0 0.0
    %1273 = vmatpush1.xpose.msra.mxu0 0.0
    %1274 = vmatprep.subr.mxu0 0.0
    %1275 = vmatpush1.xpose.msra.mxu0 0.0
    %1276 = vmatprep.subr.mxu0 0.0
    %1277 = vmatpush1.xpose.msra.mxu0 %v1244
    %1278 = vmatprep.subr.mxu0 0.0
    %1279 = vmatpush2.xpose.msra.mxu0 0.0
    %1280 = vmatprep.subr.mxu0 0.0
    %1281 = vmatpush2.xpose.msra.mxu0 0.0
    %1282 = vmatprep.subr.mxu0 0.0
    %1283 = vmatpush2.xpose.msra.mxu0 0.0
    %1284 = vmatprep.subr.mxu0 0.0
    %1285 = vmatpush2.xpose.msra.mxu0 0.0
    %1286 = vmatprep.subr.mxu0 0.0
    %1287 = vmatpush2.xpose.msra.mxu0 0.0
    %1288 = vmatprep.subr.mxu0 0.0
    %1289 = vmatpush2.xpose.msra.mxu0 0.0
    %1290 = vmatprep.subr.mxu0 0.0
    %1291 = vmatpush2.xpose.msra.mxu0 0.0
    %1292 = vmatprep.subr.mxu0 0.0
    %1293 = vmatpush2.xpose.msra.mxu0 0.0
    %1294 = vmatprep.subr.mxu0 0.0
    %1295 = vmatpush2.xpose.msra.mxu0 0.0
    %1296 = vmatprep.subr.mxu0 0.0
    %1297 = vmatpush2.xpose.msra.mxu0 0.0
    %1298 = vmatprep.subr.mxu0 0.0
    %1299 = vmatpush2.xpose.msra.mxu0 0.0
    %1300 = vmatprep.subr.mxu0 0.0
    %1301 = vmatpush2.xpose.msra.mxu0 0.0
    %1302 = vmatprep.subr.mxu0 0.0
    %1303 = vmatpush2.xpose.msra.mxu0 0.0
    %1304 = vmatprep.subr.mxu0 0.0
    %1305 = vmatpush2.xpose.msra.mxu0 0.0
    %1306 = vmatprep.subr.mxu0 0.0
    %1307 = vmatpush2.xpose.msra.mxu0 0.0
    %1308 = vmatprep.subr.mxu0 0.0
    %1309 = vmatpush2.xpose.msra.mxu0 0.0
    %1310 = vmatprep.mubr.f32.mxu0 0.0
    %1311 = vmatmul.mubr.f32.gmra.mxu0 %v1242
    %v1312 = vpop.f32.mrf.mxu0
    %v1313 = vadd.f32 0.0, %v1312
    %v1314 = vpop.f32.mrf.mxu0
    %1315 = vdwg.mxu0
    %v1316 = vsel %vm489, %v1235, -inf
    %1317 = vmax.xlane.f32.xlu0 %v1316
    %v1318 = vpop.xlane.xlu0 %1317
    %v1319 = vsel %vm489, %v1313, -inf
    %1320 = vmax.xlane.f32.xlu0 %v1319
    %v1321 = vpop.xlane.xlu0 %1320
    %v1322 = vsub.f32 %v1235, %v1318
    %v1323 = vsub.f32 %v1313, %v1321
    %v1324 = vmul.f32 %v1322, 1.442695
    %v1325 = vpow.pop %v1324
    %v1326 = vmul.f32 %v1323, 1.442695
    %v1327 = vpow.pop %v1326
    %v1328 = vsel %vm489, %v1325, 0.0
    %1329 = vadd.xlane.f32.xlu0 %v1328
    %v1330 = vpop.xlane.xlu0 %1329
    %v1331 = vsel %vm489, %v1327, 0.0
    %1332 = vadd.xlane.f32.xlu0 %v1331
    %v1333 = vpop.xlane.xlu0 %1332
    %1334 = vrot.lane.b32.xlu0 %v328, 64
    %v1335 = vpop.permute.xlu0 %1334
    %v1338 = vsel %vm489, %v1325, 0
    %1340 = vmatprep.subr.mxu0 0.0
    %1341 = vmatpush1.msra.mxu0 0.0
    %1342 = vmatprep.subr.mxu0 0.0
    %1343 = vmatpush1.msra.mxu0 0.0
    %1344 = vmatprep.subr.mxu0 0.0
    %1345 = vmatpush1.msra.mxu0 0.0
    %1346 = vmatprep.subr.mxu0 0.0
    %1347 = vmatpush1.msra.mxu0 0.0
    %1348 = vmatprep.subr.mxu0 0.0
    %1349 = vmatpush1.msra.mxu0 0.0
    %1350 = vmatprep.subr.mxu0 0.0
    %1351 = vmatpush1.msra.mxu0 0.0
    %1352 = vmatprep.subr.mxu0 0.0
    %1353 = vmatpush1.msra.mxu0 0.0
    %1354 = vmatprep.subr.mxu0 0.0
    %1355 = vmatpush1.msra.mxu0 0.0
    %1356 = vmatprep.subr.mxu0 0.0
    %1357 = vmatpush1.msra.mxu0 0.0
    %1358 = vmatprep.subr.mxu0 0.0
    %1359 = vmatpush1.msra.mxu0 0.0
    %1360 = vmatprep.subr.mxu0 0.0
    %1361 = vmatpush1.msra.mxu0 0.0
    %1362 = vmatprep.subr.mxu0 0.0
    %1363 = vmatpush1.msra.mxu0 0.0
    %1364 = vmatprep.subr.mxu0 0.0
    %1365 = vmatpush1.msra.mxu0 0.0
    %1366 = vmatprep.subr.mxu0 0.0
    %1367 = vmatpush1.msra.mxu0 0.0
    %1368 = vmatprep.subr.mxu0 0.0
    %1369 = vmatpush1.msra.mxu0 0.0
    %1370 = vmatprep.subr.mxu0 0.0
    %1371 = vmatpush1.msra.mxu0 %v1335
    %1372 = vmatprep.subr.mxu0 0.0
    %1373 = vmatpush2.msra.mxu0 0.0
    %1374 = vmatprep.subr.mxu0 0.0
    %1375 = vmatpush2.msra.mxu0 0.0
    %1376 = vmatprep.subr.mxu0 0.0
    %1377 = vmatpush2.msra.mxu0 0.0
    %1378 = vmatprep.subr.mxu0 0.0
    %1379 = vmatpush2.msra.mxu0 0.0
    %1380 = vmatprep.subr.mxu0 0.0
    %1381 = vmatpush2.msra.mxu0 0.0
    %1382 = vmatprep.subr.mxu0 0.0
    %1383 = vmatpush2.msra.mxu0 0.0
    %1384 = vmatprep.subr.mxu0 0.0
    %1385 = vmatpush2.msra.mxu0 0.0
    %1386 = vmatprep.subr.mxu0 0.0
    %1387 = vmatpush2.msra.mxu0 0.0
    %1388 = vmatprep.subr.mxu0 0.0
    %1389 = vmatpush2.msra.mxu0 0.0
    %1390 = vmatprep.subr.mxu0 0.0
    %1391 = vmatpush2.msra.mxu0 0.0
    %1392 = vmatprep.subr.mxu0 0.0
    %1393 = vmatpush2.msra.mxu0 0.0
    %1394 = vmatprep.subr.mxu0 0.0
    %1395 = vmatpush2.msra.mxu0 0.0
    %1396 = vmatprep.subr.mxu0 0.0
    %1397 = vmatpush2.msra.mxu0 0.0
    %1398 = vmatprep.subr.mxu0 0.0
    %1399 = vmatpush2.msra.mxu0 0.0
    %1400 = vmatprep.subr.mxu0 0.0
    %1401 = vmatpush2.msra.mxu0 0.0
    %1402 = vmatprep.subr.mxu0 0.0
    %1403 = vmatpush2.msra.mxu0 0.0
    %1404 = vmatprep.mubr.f32.mxu0 0.0
    %1405 = vmatmul.mubr.f32.gmra.mxu0 %v1338
    %v1406 = vpop.f32.mrf.mxu0
    %v1407 = vadd.f32 0.0, %v1406
    %v1408 = vpop.f32.mrf.mxu0
    %1409 = vdwg.mxu0
    %1410 = vrot.lane.b32.xlu0 %v333, 64
    %v1411 = vpop.permute.xlu0 %1410
    %v1414 = vsel %vm489, %v1327, 0
    %1416 = vmatprep.subr.mxu0 0.0
    %1417 = vmatpush1.msra.mxu0 0.0
    %1418 = vmatprep.subr.mxu0 0.0
    %1419 = vmatpush1.msra.mxu0 0.0
    %1420 = vmatprep.subr.mxu0 0.0
    %1421 = vmatpush1.msra.mxu0 0.0
    %1422 = vmatprep.subr.mxu0 0.0
    %1423 = vmatpush1.msra.mxu0 0.0
    %1424 = vmatprep.subr.mxu0 0.0
    %1425 = vmatpush1.msra.mxu0 0.0
    %1426 = vmatprep.subr.mxu0 0.0
    %1427 = vmatpush1.msra.mxu0 0.0
    %1428 = vmatprep.subr.mxu0 0.0
    %1429 = vmatpush1.msra.mxu0 0.0
    %1430 = vmatprep.subr.mxu0 0.0
    %1431 = vmatpush1.msra.mxu0 0.0
    %1432 = vmatprep.subr.mxu0 0.0
    %1433 = vmatpush1.msra.mxu0 0.0
    %1434 = vmatprep.subr.mxu0 0.0
    %1435 = vmatpush1.msra.mxu0 0.0
    %1436 = vmatprep.subr.mxu0 0.0
    %1437 = vmatpush1.msra.mxu0 0.0
    %1438 = vmatprep.subr.mxu0 0.0
    %1439 = vmatpush1.msra.mxu0 0.0
    %1440 = vmatprep.subr.mxu0 0.0
    %1441 = vmatpush1.msra.mxu0 0.0
    %1442 = vmatprep.subr.mxu0 0.0
    %1443 = vmatpush1.msra.mxu0 0.0
    %1444 = vmatprep.subr.mxu0 0.0
    %1445 = vmatpush1.msra.mxu0 0.0
    %1446 = vmatprep.subr.mxu0 0.0
    %1447 = vmatpush1.msra.mxu0 %v1411
    %1448 = vmatprep.subr.mxu0 0.0
    %1449 = vmatpush2.msra.mxu0 0.0
    %1450 = vmatprep.subr.mxu0 0.0
    %1451 = vmatpush2.msra.mxu0 0.0
    %1452 = vmatprep.subr.mxu0 0.0
    %1453 = vmatpush2.msra.mxu0 0.0
    %1454 = vmatprep.subr.mxu0 0.0
    %1455 = vmatpush2.msra.mxu0 0.0
    %1456 = vmatprep.subr.mxu0 0.0
    %1457 = vmatpush2.msra.mxu0 0.0
    %1458 = vmatprep.subr.mxu0 0.0
    %1459 = vmatpush2.msra.mxu0 0.0
    %1460 = vmatprep.subr.mxu0 0.0
    %1461 = vmatpush2.msra.mxu0 0.0
    %1462 = vmatprep.subr.mxu0 0.0
    %1463 = vmatpush2.msra.mxu0 0.0
    %1464 = vmatprep.subr.mxu0 0.0
    %1465 = vmatpush2.msra.mxu0 0.0
    %1466 = vmatprep.subr.mxu0 0.0
    %1467 = vmatpush2.msra.mxu0 0.0
    %1468 = vmatprep.subr.mxu0 0.0
    %1469 = vmatpush2.msra.mxu0 0.0
    %1470 = vmatprep.subr.mxu0 0.0
    %1471 = vmatpush2.msra.mxu0 0.0
    %1472 = vmatprep.subr.mxu0 0.0
    %1473 = vmatpush2.msra.mxu0 0.0
    %1474 = vmatprep.subr.mxu0 0.0
    %1475 = vmatpush2.msra.mxu0 0.0
    %1476 = vmatprep.subr.mxu0 0.0
    %1477 = vmatpush2.msra.mxu0 0.0
    %1478 = vmatprep.subr.mxu0 0.0
    %1479 = vmatpush2.msra.mxu0 0.0
    %1480 = vmatprep.mubr.f32.mxu0 0.0
    %1481 = vmatmul.mubr.f32.gmra.mxu0 %v1414
    %v1482 = vpop.f32.mrf.mxu0
    %v1483 = vadd.f32 0.0, %v1482
    %v1484 = vpop.f32.mrf.mxu0
    %1485 = vdwg.mxu0
    %v1486 = vrcp.pop %v1330
    %v1487 = vmul.f32 %v1407, %v1486
    %v1488 = vrcp.pop %v1333
    %v1489 = vmul.f32 %v1483, %v1488
    %v1490 = vld [vmem:[#allocation7 + $0x40] sm:$0xff]
    %v1491 = vld [vmem:[#allocation7 + $0x48] sm:$0xff]
    %v1492 = vld [vmem:[#allocation7 + $0x50] sm:$0xff]
    %v1493 = vld [vmem:[#allocation7 + $0x58] sm:$0xff]
    %v1495 = vsel %vm336, %v1487, 0
    %v1498 = vsel %vm336, %v1489, 0
    %1500 = vmatprep.subr.mxu0 0.0
    %1501 = vmatpush1.msra.mxu0 0.0
    %1502 = vmatprep.subr.mxu0 0.0
    %1503 = vmatpush1.msra.mxu0 0.0
    %1504 = vmatprep.subr.mxu0 0.0
    %1505 = vmatpush1.msra.mxu0 0.0
    %1506 = vmatprep.subr.mxu0 0.0
    %1507 = vmatpush1.msra.mxu0 0.0
    %1508 = vmatprep.subr.mxu0 0.0
    %1509 = vmatpush1.msra.mxu0 0.0
    %1510 = vmatprep.subr.mxu0 0.0
    %1511 = vmatpush1.msra.mxu0 0.0
    %1512 = vmatprep.subr.mxu0 0.0
    %1513 = vmatpush1.msra.mxu0 0.0
    %1514 = vmatprep.subr.mxu0 0.0
    %1515 = vmatpush1.msra.mxu0 0.0
    %1516 = vmatprep.subr.mxu0 0.0
    %1517 = vmatpush1.msra.mxu0 0.0
    %1518 = vmatprep.subr.mxu0 0.0
    %1519 = vmatpush1.msra.mxu0 0.0
    %1520 = vmatprep.subr.mxu0 0.0
    %1521 = vmatpush1.msra.mxu0 0.0
    %1522 = vmatprep.subr.mxu0 0.0
    %1523 = vmatpush1.msra.mxu0 0.0
    %1524 = vmatprep.subr.mxu0 0.0
    %1525 = vmatpush1.msra.mxu0 %v1493
    %1526 = vmatprep.subr.mxu0 0.0
    %1527 = vmatpush1.msra.mxu0 %v1492
    %1528 = vmatprep.subr.mxu0 0.0
    %1529 = vmatpush1.msra.mxu0 %v1491
    %1530 = vmatprep.subr.mxu0 0.0
    %1531 = vmatpush1.msra.mxu0 %v1490
    %1532 = vmatprep.subr.mxu0 0.0
    %1533 = vmatpush2.msra.mxu0 0.0
    %1534 = vmatprep.subr.mxu0 0.0
    %1535 = vmatpush2.msra.mxu0 0.0
    %1536 = vmatprep.subr.mxu0 0.0
    %1537 = vmatpush2.msra.mxu0 0.0
    %1538 = vmatprep.subr.mxu0 0.0
    %1539 = vmatpush2.msra.mxu0 0.0
    %1540 = vmatprep.subr.mxu0 0.0
    %1541 = vmatpush2.msra.mxu0 0.0
    %1542 = vmatprep.subr.mxu0 0.0
    %1543 = vmatpush2.msra.mxu0 0.0
    %1544 = vmatprep.subr.mxu0 0.0
    %1545 = vmatpush2.msra.mxu0 0.0
    %1546 = vmatprep.subr.mxu0 0.0
    %1547 = vmatpush2.msra.mxu0 0.0
    %1548 = vmatprep.subr.mxu0 0.0
    %1549 = vmatpush2.msra.mxu0 0.0
    %1550 = vmatprep.subr.mxu0 0.0
    %1551 = vmatpush2.msra.mxu0 0.0
    %1552 = vmatprep.subr.mxu0 0.0
    %1553 = vmatpush2.msra.mxu0 0.0
    %1554 = vmatprep.subr.mxu0 0.0
    %1555 = vmatpush2.msra.mxu0 0.0
    %1556 = vmatprep.subr.mxu0 0.0
    %1557 = vmatpush2.msra.mxu0 0.0
    %1558 = vmatprep.subr.mxu0 0.0
    %1559 = vmatpush2.msra.mxu0 0.0
    %1560 = vmatprep.subr.mxu0 0.0
    %1561 = vmatpush2.msra.mxu0 0.0
    %1562 = vmatprep.subr.mxu0 0.0
    %1563 = vmatpush2.msra.mxu0 0.0
    %1564 = vmatprep.mubr.f32.mxu0 0.0
    %1565 = vmatmul.mubr.f32.gmra.mxu0 %v1495
    %v1566 = vpop.f32.mrf.mxu0
    %v1567 = vadd.f32 0.0, %v1566
    %v1568 = vpop.f32.mrf.mxu0
    %1569 = vmatprep.mubr.f32.mxu0 0.0
    %1570 = vmatmul.mubr.f32.gmra.mxu0 %v1498
    %v1571 = vpop.f32.mrf.mxu0
    %v1572 = vadd.f32 0.0, %v1571
    %v1573 = vpop.f32.mrf.mxu0
    %1574 = vdwg.mxu0
    %v1575 = vadd.f32 %v1152, %v1567
    %v1576 = vadd.f32 %v1157, %v1572
    %1577 = vrot.lane.b32.xlu0 %v251, 32
    %v1578 = vpop.permute.xlu0 %1577
    %1579 = vrot.lane.b32.xlu0 %v253, 32
    %v1580 = vpop.permute.xlu0 %1579
    %v1581 = vsel %vm336, %v1578, 0
    %v1583 = vsel %vm336, %v1580, 0
    %1585 = vmatprep.subr.mxu0 0.0
    %1586 = vmatpush1.xpose.msra.mxu0 0.0
    %1587 = vmatprep.subr.mxu0 0.0
    %1588 = vmatpush1.xpose.msra.mxu0 0.0
    %1589 = vmatprep.subr.mxu0 0.0
    %1590 = vmatpush1.xpose.msra.mxu0 0.0
    %1591 = vmatprep.subr.mxu0 0.0
    %1592 = vmatpush1.xpose.msra.mxu0 0.0
    %1593 = vmatprep.subr.mxu0 0.0
    %1594 = vmatpush1.xpose.msra.mxu0 0.0
    %1595 = vmatprep.subr.mxu0 0.0
    %1596 = vmatpush1.xpose.msra.mxu0 0.0
    %1597 = vmatprep.subr.mxu0 0.0
    %1598 = vmatpush1.xpose.msra.mxu0 0.0
    %1599 = vmatprep.subr.mxu0 0.0
    %1600 = vmatpush1.xpose.msra.mxu0 0.0
    %1601 = vmatprep.subr.mxu0 0.0
    %1602 = vmatpush1.xpose.msra.mxu0 0.0
    %1603 = vmatprep.subr.mxu0 0.0
    %1604 = vmatpush1.xpose.msra.mxu0 0.0
    %1605 = vmatprep.subr.mxu0 0.0
    %1606 = vmatpush1.xpose.msra.mxu0 0.0
    %1607 = vmatprep.subr.mxu0 0.0
    %1608 = vmatpush1.xpose.msra.mxu0 0.0
    %1609 = vmatprep.subr.mxu0 0.0
    %1610 = vmatpush1.xpose.msra.mxu0 0.0
    %1611 = vmatprep.subr.mxu0 0.0
    %1612 = vmatpush1.xpose.msra.mxu0 0.0
    %1613 = vmatprep.subr.mxu0 0.0
    %1614 = vmatpush1.xpose.msra.mxu0 0.0
    %1615 = vmatprep.subr.mxu0 0.0
    %1616 = vmatpush1.xpose.msra.mxu0 %v1583
    %1617 = vmatprep.subr.mxu0 0.0
    %1618 = vmatpush2.xpose.msra.mxu0 0.0
    %1619 = vmatprep.subr.mxu0 0.0
    %1620 = vmatpush2.xpose.msra.mxu0 0.0
    %1621 = vmatprep.subr.mxu0 0.0
    %1622 = vmatpush2.xpose.msra.mxu0 0.0
    %1623 = vmatprep.subr.mxu0 0.0
    %1624 = vmatpush2.xpose.msra.mxu0 0.0
    %1625 = vmatprep.subr.mxu0 0.0
    %1626 = vmatpush2.xpose.msra.mxu0 0.0
    %1627 = vmatprep.subr.mxu0 0.0
    %1628 = vmatpush2.xpose.msra.mxu0 0.0
    %1629 = vmatprep.subr.mxu0 0.0
    %1630 = vmatpush2.xpose.msra.mxu0 0.0
    %1631 = vmatprep.subr.mxu0 0.0
    %1632 = vmatpush2.xpose.msra.mxu0 0.0
    %1633 = vmatprep.subr.mxu0 0.0
    %1634 = vmatpush2.xpose.msra.mxu0 0.0
    %1635 = vmatprep.subr.mxu0 0.0
    %1636 = vmatpush2.xpose.msra.mxu0 0.0
    %1637 = vmatprep.subr.mxu0 0.0
    %1638 = vmatpush2.xpose.msra.mxu0 0.0
    %1639 = vmatprep.subr.mxu0 0.0
    %1640 = vmatpush2.xpose.msra.mxu0 0.0
    %1641 = vmatprep.subr.mxu0 0.0
    %1642 = vmatpush2.xpose.msra.mxu0 0.0
    %1643 = vmatprep.subr.mxu0 0.0
    %1644 = vmatpush2.xpose.msra.mxu0 0.0
    %1645 = vmatprep.subr.mxu0 0.0
    %1646 = vmatpush2.xpose.msra.mxu0 0.0
    %1647 = vmatprep.subr.mxu0 0.0
    %1648 = vmatpush2.xpose.msra.mxu0 0.0
    %1649 = vmatprep.mubr.f32.mxu0 0.0
    %1650 = vmatmul.mubr.f32.gmra.mxu0 %v1581
    %v1651 = vpop.f32.mrf.mxu0
    %v1652 = vadd.f32 0.0, %v1651
    %v1653 = vpop.f32.mrf.mxu0
    %1654 = vdwg.mxu0
    %1655 = vrot.lane.b32.xlu0 %v257, 32
    %v1656 = vpop.permute.xlu0 %1655
    %1657 = vrot.lane.b32.xlu0 %v259, 32
    %v1658 = vpop.permute.xlu0 %1657
    %v1659 = vsel %vm336, %v1656, 0
    %v1661 = vsel %vm336, %v1658, 0
    %1663 = vmatprep.subr.mxu0 0.0
    %1664 = vmatpush1.xpose.msra.mxu0 0.0
    %1665 = vmatprep.subr.mxu0 0.0
    %1666 = vmatpush1.xpose.msra.mxu0 0.0
    %1667 = vmatprep.subr.mxu0 0.0
    %1668 = vmatpush1.xpose.msra.mxu0 0.0
    %1669 = vmatprep.subr.mxu0 0.0
    %1670 = vmatpush1.xpose.msra.mxu0 0.0
    %1671 = vmatprep.subr.mxu0 0.0
    %1672 = vmatpush1.xpose.msra.mxu0 0.0
    %1673 = vmatprep.subr.mxu0 0.0
    %1674 = vmatpush1.xpose.msra.mxu0 0.0
    %1675 = vmatprep.subr.mxu0 0.0
    %1676 = vmatpush1.xpose.msra.mxu0 0.0
    %1677 = vmatprep.subr.mxu0 0.0
    %1678 = vmatpush1.xpose.msra.mxu0 0.0
    %1679 = vmatprep.subr.mxu0 0.0
    %1680 = vmatpush1.xpose.msra.mxu0 0.0
    %1681 = vmatprep.subr.mxu0 0.0
    %1682 = vmatpush1.xpose.msra.mxu0 0.0
    %1683 = vmatprep.subr.mxu0 0.0
    %1684 = vmatpush1.xpose.msra.mxu0 0.0
    %1685 = vmatprep.subr.mxu0 0.0
    %1686 = vmatpush1.xpose.msra.mxu0 0.0
    %1687 = vmatprep.subr.mxu0 0.0
    %1688 = vmatpush1.xpose.msra.mxu0 0.0
    %1689 = vmatprep.subr.mxu0 0.0
    %1690 = vmatpush1.xpose.msra.mxu0 0.0
    %1691 = vmatprep.subr.mxu0 0.0
    %1692 = vmatpush1.xpose.msra.mxu0 0.0
    %1693 = vmatprep.subr.mxu0 0.0
    %1694 = vmatpush1.xpose.msra.mxu0 %v1661
    %1695 = vmatprep.subr.mxu0 0.0
    %1696 = vmatpush2.xpose.msra.mxu0 0.0
    %1697 = vmatprep.subr.mxu0 0.0
    %1698 = vmatpush2.xpose.msra.mxu0 0.0
    %1699 = vmatprep.subr.mxu0 0.0
    %1700 = vmatpush2.xpose.msra.mxu0 0.0
    %1701 = vmatprep.subr.mxu0 0.0
    %1702 = vmatpush2.xpose.msra.mxu0 0.0
    %1703 = vmatprep.subr.mxu0 0.0
    %1704 = vmatpush2.xpose.msra.mxu0 0.0
    %1705 = vmatprep.subr.mxu0 0.0
    %1706 = vmatpush2.xpose.msra.mxu0 0.0
    %1707 = vmatprep.subr.mxu0 0.0
    %1708 = vmatpush2.xpose.msra.mxu0 0.0
    %1709 = vmatprep.subr.mxu0 0.0
    %1710 = vmatpush2.xpose.msra.mxu0 0.0
    %1711 = vmatprep.subr.mxu0 0.0
    %1712 = vmatpush2.xpose.msra.mxu0 0.0
    %1713 = vmatprep.subr.mxu0 0.0
    %1714 = vmatpush2.xpose.msra.mxu0 0.0
    %1715 = vmatprep.subr.mxu0 0.0
    %1716 = vmatpush2.xpose.msra.mxu0 0.0
    %1717 = vmatprep.subr.mxu0 0.0
    %1718 = vmatpush2.xpose.msra.mxu0 0.0
    %1719 = vmatprep.subr.mxu0 0.0
    %1720 = vmatpush2.xpose.msra.mxu0 0.0
    %1721 = vmatprep.subr.mxu0 0.0
    %1722 = vmatpush2.xpose.msra.mxu0 0.0
    %1723 = vmatprep.subr.mxu0 0.0
    %1724 = vmatpush2.xpose.msra.mxu0 0.0
    %1725 = vmatprep.subr.mxu0 0.0
    %1726 = vmatpush2.xpose.msra.mxu0 0.0
    %1727 = vmatprep.mubr.f32.mxu0 0.0
    %1728 = vmatmul.mubr.f32.gmra.mxu0 %v1659
    %v1729 = vpop.f32.mrf.mxu0
    %v1730 = vadd.f32 0.0, %v1729
    %v1731 = vpop.f32.mrf.mxu0
    %1732 = vdwg.mxu0
    %v1733 = vsel %vm489, %v1652, -inf
    %1734 = vmax.xlane.f32.xlu0 %v1733
    %v1735 = vpop.xlane.xlu0 %1734
    %v1736 = vsel %vm489, %v1730, -inf
    %1737 = vmax.xlane.f32.xlu0 %v1736
    %v1738 = vpop.xlane.xlu0 %1737
    %v1739 = vsub.f32 %v1652, %v1735
    %v1740 = vsub.f32 %v1730, %v1738
    %v1741 = vmul.f32 %v1739, 1.442695
    %v1742 = vpow.pop %v1741
    %v1743 = vmul.f32 %v1740, 1.442695
    %v1744 = vpow.pop %v1743
    %v1745 = vsel %vm489, %v1742, 0.0
    %1746 = vadd.xlane.f32.xlu0 %v1745
    %v1747 = vpop.xlane.xlu0 %1746
    %v1748 = vsel %vm489, %v1744, 0.0
    %1749 = vadd.xlane.f32.xlu0 %v1748
    %v1750 = vpop.xlane.xlu0 %1749
    %1751 = vrot.lane.b32.xlu0 %v328, 32
    %v1752 = vpop.permute.xlu0 %1751
    %v1755 = vsel %vm489, %v1742, 0
    %1757 = vmatprep.subr.mxu0 0.0
    %1758 = vmatpush1.msra.mxu0 0.0
    %1759 = vmatprep.subr.mxu0 0.0
    %1760 = vmatpush1.msra.mxu0 0.0
    %1761 = vmatprep.subr.mxu0 0.0
    %1762 = vmatpush1.msra.mxu0 0.0
    %1763 = vmatprep.subr.mxu0 0.0
    %1764 = vmatpush1.msra.mxu0 0.0
    %1765 = vmatprep.subr.mxu0 0.0
    %1766 = vmatpush1.msra.mxu0 0.0
    %1767 = vmatprep.subr.mxu0 0.0
    %1768 = vmatpush1.msra.mxu0 0.0
    %1769 = vmatprep.subr.mxu0 0.0
    %1770 = vmatpush1.msra.mxu0 0.0
    %1771 = vmatprep.subr.mxu0 0.0
    %1772 = vmatpush1.msra.mxu0 0.0
    %1773 = vmatprep.subr.mxu0 0.0
    %1774 = vmatpush1.msra.mxu0 0.0
    %1775 = vmatprep.subr.mxu0 0.0
    %1776 = vmatpush1.msra.mxu0 0.0
    %1777 = vmatprep.subr.mxu0 0.0
    %1778 = vmatpush1.msra.mxu0 0.0
    %1779 = vmatprep.subr.mxu0 0.0
    %1780 = vmatpush1.msra.mxu0 0.0
    %1781 = vmatprep.subr.mxu0 0.0
    %1782 = vmatpush1.msra.mxu0 0.0
    %1783 = vmatprep.subr.mxu0 0.0
    %1784 = vmatpush1.msra.mxu0 0.0
    %1785 = vmatprep.subr.mxu0 0.0
    %1786 = vmatpush1.msra.mxu0 0.0
    %1787 = vmatprep.subr.mxu0 0.0
    %1788 = vmatpush1.msra.mxu0 %v1752
    %1789 = vmatprep.subr.mxu0 0.0
    %1790 = vmatpush2.msra.mxu0 0.0
    %1791 = vmatprep.subr.mxu0 0.0
    %1792 = vmatpush2.msra.mxu0 0.0
    %1793 = vmatprep.subr.mxu0 0.0
    %1794 = vmatpush2.msra.mxu0 0.0
    %1795 = vmatprep.subr.mxu0 0.0
    %1796 = vmatpush2.msra.mxu0 0.0
    %1797 = vmatprep.subr.mxu0 0.0
    %1798 = vmatpush2.msra.mxu0 0.0
    %1799 = vmatprep.subr.mxu0 0.0
    %1800 = vmatpush2.msra.mxu0 0.0
    %1801 = vmatprep.subr.mxu0 0.0
    %1802 = vmatpush2.msra.mxu0 0.0
    %1803 = vmatprep.subr.mxu0 0.0
    %1804 = vmatpush2.msra.mxu0 0.0
    %1805 = vmatprep.subr.mxu0 0.0
    %1806 = vmatpush2.msra.mxu0 0.0
    %1807 = vmatprep.subr.mxu0 0.0
    %1808 = vmatpush2.msra.mxu0 0.0
    %1809 = vmatprep.subr.mxu0 0.0
    %1810 = vmatpush2.msra.mxu0 0.0
    %1811 = vmatprep.subr.mxu0 0.0
    %1812 = vmatpush2.msra.mxu0 0.0
    %1813 = vmatprep.subr.mxu0 0.0
    %1814 = vmatpush2.msra.mxu0 0.0
    %1815 = vmatprep.subr.mxu0 0.0
    %1816 = vmatpush2.msra.mxu0 0.0
    %1817 = vmatprep.subr.mxu0 0.0
    %1818 = vmatpush2.msra.mxu0 0.0
    %1819 = vmatprep.subr.mxu0 0.0
    %1820 = vmatpush2.msra.mxu0 0.0
    %1821 = vmatprep.mubr.f32.mxu0 0.0
    %1822 = vmatmul.mubr.f32.gmra.mxu0 %v1755
    %v1823 = vpop.f32.mrf.mxu0
    %v1824 = vadd.f32 0.0, %v1823
    %v1825 = vpop.f32.mrf.mxu0
    %1826 = vdwg.mxu0
    %1827 = vrot.lane.b32.xlu0 %v333, 32
    %v1828 = vpop.permute.xlu0 %1827
    %v1831 = vsel %vm489, %v1744, 0
    %1833 = vmatprep.subr.mxu0 0.0
    %1834 = vmatpush1.msra.mxu0 0.0
    %1835 = vmatprep.subr.mxu0 0.0
    %1836 = vmatpush1.msra.mxu0 0.0
    %1837 = vmatprep.subr.mxu0 0.0
    %1838 = vmatpush1.msra.mxu0 0.0
    %1839 = vmatprep.subr.mxu0 0.0
    %1840 = vmatpush1.msra.mxu0 0.0
    %1841 = vmatprep.subr.mxu0 0.0
    %1842 = vmatpush1.msra.mxu0 0.0
    %1843 = vmatprep.subr.mxu0 0.0
    %1844 = vmatpush1.msra.mxu0 0.0
    %1845 = vmatprep.subr.mxu0 0.0
    %1846 = vmatpush1.msra.mxu0 0.0
    %1847 = vmatprep.subr.mxu0 0.0
    %1848 = vmatpush1.msra.mxu0 0.0
    %1849 = vmatprep.subr.mxu0 0.0
    %1850 = vmatpush1.msra.mxu0 0.0
    %1851 = vmatprep.subr.mxu0 0.0
    %1852 = vmatpush1.msra.mxu0 0.0
    %1853 = vmatprep.subr.mxu0 0.0
    %1854 = vmatpush1.msra.mxu0 0.0
    %1855 = vmatprep.subr.mxu0 0.0
    %1856 = vmatpush1.msra.mxu0 0.0
    %1857 = vmatprep.subr.mxu0 0.0
    %1858 = vmatpush1.msra.mxu0 0.0
    %1859 = vmatprep.subr.mxu0 0.0
    %1860 = vmatpush1.msra.mxu0 0.0
    %1861 = vmatprep.subr.mxu0 0.0
    %1862 = vmatpush1.msra.mxu0 0.0
    %1863 = vmatprep.subr.mxu0 0.0
    %1864 = vmatpush1.msra.mxu0 %v1828
    %1865 = vmatprep.subr.mxu0 0.0
    %1866 = vmatpush2.msra.mxu0 0.0
    %1867 = vmatprep.subr.mxu0 0.0
    %1868 = vmatpush2.msra.mxu0 0.0
    %1869 = vmatprep.subr.mxu0 0.0
    %1870 = vmatpush2.msra.mxu0 0.0
    %1871 = vmatprep.subr.mxu0 0.0
    %1872 = vmatpush2.msra.mxu0 0.0
    %1873 = vmatprep.subr.mxu0 0.0
    %1874 = vmatpush2.msra.mxu0 0.0
    %1875 = vmatprep.subr.mxu0 0.0
    %1876 = vmatpush2.msra.mxu0 0.0
    %1877 = vmatprep.subr.mxu0 0.0
    %1878 = vmatpush2.msra.mxu0 0.0
    %1879 = vmatprep.subr.mxu0 0.0
    %1880 = vmatpush2.msra.mxu0 0.0
    %1881 = vmatprep.subr.mxu0 0.0
    %1882 = vmatpush2.msra.mxu0 0.0
    %1883 = vmatprep.subr.mxu0 0.0
    %1884 = vmatpush2.msra.mxu0 0.0
    %1885 = vmatprep.subr.mxu0 0.0
    %1886 = vmatpush2.msra.mxu0 0.0
    %1887 = vmatprep.subr.mxu0 0.0
    %1888 = vmatpush2.msra.mxu0 0.0
    %1889 = vmatprep.subr.mxu0 0.0
    %1890 = vmatpush2.msra.mxu0 0.0
    %1891 = vmatprep.subr.mxu0 0.0
    %1892 = vmatpush2.msra.mxu0 0.0
    %1893 = vmatprep.subr.mxu0 0.0
    %1894 = vmatpush2.msra.mxu0 0.0
    %1895 = vmatprep.subr.mxu0 0.0
    %1896 = vmatpush2.msra.mxu0 0.0
    %1897 = vmatprep.mubr.f32.mxu0 0.0
    %1898 = vmatmul.mubr.f32.gmra.mxu0 %v1831
    %v1899 = vpop.f32.mrf.mxu0
    %v1900 = vadd.f32 0.0, %v1899
    %v1901 = vpop.f32.mrf.mxu0
    %1902 = vdwg.mxu0
    %v1903 = vrcp.pop %v1747
    %v1904 = vmul.f32 %v1824, %v1903
    %v1905 = vrcp.pop %v1750
    %v1906 = vmul.f32 %v1900, %v1905
    %v1907 = vld [vmem:[#allocation7 + $0x60] sm:$0xff]
    %v1908 = vld [vmem:[#allocation7 + $0x68] sm:$0xff]
    %v1909 = vld [vmem:[#allocation7 + $0x70] sm:$0xff]
    %v1910 = vld [vmem:[#allocation7 + $0x78] sm:$0xff]
    %v1912 = vsel %vm336, %v1904, 0
    %v1915 = vsel %vm336, %v1906, 0
    %1917 = vmatprep.subr.mxu0 0.0
    %1918 = vmatpush1.msra.mxu0 0.0
    %1919 = vmatprep.subr.mxu0 0.0
    %1920 = vmatpush1.msra.mxu0 0.0
    %1921 = vmatprep.subr.mxu0 0.0
    %1922 = vmatpush1.msra.mxu0 0.0
    %1923 = vmatprep.subr.mxu0 0.0
    %1924 = vmatpush1.msra.mxu0 0.0
    %1925 = vmatprep.subr.mxu0 0.0
    %1926 = vmatpush1.msra.mxu0 0.0
    %1927 = vmatprep.subr.mxu0 0.0
    %1928 = vmatpush1.msra.mxu0 0.0
    %1929 = vmatprep.subr.mxu0 0.0
    %1930 = vmatpush1.msra.mxu0 0.0
    %1931 = vmatprep.subr.mxu0 0.0
    %1932 = vmatpush1.msra.mxu0 0.0
    %1933 = vmatprep.subr.mxu0 0.0
    %1934 = vmatpush1.msra.mxu0 0.0
    %1935 = vmatprep.subr.mxu0 0.0
    %1936 = vmatpush1.msra.mxu0 0.0
    %1937 = vmatprep.subr.mxu0 0.0
    %1938 = vmatpush1.msra.mxu0 0.0
    %1939 = vmatprep.subr.mxu0 0.0
    %1940 = vmatpush1.msra.mxu0 0.0
    %1941 = vmatprep.subr.mxu0 0.0
    %1942 = vmatpush1.msra.mxu0 %v1910
    %1943 = vmatprep.subr.mxu0 0.0
    %1944 = vmatpush1.msra.mxu0 %v1909
    %1945 = vmatprep.subr.mxu0 0.0
    %1946 = vmatpush1.msra.mxu0 %v1908
    %1947 = vmatprep.subr.mxu0 0.0
    %1948 = vmatpush1.msra.mxu0 %v1907
    %1949 = vmatprep.subr.mxu0 0.0
    %1950 = vmatpush2.msra.mxu0 0.0
    %1951 = vmatprep.subr.mxu0 0.0
    %1952 = vmatpush2.msra.mxu0 0.0
    %1953 = vmatprep.subr.mxu0 0.0
    %1954 = vmatpush2.msra.mxu0 0.0
    %1955 = vmatprep.subr.mxu0 0.0
    %1956 = vmatpush2.msra.mxu0 0.0
    %1957 = vmatprep.subr.mxu0 0.0
    %1958 = vmatpush2.msra.mxu0 0.0
    %1959 = vmatprep.subr.mxu0 0.0
    %1960 = vmatpush2.msra.mxu0 0.0
    %1961 = vmatprep.subr.mxu0 0.0
    %1962 = vmatpush2.msra.mxu0 0.0
    %1963 = vmatprep.subr.mxu0 0.0
    %1964 = vmatpush2.msra.mxu0 0.0
    %1965 = vmatprep.subr.mxu0 0.0
    %1966 = vmatpush2.msra.mxu0 0.0
    %1967 = vmatprep.subr.mxu0 0.0
    %1968 = vmatpush2.msra.mxu0 0.0
    %1969 = vmatprep.subr.mxu0 0.0
    %1970 = vmatpush2.msra.mxu0 0.0
    %1971 = vmatprep.subr.mxu0 0.0
    %1972 = vmatpush2.msra.mxu0 0.0
    %1973 = vmatprep.subr.mxu0 0.0
    %1974 = vmatpush2.msra.mxu0 0.0
    %1975 = vmatprep.subr.mxu0 0.0
    %1976 = vmatpush2.msra.mxu0 0.0
    %1977 = vmatprep.subr.mxu0 0.0
    %1978 = vmatpush2.msra.mxu0 0.0
    %1979 = vmatprep.subr.mxu0 0.0
    %1980 = vmatpush2.msra.mxu0 0.0
    %1981 = vmatprep.mubr.f32.mxu0 0.0
    %1982 = vmatmul.mubr.f32.gmra.mxu0 %v1912
    %v1983 = vpop.f32.mrf.mxu0
    %v1984 = vadd.f32 0.0, %v1983
    %v1985 = vpop.f32.mrf.mxu0
    %1986 = vmatprep.mubr.f32.mxu0 0.0
    %1987 = vmatmul.mubr.f32.gmra.mxu0 %v1915
    %v1988 = vpop.f32.mrf.mxu0
    %v1989 = vadd.f32 0.0, %v1988
    %v1990 = vpop.f32.mrf.mxu0
    %1991 = vdwg.mxu0
    %v1992 = vadd.f32 %v1575, %v1984
    %v1993 = vadd.f32 %v1576, %v1989
    %v1994 = vld [vmem:[#allocation2] sm:$0xff]
    %v1995 = vld [vmem:[#allocation2 + $0x8] sm:$0xff]
    %v1996 = vld [vmem:[%s3] sm:$0x1]
    %v1998 = vlaneseq
    %v1999 = vshrl.u32 %v1998, 7
    %v2000 = vsub.s32 0, %v1999
    %v2001 = vrot.slane %v1996, %v2000
    %v2003 = vadd.f32 %v1992, %v2001
    %v2004 = vadd.f32 %v1993, %v2001
    %v2005 = vadd.f32 %v2003, %v1994
    %v2006 = vadd.f32 %v2004, %v1995
    %v2007 = vld [vmem:[#allocation8] sm:$0x1]
    %v2008 = vld [vmem:[%s5] sm:$0x1]
    %2009 = vadd.xlane.f32.xlu0 %v2005
    %v2010 = vpop.xlane.xlu0 %2009
    %2011 = vadd.xlane.f32.xlu0 %v2006
    %v2012 = vpop.xlane.xlu0 %2011
    %v2013 = vrcp.pop 128.0
    %v2014 = vmul.f32 %v2010, %v2013
    %v2015 = vmul.f32 %v2012, %v2013
    %v2016 = vsub.f32 %v2005, %v2014
    %v2017 = vsub.f32 %v2006, %v2015
    %v2018 = vmul.f32 %v2016, %v2016
    %v2019 = vmul.f32 %v2017, %v2017
    %2020 = vadd.xlane.f32.xlu0 %v2018
    %v2021 = vpop.xlane.xlu0 %2020
    %2022 = vadd.xlane.f32.xlu0 %v2019
    %v2023 = vpop.xlane.xlu0 %2022
    %v2024 = vmul.f32 %v2021, %v2013
    %v2025 = vmul.f32 %v2023, %v2013
    %v2026 = vadd.f32 %v2024, 1e-05
    %v2027 = vadd.f32 %v2025, 1e-05
    %v2028 = vrsqrt.pop %v2026
    %v2029 = vrsqrt.pop %v2027
    %v2030 = vmul.f32 %v2016, %v2028
    %v2031 = vmul.f32 %v2017, %v2029
    %v2033 = vlaneseq
    %v2034 = vshrl.u32 %v2033, 7
    %v2035 = vsub.s32 0, %v2034
    %v2036 = vrot.slane %v2007, %v2035
    %v2038 = vmul.f32 %v2030, %v2036
    %v2039 = vmul.f32 %v2031, %v2036
    %v2041 = vlaneseq
    %v2042 = vshrl.u32 %v2041, 7
    %v2043 = vsub.s32 0, %v2042
    %v2044 = vrot.slane %v2008, %v2043
    %v2046 = vadd.f32 %v2038, %v2044
    %v2047 = vadd.f32 %v2039, %v2044
    %v2048 = vmul.f32 %v2046, 0.5
    %v2049 = vmul.f32 %v2047, 0.5
    %v2050 = vmul.f32 %v2046, 0.70710677
    %v2051 = vmul.f32 %v2047, 0.70710677
    %v2052 = verf.f32.pop %v2050
    %v2053 = verf.f32.pop %v2051
    %v2054 = vadd.f32 %v2052, 1.0
    %v2055 = vadd.f32 %v2053, 1.0
    %v2056 = vmul.f32 %v2048, %v2054
    %v2057 = vmul.f32 %v2049, %v2055
    %v2058 = vld [vmem:[%s6] sm:$0x1]
    %v2059 = vld [vmem:[%s7] sm:$0x1]
    %2060 = vadd.xlane.f32.xlu0 %v2056
    %v2061 = vpop.xlane.xlu0 %2060
    %2062 = vadd.xlane.f32.xlu0 %v2057
    %v2063 = vpop.xlane.xlu0 %2062
    %v2064 = vmul.f32 %v2061, %v2013
    %v2065 = vmul.f32 %v2063, %v2013
    %v2066 = vsub.f32 %v2056, %v2064
    %v2067 = vsub.f32 %v2057, %v2065
    %v2068 = vmul.f32 %v2066, %v2066
    %v2069 = vmul.f32 %v2067, %v2067
    %2070 = vadd.xlane.f32.xlu0 %v2068
    %v2071 = vpop.xlane.xlu0 %2070
    %2072 = vadd.xlane.f32.xlu0 %v2069
    %v2073 = vpop.xlane.xlu0 %2072
    %v2074 = vmul.f32 %v2071, %v2013
    %v2075 = vmul.f32 %v2073, %v2013
    %v2076 = vadd.f32 %v2074, 1e-05
    %v2077 = vadd.f32 %v2075, 1e-05
    %v2078 = vrsqrt.pop %v2076
    %v2079 = vrsqrt.pop %v2077
    %v2080 = vmul.f32 %v2066, %v2078
    %v2081 = vmul.f32 %v2067, %v2079
    %v2083 = vlaneseq
    %v2084 = vshrl.u32 %v2083, 7
    %v2085 = vsub.s32 0, %v2084
    %v2086 = vrot.slane %v2058, %v2085
    %v2088 = vmul.f32 %v2080, %v2086
    %v2089 = vmul.f32 %v2081, %v2086
    %v2091 = vlaneseq
    %v2092 = vshrl.u32 %v2091, 7
    %v2093 = vsub.s32 0, %v2092
    %v2094 = vrot.slane %v2059, %v2093
    %v2096 = vadd.f32 %v2088, %v2094
    %v2097 = vadd.f32 %v2089, %v2094
    %v2098 = vld [vmem:[#allocation10] sm:$0xff]
    %v2099 = vld [vmem:[#allocation10 + $0x8] sm:$0xff]
    %v2100 = vld [vmem:[#allocation10 + $0x10] sm:$0xff]
    %v2101 = vld [vmem:[#allocation10 + $0x18] sm:$0xff]
    %v2102 = vld [vmem:[#allocation10 + $0x20] sm:$0xff]
    %v2103 = vld [vmem:[#allocation10 + $0x28] sm:$0xff]
    %v2104 = vld [vmem:[#allocation10 + $0x30] sm:$0xff]
    %v2105 = vld [vmem:[#allocation10 + $0x38] sm:$0xff]
    %v2106 = vld [vmem:[#allocation10 + $0x40] sm:$0xff]
    %v2107 = vld [vmem:[#allocation10 + $0x48] sm:$0xff]
    %v2108 = vld [vmem:[#allocation10 + $0x50] sm:$0xff]
    %v2109 = vld [vmem:[#allocation10 + $0x58] sm:$0xff]
    %v2110 = vld [vmem:[#allocation10 + $0x60] sm:$0xff]
    %v2111 = vld [vmem:[#allocation10 + $0x68] sm:$0xff]
    %v2112 = vld [vmem:[#allocation10 + $0x70] sm:$0xff]
    %v2113 = vld [vmem:[#allocation10 + $0x78] sm:$0xff]
    %v2114 = vld [vmem:[#allocation10 + $0x80] sm:$0xff]
    %v2115 = vld [vmem:[#allocation10 + $0x88] sm:$0xff]
    %v2116 = vld [vmem:[#allocation10 + $0x90] sm:$0xff]
    %v2117 = vld [vmem:[#allocation10 + $0x98] sm:$0xff]
    %v2118 = vld [vmem:[#allocation10 + $0xa0] sm:$0xff]
    %v2119 = vld [vmem:[#allocation10 + $0xa8] sm:$0xff]
    %v2120 = vld [vmem:[#allocation10 + $0xb0] sm:$0xff]
    %v2121 = vld [vmem:[#allocation10 + $0xb8] sm:$0xff]
    %v2122 = vld [vmem:[#allocation10 + $0xc0] sm:$0xff]
    %v2123 = vld [vmem:[#allocation10 + $0xc8] sm:$0xff]
    %v2124 = vld [vmem:[#allocation10 + $0xd0] sm:$0xff]
    %v2125 = vld [vmem:[#allocation10 + $0xd8] sm:$0xff]
    %v2126 = vld [vmem:[#allocation10 + $0xe0] sm:$0xff]
    %v2127 = vld [vmem:[#allocation10 + $0xe8] sm:$0xff]
    %v2128 = vld [vmem:[#allocation10 + $0xf0] sm:$0xff]
    %v2129 = vld [vmem:[#allocation10 + $0xf8] sm:$0xff]
    %v2130 = vld [vmem:[%s9] sm:$0x3]
    %v2132 = vlaneseq
    %v2133 = vshrl.u32 %v2132, 7
    %v2134 = vsub.s32 0, %v2133
    %v2135 = vrot.slane %v2130, %v2134
    %v2136 = vlaneseq
    %v2137 = vshrl.u32 %v2136, 7
    %v2138 = vsub.s32 1, %v2137
    %v2139 = vrot.slane %v2130, %v2138
    %2142 = vmatprep.subr.mxu0 %v2129
    %2143 = vmatpush1.msra.mxu0 %v2128
    %2144 = vmatprep.subr.mxu0 %v2127
    %2145 = vmatpush1.msra.mxu0 %v2126
    %2146 = vmatprep.subr.mxu0 %v2125
    %2147 = vmatpush1.msra.mxu0 %v2124
    %2148 = vmatprep.subr.mxu0 %v2123
    %2149 = vmatpush1.msra.mxu0 %v2122
    %2150 = vmatprep.subr.mxu0 %v2121
    %2151 = vmatpush1.msra.mxu0 %v2120
    %2152 = vmatprep.subr.mxu0 %v2119
    %2153 = vmatpush1.msra.mxu0 %v2118
    %2154 = vmatprep.subr.mxu0 %v2117
    %2155 = vmatpush1.msra.mxu0 %v2116
    %2156 = vmatprep.subr.mxu0 %v2115
    %2157 = vmatpush1.msra.mxu0 %v2114
    %2158 = vmatprep.subr.mxu0 %v2113
    %2159 = vmatpush1.msra.mxu0 %v2112
    %2160 = vmatprep.subr.mxu0 %v2111
    %2161 = vmatpush1.msra.mxu0 %v2110
    %2162 = vmatprep.subr.mxu0 %v2109
    %2163 = vmatpush1.msra.mxu0 %v2108
    %2164 = vmatprep.subr.mxu0 %v2107
    %2165 = vmatpush1.msra.mxu0 %v2106
    %2166 = vmatprep.subr.mxu0 %v2105
    %2167 = vmatpush1.msra.mxu0 %v2104
    %2168 = vmatprep.subr.mxu0 %v2103
    %2169 = vmatpush1.msra.mxu0 %v2102
    %2170 = vmatprep.subr.mxu0 %v2101
    %2171 = vmatpush1.msra.mxu0 %v2100
    %2172 = vmatprep.subr.mxu0 %v2099
    %2173 = vmatpush1.msra.mxu0 %v2098
    %2174 = vmatprep.subr.mxu0 0.0
    %2175 = vmatpush2.msra.mxu0 0.0
    %2176 = vmatprep.subr.mxu0 0.0
    %2177 = vmatpush2.msra.mxu0 0.0
    %2178 = vmatprep.subr.mxu0 0.0
    %2179 = vmatpush2.msra.mxu0 0.0
    %2180 = vmatprep.subr.mxu0 0.0
    %2181 = vmatpush2.msra.mxu0 0.0
    %2182 = vmatprep.subr.mxu0 0.0
    %2183 = vmatpush2.msra.mxu0 0.0
    %2184 = vmatprep.subr.mxu0 0.0
    %2185 = vmatpush2.msra.mxu0 0.0
    %2186 = vmatprep.subr.mxu0 0.0
    %2187 = vmatpush2.msra.mxu0 0.0
    %2188 = vmatprep.subr.mxu0 0.0
    %2189 = vmatpush2.msra.mxu0 0.0
    %2190 = vmatprep.subr.mxu0 0.0
    %2191 = vmatpush2.msra.mxu0 0.0
    %2192 = vmatprep.subr.mxu0 0.0
    %2193 = vmatpush2.msra.mxu0 0.0
    %2194 = vmatprep.subr.mxu0 0.0
    %2195 = vmatpush2.msra.mxu0 0.0
    %2196 = vmatprep.subr.mxu0 0.0
    %2197 = vmatpush2.msra.mxu0 0.0
    %2198 = vmatprep.subr.mxu0 0.0
    %2199 = vmatpush2.msra.mxu0 0.0
    %2200 = vmatprep.subr.mxu0 0.0
    %2201 = vmatpush2.msra.mxu0 0.0
    %2202 = vmatprep.subr.mxu0 0.0
    %2203 = vmatpush2.msra.mxu0 0.0
    %2204 = vmatprep.subr.mxu0 0.0
    %2205 = vmatpush2.msra.mxu0 0.0
    %2206 = vmatprep.mubr.f32.mxu0 0.0
    %2207 = vmatmul.mubr.f32.gmra.mxu0 %v2096
    %v2208 = vpop.f32.mrf.mxu0
    %v2209 = vadd.f32 %v2135, %v2208
    %v2210 = vpop.f32.mrf.mxu0
    %v2211 = vadd.f32 %v2139, %v2210
    %2212 = vmatprep.mubr.f32.mxu0 0.0
    %2213 = vmatmul.mubr.f32.gmra.mxu0 %v2097
    %v2214 = vpop.f32.mrf.mxu0
    %v2215 = vadd.f32 %v2135, %v2214
    %v2216 = vpop.f32.mrf.mxu0
    %v2217 = vadd.f32 %v2139, %v2216
    %2218 = vdwg.mxu0
    %v2219 = vmul.f32 %v2209, 0.5
    %v2220 = vmul.f32 %v2211, 0.5
    %v2221 = vmul.f32 %v2215, 0.5
    %v2222 = vmul.f32 %v2217, 0.5
    %v2223 = vmul.f32 %v2209, 0.70710677
    %v2224 = vmul.f32 %v2211, 0.70710677
    %v2225 = vmul.f32 %v2215, 0.70710677
    %v2226 = vmul.f32 %v2217, 0.70710677
    %v2227 = verf.f32.pop %v2223
    %v2228 = verf.f32.pop %v2224
    %v2229 = verf.f32.pop %v2225
    %v2230 = verf.f32.pop %v2226
    %v2231 = vadd.f32 %v2227, 1.0
    %v2232 = vadd.f32 %v2228, 1.0
    %v2233 = vadd.f32 %v2229, 1.0
    %v2234 = vadd.f32 %v2230, 1.0
    %v2235 = vmul.f32 %v2219, %v2231
    %v2236 = vmul.f32 %v2220, %v2232
    %v2237 = vmul.f32 %v2221, %v2233
    %v2238 = vmul.f32 %v2222, %v2234
    %v2239 = vld [vmem:[%s10] sm:$0x3]
    %v2240 = vld [vmem:[%s11] sm:$0x3]
    %v2241 = vadd.f32 %v2235, %v2236
    %2242 = vadd.xlane.f32.xlu0 %v2241
    %v2243 = vpop.xlane.xlu0 %2242
    %v2244 = vadd.f32 %v2237, %v2238
    %2245 = vadd.xlane.f32.xlu0 %v2244
    %v2246 = vpop.xlane.xlu0 %2245
    %v2247 = vrcp.pop 256.0
    %v2248 = vmul.f32 %v2243, %v2247
    %v2249 = vmul.f32 %v2246, %v2247
    %v2250 = vsub.f32 %v2235, %v2248
    %v2251 = vsub.f32 %v2236, %v2248
    %v2252 = vsub.f32 %v2237, %v2249
    %v2253 = vsub.f32 %v2238, %v2249
    %v2254 = vmul.f32 %v2250, %v2250
    %v2255 = vmul.f32 %v2251, %v2251
    %v2256 = vmul.f32 %v2252, %v2252
    %v2257 = vmul.f32 %v2253, %v2253
    %v2258 = vadd.f32 %v2254, %v2255
    %2259 = vadd.xlane.f32.xlu0 %v2258
    %v2260 = vpop.xlane.xlu0 %2259
    %v2261 = vadd.f32 %v2256, %v2257
    %2262 = vadd.xlane.f32.xlu0 %v2261
    %v2263 = vpop.xlane.xlu0 %2262
    %v2264 = vmul.f32 %v2260, %v2247
    %v2265 = vmul.f32 %v2263, %v2247
    %v2266 = vadd.f32 %v2264, 1e-05
    %v2267 = vadd.f32 %v2265, 1e-05
    %v2268 = vrsqrt.pop %v2266
    %v2269 = vrsqrt.pop %v2267
    %v2270 = vmul.f32 %v2250, %v2268
    %v2271 = vmul.f32 %v2251, %v2268
    %v2272 = vmul.f32 %v2252, %v2269
    %v2273 = vmul.f32 %v2253, %v2269
    %v2275 = vlaneseq
    %v2276 = vshrl.u32 %v2275, 7
    %v2277 = vsub.s32 0, %v2276
    %v2278 = vrot.slane %v2239, %v2277
    %v2279 = vlaneseq
    %v2280 = vshrl.u32 %v2279, 7
    %v2281 = vsub.s32 1, %v2280
    %v2282 = vrot.slane %v2239, %v2281
    %v2285 = vmul.f32 %v2270, %v2278
    %v2286 = vmul.f32 %v2271, %v2282
    %v2287 = vmul.f32 %v2272, %v2278
    %v2288 = vmul.f32 %v2273, %v2282
    %v2290 = vlaneseq
    %v2291 = vshrl.u32 %v2290, 7
    %v2292 = vsub.s32 0, %v2291
    %v2293 = vrot.slane %v2240, %v2292
    %v2294 = vlaneseq
    %v2295 = vshrl.u32 %v2294, 7
    %v2296 = vsub.s32 1, %v2295
    %v2297 = vrot.slane %v2240, %v2296
    %v2300 = vadd.f32 %v2285, %v2293
    %v2301 = vadd.f32 %v2286, %v2297
    %v2302 = vadd.f32 %v2287, %v2293
    %v2303 = vadd.f32 %v2288, %v2297
    %v2304 = vld [vmem:[#allocation11] sm:$0xff]
    %v2305 = vld [vmem:[#allocation11 + $0x8] sm:$0xff]
    %v2306 = vld [vmem:[#allocation11 + $0x10] sm:$0xff]
    %v2307 = vld [vmem:[#allocation11 + $0x18] sm:$0xff]
    %v2308 = vld [vmem:[#allocation11 + $0x20] sm:$0xff]
    %v2309 = vld [vmem:[#allocation11 + $0x28] sm:$0xff]
    %v2310 = vld [vmem:[#allocation11 + $0x30] sm:$0xff]
    %v2311 = vld [vmem:[#allocation11 + $0x38] sm:$0xff]
    %v2312 = vld [vmem:[#allocation11 + $0x40] sm:$0xff]
    %v2313 = vld [vmem:[#allocation11 + $0x48] sm:$0xff]
    %v2314 = vld [vmem:[#allocation11 + $0x50] sm:$0xff]
    %v2315 = vld [vmem:[#allocation11 + $0x58] sm:$0xff]
    %v2316 = vld [vmem:[#allocation11 + $0x60] sm:$0xff]
    %v2317 = vld [vmem:[#allocation11 + $0x68] sm:$0xff]
    %v2318 = vld [vmem:[#allocation11 + $0x70] sm:$0xff]
    %v2319 = vld [vmem:[#allocation11 + $0x78] sm:$0xff]
    %v2320 = vld [vmem:[#allocation11 + $0x80] sm:$0xff]
    %v2321 = vld [vmem:[#allocation11 + $0x88] sm:$0xff]
    %v2322 = vld [vmem:[#allocation11 + $0x90] sm:$0xff]
    %v2323 = vld [vmem:[#allocation11 + $0x98] sm:$0xff]
    %v2324 = vld [vmem:[#allocation11 + $0xa0] sm:$0xff]
    %v2325 = vld [vmem:[#allocation11 + $0xa8] sm:$0xff]
    %v2326 = vld [vmem:[#allocation11 + $0xb0] sm:$0xff]
    %v2327 = vld [vmem:[#allocation11 + $0xb8] sm:$0xff]
    %v2328 = vld [vmem:[#allocation11 + $0xc0] sm:$0xff]
    %v2329 = vld [vmem:[#allocation11 + $0xc8] sm:$0xff]
    %v2330 = vld [vmem:[#allocation11 + $0xd0] sm:$0xff]
    %v2331 = vld [vmem:[#allocation11 + $0xd8] sm:$0xff]
    %v2332 = vld [vmem:[#allocation11 + $0xe0] sm:$0xff]
    %v2333 = vld [vmem:[#allocation11 + $0xe8] sm:$0xff]
    %v2334 = vld [vmem:[#allocation11 + $0xf0] sm:$0xff]
    %v2335 = vld [vmem:[#allocation11 + $0xf8] sm:$0xff]
    %v2336 = vld [vmem:[%s13] sm:$0x1]
    %v2338 = vlaneseq
    %v2339 = vshrl.u32 %v2338, 7
    %v2340 = vsub.s32 0, %v2339
    %v2341 = vrot.slane %v2336, %v2340
    %2343 = vmatprep.subr.mxu0 0.0
    %2344 = vmatpush1.msra.mxu0 %v2319
    %2345 = vmatprep.subr.mxu0 0.0
    %2346 = vmatpush1.msra.mxu0 %v2318
    %2347 = vmatprep.subr.mxu0 0.0
    %2348 = vmatpush1.msra.mxu0 %v2317
    %2349 = vmatprep.subr.mxu0 0.0
    %2350 = vmatpush1.msra.mxu0 %v2316
    %2351 = vmatprep.subr.mxu0 0.0
    %2352 = vmatpush1.msra.mxu0 %v2315
    %2353 = vmatprep.subr.mxu0 0.0
    %2354 = vmatpush1.msra.mxu0 %v2314
    %2355 = vmatprep.subr.mxu0 0.0
    %2356 = vmatpush1.msra.mxu0 %v2313
    %2357 = vmatprep.subr.mxu0 0.0
    %2358 = vmatpush1.msra.mxu0 %v2312
    %2359 = vmatprep.subr.mxu0 0.0
    %2360 = vmatpush1.msra.mxu0 %v2311
    %2361 = vmatprep.subr.mxu0 0.0
    %2362 = vmatpush1.msra.mxu0 %v2310
    %2363 = vmatprep.subr.mxu0 0.0
    %2364 = vmatpush1.msra.mxu0 %v2309
    %2365 = vmatprep.subr.mxu0 0.0
    %2366 = vmatpush1.msra.mxu0 %v2308
    %2367 = vmatprep.subr.mxu0 0.0
    %2368 = vmatpush1.msra.mxu0 %v2307
    %2369 = vmatprep.subr.mxu0 0.0
    %2370 = vmatpush1.msra.mxu0 %v2306
    %2371 = vmatprep.subr.mxu0 0.0
    %2372 = vmatpush1.msra.mxu0 %v2305
    %2373 = vmatprep.subr.mxu0 0.0
    %2374 = vmatpush1.msra.mxu0 %v2304
    %2375 = vmatprep.subr.mxu0 0.0
    %2376 = vmatpush2.msra.mxu0 %v2335
    %2377 = vmatprep.subr.mxu0 0.0
    %2378 = vmatpush2.msra.mxu0 %v2334
    %2379 = vmatprep.subr.mxu0 0.0
    %2380 = vmatpush2.msra.mxu0 %v2333
    %2381 = vmatprep.subr.mxu0 0.0
    %2382 = vmatpush2.msra.mxu0 %v2332
    %2383 = vmatprep.subr.mxu0 0.0
    %2384 = vmatpush2.msra.mxu0 %v2331
    %2385 = vmatprep.subr.mxu0 0.0
    %2386 = vmatpush2.msra.mxu0 %v2330
    %2387 = vmatprep.subr.mxu0 0.0
    %2388 = vmatpush2.msra.mxu0 %v2329
    %2389 = vmatprep.subr.mxu0 0.0
    %2390 = vmatpush2.msra.mxu0 %v2328
    %2391 = vmatprep.subr.mxu0 0.0
    %2392 = vmatpush2.msra.mxu0 %v2327
    %2393 = vmatprep.subr.mxu0 0.0
    %2394 = vmatpush2.msra.mxu0 %v2326
    %2395 = vmatprep.subr.mxu0 0.0
    %2396 = vmatpush2.msra.mxu0 %v2325
    %2397 = vmatprep.subr.mxu0 0.0
    %2398 = vmatpush2.msra.mxu0 %v2324
    %2399 = vmatprep.subr.mxu0 0.0
    %2400 = vmatpush2.msra.mxu0 %v2323
    %2401 = vmatprep.subr.mxu0 0.0
    %2402 = vmatpush2.msra.mxu0 %v2322
    %2403 = vmatprep.subr.mxu0 0.0
    %2404 = vmatpush2.msra.mxu0 %v2321
    %2405 = vmatprep.subr.mxu0 0.0
    %2406 = vmatpush2.msra.mxu0 %v2320
    %2407 = vmatprep.mubr.f32.mxu0 %v2301
    %2408 = vmatmul.mubr.f32.gmra.mxu0 %v2300
    %v2409 = vpop.f32.mrf.mxu0
    %v2410 = vadd.f32 %v2341, %v2409
    %v2411 = vpop.f32.mrf.mxu0
    %2412 = vmatprep.mubr.f32.mxu0 %v2303
    %2413 = vmatmul.mubr.f32.gmra.mxu0 %v2302
    %v2414 = vpop.f32.mrf.mxu0
    %v2415 = vadd.f32 %v2341, %v2414
    %v2416 = vpop.f32.mrf.mxu0
    %2417 = vdwg.mxu0
    %v2418 = vadd.f32 %v2410, %v1994
    %v2419 = vadd.f32 %v2415, %v1995
    %v2420 = vld [vmem:[%s14] sm:$0x1]
    %v2421 = vld [vmem:[%s15] sm:$0x1]
    %2422 = vadd.xlane.f32.xlu0 %v2418
    %v2423 = vpop.xlane.xlu0 %2422
    %2424 = vadd.xlane.f32.xlu0 %v2419
    %v2425 = vpop.xlane.xlu0 %2424
    %v2426 = vmul.f32 %v2423, %v2013
    %v2427 = vmul.f32 %v2425, %v2013
    %v2428 = vsub.f32 %v2418, %v2426
    %v2429 = vsub.f32 %v2419, %v2427
    %v2430 = vmul.f32 %v2428, %v2428
    %v2431 = vmul.f32 %v2429, %v2429
    %2432 = vadd.xlane.f32.xlu0 %v2430
    %v2433 = vpop.xlane.xlu0 %2432
    %2434 = vadd.xlane.f32.xlu0 %v2431
    %v2435 = vpop.xlane.xlu0 %2434
    %v2436 = vmul.f32 %v2433, %v2013
    %v2437 = vmul.f32 %v2435, %v2013
    %v2438 = vadd.f32 %v2436, 1e-05
    %v2439 = vadd.f32 %v2437, 1e-05
    %v2440 = vrsqrt.pop %v2438
    %v2441 = vrsqrt.pop %v2439
    %v2442 = vmul.f32 %v2428, %v2440
    %v2443 = vmul.f32 %v2429, %v2441
    %v2445 = vlaneseq
    %v2446 = vshrl.u32 %v2445, 7
    %v2447 = vsub.s32 0, %v2446
    %v2448 = vrot.slane %v2420, %v2447
    %v2450 = vmul.f32 %v2442, %v2448
    %v2451 = vmul.f32 %v2443, %v2448
    %v2453 = vlaneseq
    %v2454 = vshrl.u32 %v2453, 7
    %v2455 = vsub.s32 0, %v2454
    %v2456 = vrot.slane %v2421, %v2455
    %v2458 = vadd.f32 %v2450, %v2456
    %v2459 = vadd.f32 %v2451, %v2456
    %2460 = vst [vmem:[#allocation13] sm:$0xff] %v2458
    %2461 = vst [vmem:[#allocation13 + $0x8] sm:$0xff] %v2459
    // Predicated region
    $region90: #{tpu_custom_call.1} parent=1 // pred_check
      _
    $region91: #{tpu_custom_call.1} parent=1 // pred_check_branch
      %2463 = sbr.rel (0) target = $region93
    $region92: #{tpu_custom_call.1} parent=1 // pred_region
      %s2465 = ssub.s32 256, 256
      %2466 = vsyncadd [#allocation4], %s2465
      %s2467 = sshll.u32 [#allocation13], 4
      %s2468 = int_to_ptr.vmem [resolvable:$true] %s2467
      %2473 = dma.vmem_to_hbm [thread:$0]  %s2468, 256, %s16, [#allocation4], 128, 128, 8
    $region93: #{tpu_custom_call.1} parent=1 // pred_fallthru
      _
    // Predicated region
    $region94: #{tpu_custom_call.1} parent=1 // pred_check
      _
    $region95: #{tpu_custom_call.1} parent=1 // pred_check_branch
      %2475 = sbr.rel (0) target = $region97
    $region96: #{tpu_custom_call.1} parent=1 // pred_region
      %2476 = dma.done [#allocation4], 256
    $region97: #{tpu_custom_call.1} parent=1 // pred_fallthru
      _
    %2477 = vsyncpa [#allocation3], 1
    %2478 = vsyncpa [#allocation6], 1
    %2479 = vsyncpa [#allocation9], 1
    %2480 = vsyncpa [#allocation12], 1
    %2481 = vsyncpa [#allocation4], 1

// kernel: tpu_custom_call.1
$region0: #{tpu_custom_call.1}
  #allocation0 [shape = 'u32[]', space=smem, size = 0x4, offset = 0x4, fixed_abs, tag = 'smem constant byte address 0x4 - core index']
  #allocation1 [shape = 'u32[144,128]{1,0:T(1,128)}', space=vmem, size = 0x12000, scoped, tag = 'internal scratch']
  %s0 = inlined_call_operand.hbm [shape: f32[2,8,128], index: 0, kind: input, shape index: {}]
  %s1 = inlined_call_operand.hbm [shape: f32[128,384], index: 1, kind: input, shape index: {}]
  %s2 = inlined_call_operand.hbm [shape: f32[128,128], index: 2, kind: input, shape index: {}]
  %s3 = inlined_call_operand.vmem [shape: f32[1,128], index: 3, kind: input, shape index: {}]
  %s4 = inlined_call_operand.hbm [shape: f32[1,128], index: 4, kind: input, shape index: {}]
  %s5 = inlined_call_operand.vmem [shape: f32[1,128], index: 5, kind: input, shape index: {}]
  %s6 = inlined_call_operand.vmem [shape: f32[1,128], index: 6, kind: input, shape index: {}]
  %s7 = inlined_call_operand.vmem [shape: f32[1,128], index: 7, kind: input, shape index: {}]
  %s8 = inlined_call_operand.hbm [shape: f32[128,256], index: 8, kind: input, shape index: {}]
  %s9 = inlined_call_operand.vmem [shape: f32[1,256], index: 9, kind: input, shape index: {}]
  %s10 = inlined_call_operand.vmem [shape: f32[1,256], index: 10, kind: input, shape index: {}]
  %s11 = inlined_call_operand.vmem [shape: f32[1,256], index: 11, kind: input, shape index: {}]
  %s12 = inlined_call_operand.hbm [shape: f32[256,128], index: 12, kind: input, shape index: {}]
  %s13 = inlined_call_operand.vmem [shape: f32[1,128], index: 13, kind: input, shape index: {}]
  %s14 = inlined_call_operand.vmem [shape: f32[1,128], index: 14, kind: input, shape index: {}]
  %s15 = inlined_call_operand.vmem [shape: f32[1,128], index: 15, kind: input, shape index: {}]
  %s16 = inlined_call_operand.hbm [shape: f32[2,8,128], index: 16, kind: output, shape index: {}]
  %s17 = sld [smem:[#allocation0]]
  $region98: #{tpu_custom_call.1} parent=0
    _
  %s19 = ssub.s32 1, %s17
  %s20 = scalar_select 0, %s19, %s17
  $region1: #{tpu_custom_call.1} parent=0
    #allocation2 [shape = 'u8[8192]{0}', space=vmem, size = 0x2000, scoped, tag = 'input window, operand 0, single buffered']
    #allocation3 [shape = 's32[1]{0}', space=sflag, size = 0x4, scoped, tag = 'scoped memory for tpu_custom_call.1']
    #allocation4 [shape = 's32[1]{0}', space=sflag, size = 0x4, scoped, tag = 'scoped memory for tpu_custom_call.1']
    #allocation5 [shape = 'u8[196608]{0}', space=vmem, size = 0x30000, scoped, tag = 'input window, operand 1, single buffered']
    #allocation6 [shape = 's32[1]{0}', space=sflag, size = 0x4, scoped, tag = 'scoped memory for tpu_custom_call.1']
    #allocation7 [shape = 'u8[65536]{0}', space=vmem, size = 0x10000, scoped, tag = 'input window, operand 2, single buffered']
    #allocation8 [shape = 'u8[512]{0}', space=vmem, size = 0x400, scoped, tag = 'input window, operand 4, single buffered']
    #allocation9 [shape = 's32[1]{0}', space=sflag, size = 0x4, scoped, tag = 'scoped memory for tpu_custom_call.1']
    #allocation10 [shape = 'u8[131072]{0}', space=vmem, size = 0x20000, scoped, tag = 'input window, operand 8, single buffered']
    #allocation11 [shape = 'u8[131072]{0}', space=vmem, size = 0x20000, scoped, tag = 'input window, operand 12, single buffered']
    #allocation12 [shape = 's32[1]{0}', space=sflag, size = 0x4, scoped, tag = 'scoped memory for tpu_custom_call.1']
    #allocation13 [shape = 'u8[8192]{0}', space=vmem, size = 0x2000, scoped, tag = 'output window, operand 0, single buffered']
    %21 = vsyncpa [#allocation3], 0
    %22 = vsyncpa [#allocation6], 0
    %23 = vsyncpa [#allocation9], 0
    %24 = vsyncpa [#allocation12], 0
    %25 = vsyncpa [#allocation4], 0
    // Predicated region
    $region2: #{tpu_custom_call.1} parent=1 // pred_check
      _
    $region3: #{tpu_custom_call.1} parent=1 // pred_check_branch
      %27 = sbr.rel (0) target = $region5
    $region4: #{tpu_custom_call.1} parent=1 // pred_region
      %s29 = ssub.s32 256, 256
      %30 = vsyncadd [#allocation3], %s29
      %s31 = sshll.u32 [#allocation2], 4
      %s32 = int_to_ptr.vmem [resolvable:$true] %s31
      %37 = dma.hbm_to_vmem [thread:$0]  %s0, 256, %s32, [#allocation3], 128, 128, 8
    $region5: #{tpu_custom_call.1} parent=1 // pred_fallthru
      _
    // Predicated region
    $region6: #{tpu_custom_call.1} parent=1 // pred_check
      _
    $region7: #{tpu_custom_call.1} parent=1 // pred_check_branch
      %39 = sbr.rel (0) target = $region9
    $region8: #{tpu_custom_call.1} parent=1 // pred_region
      %s41 = ssub.s32 6144, 6144
      %42 = vsyncadd [#allocation6], %s41
      %s43 = sshll.u32 [#allocation5], 4
      %s44 = int_to_ptr.vmem [resolvable:$true] %s43
      %49 = dma.hbm_to_vmem [thread:$0]  %s1, 6144, %s44, [#allocation6], 384, 384, 24
    $region9: #{tpu_custom_call.1} parent=1 // pred_fallthru
      _
    // Predicated region
    $region10: #{tpu_custom_call.1} parent=1 // pred_check
      _
    $region11: #{tpu_custom_call.1} parent=1 // pred_check_branch
      %51 = sbr.rel (0) target = $region13
    $region12: #{tpu_custom_call.1} parent=1 // pred_region
      %s53 = ssub.s32 2048, 2048
      %54 = vsyncadd [#allocation6], %s53
      %s55 = sshll.u32 [#allocation7], 4
      %s56 = int_to_ptr.vmem [resolvable:$true] %s55
      %61 = dma.hbm_to_vmem [thread:$0]  %s2, 2048, %s56, [#allocation6], 128, 128, 8
    $region13: #{tpu_custom_call.1} parent=1 // pred_fallthru
      _
    // Predicated region
    $region14: #{tpu_custom_call.1} parent=1 // pred_check
      _
    $region15: #{tpu_custom_call.1} parent=1 // pred_check_branch
      %63 = sbr.rel (0) target = $region17
    $region16: #{tpu_custom_call.1} parent=1 // pred_region
      _
    $region17: #{tpu_custom_call.1} parent=1 // pred_fallthru
      _
    // Predicated region
    $region18: #{tpu_custom_call.1} parent=1 // pred_check
      _
    $region19: #{tpu_custom_call.1} parent=1 // pred_check_branch
      %65 = sbr.rel (0) target = $region21
    $region20: #{tpu_custom_call.1} parent=1 // pred_region
      %s67 = ssub.s32 16, 16
      %68 = vsyncadd [#allocation9], %s67
      %s70 = sshll.u32 [#allocation8], 4
      %s71 = int_to_ptr.vmem [resolvable:$true] %s70
      %73 = dma.hbm_to_vmem [thread:$0]  %s4, 16, %s71, [#allocation9]
    $region21: #{tpu_custom_call.1} parent=1 // pred_fallthru
      _
    // Predicated region
    $region22: #{tpu_custom_call.1} parent=1 // pred_check
      _
    $region23: #{tpu_custom_call.1} parent=1 // pred_check_branch
      %75 = sbr.rel (0) target = $region25
    $region24: #{tpu_custom_call.1} parent=1 // pred_region
      _
    $region25: #{tpu_custom_call.1} parent=1 // pred_fallthru
      _
    // Predicated region
    $region26: #{tpu_custom_call.1} parent=1 // pred_check
      _
    $region27: #{tpu_custom_call.1} parent=1 // pred_check_branch
      %77 = sbr.rel (0) target = $region29
    $region28: #{tpu_custom_call.1} parent=1 // pred_region
      _
    $region29: #{tpu_custom_call.1} parent=1 // pred_fallthru
      _
    // Predicated region
    $region30: #{tpu_custom_call.1} parent=1 // pred_check
      _
    $region31: #{tpu_custom_call.1} parent=1 // pred_check_branch
      %79 = sbr.rel (0) target = $region33
    $region32: #{tpu_custom_call.1} parent=1 // pred_region
      _
    $region33: #{tpu_custom_call.1} parent=1 // pred_fallthru
      _
    // Predicated region
    $region34: #{tpu_custom_call.1} parent=1 // pred_check
      _
    $region35: #{tpu_custom_call.1} parent=1 // pred_check_branch
      %81 = sbr.rel (0) target = $region37
    $region36: #{tpu_custom_call.1} parent=1 // pred_region
      %s83 = ssub.s32 4096, 4096
      %84 = vsyncadd [#allocation9], %s83
      %s85 = sshll.u32 [#allocation10], 4
      %s86 = int_to_ptr.vmem [resolvable:$true] %s85
      %91 = dma.hbm_to_vmem [thread:$0]  %s8, 4096, %s86, [#allocation9], 256, 256, 16
    $region37: #{tpu_custom_call.1} parent=1 // pred_fallthru
      _
    // Predicated region
    $region38: #{tpu_custom_call.1} parent=1 // pred_check
      _
    $region39: #{tpu_custom_call.1} parent=1 // pred_check_branch
      %93 = sbr.rel (0) target = $region41
    $region40: #{tpu_custom_call.1} parent=1 // pred_region
      _
    $region41: #{tpu_custom_call.1} parent=1 // pred_fallthru
      _
    // Predicated region
    $region42: #{tpu_custom_call.1} parent=1 // pred_check
      _
    $region43: #{tpu_custom_call.1} parent=1 // pred_check_branch
      %95 = sbr.rel (0) target = $region45
    $region44: #{tpu_custom_call.1} parent=1 // pred_region
      _
    $region45: #{tpu_custom_call.1} parent=1 // pred_fallthru
      _
    // Predicated region
    $region46: #{tpu_custom_call.1} parent=1 // pred_check
      _
    $region47: #{tpu_custom_call.1} parent=1 // pred_check_branch
      %97 = sbr.rel (0) target = $region49
    $region48: #{tpu_custom_call.1} parent=1 // pred_region
      _
    $region49: #{tpu_custom_call.1} parent=1 // pred_fallthru
      _
    // Predicated region
    $region50: #{tpu_custom_call.1} parent=1 // pred_check
      _
    $region51: #{tpu_custom_call.1} parent=1 // pred_check_branch
      %99 = sbr.rel (0) target = $region53
    $region52: #{tpu_custom_call.1} parent=1 // pred_region
      %s101 = ssub.s32 4096, 4096
      %102 = vsyncadd [#allocation12], %s101
      %s103 = sshll.u32 [#allocation11], 4
      %s104 = int_to_ptr.vmem [resolvable:$true] %s103
      %109 = dma.hbm_to_vmem [thread:$0]  %s12, 4096, %s104, [#allocation12], 128, 128, 8
    $region53: #{tpu_custom_call.1} parent=1 // pred_fallthru
      _
    // Predicated region
    $region54: #{tpu_custom_call.1} parent=1 // pred_check
      _
    $region55: #{tpu_custom_call.1} parent=1 // pred_check_branch
      %111 = sbr.rel (0) target = $region57
    $region56: #{tpu_custom_call.1} parent=1 // pred_region
      _
    $region57: #{tpu_custom_call.1} parent=1 // pred_fallthru
      _
    // Predicated region
    $region58: #{tpu_custom_call.1} parent=1 // pred_check
      _
    $region59: #{tpu_custom_call.1} parent=1 // pred_check_branch
      %113 = sbr.rel (0) target = $region61
    $region60: #{tpu_custom_call.1} parent=1 // pred_region
      _
    $region61: #{tpu_custom_call.1} parent=1 // pred_fallthru
      _
    // Predicated region
    $region62: #{tpu_custom_call.1} parent=1 // pred_check
      _
    $region63: #{tpu_custom_call.1} parent=1 // pred_check_branch
      %115 = sbr.rel (0) target = $region65
    $region64: #{tpu_custom_call.1} parent=1 // pred_region
      _
    $region65: #{tpu_custom_call.1} parent=1 // pred_fallthru
      _
    // Predicated region
    $region66: #{tpu_custom_call.1} parent=1 // pred_check
      _
    $region67: #{tpu_custom_call.1} parent=1 // pred_check_branch
      %117 = sbr.rel (0) target = $region69
    $region68: #{tpu_custom_call.1} parent=1 // pred_region
      %118 = dma.done [#allocation3], 256
    $region69: #{tpu_custom_call.1} parent=1 // pred_fallthru
      _
    // Predicated region
    $region70: #{tpu_custom_call.1} parent=1 // pred_check
      _
    $region71: #{tpu_custom_call.1} parent=1 // pred_check_branch
      %120 = sbr.rel (0) target = $region73
    $region72: #{tpu_custom_call.1} parent=1 // pred_region
      %121 = dma.done [#allocation6], 6144
    $region73: #{tpu_custom_call.1} parent=1 // pred_fallthru
      _
    // Predicated region
    $region74: #{tpu_custom_call.1} parent=1 // pred_check
      _
    $region75: #{tpu_custom_call.1} parent=1 // pred_check_branch
      %123 = sbr.rel (0) target = $region77
    $region76: #{tpu_custom_call.1} parent=1 // pred_region
      %124 = dma.done [#allocation6], 2048
    $region77: #{tpu_custom_call.1} parent=1 // pred_fallthru
      _
    // Predicated region
    $region78: #{tpu_custom_call.1} parent=1 // pred_check
      _
    $region79: #{tpu_custom_call.1} parent=1 // pred_check_branch
      %126 = sbr.rel (0) target = $region81
    $region80: #{tpu_custom_call.1} parent=1 // pred_region
      %127 = dma.done [#allocation9], 16
    $region81: #{tpu_custom_call.1} parent=1 // pred_fallthru
      _
    // Predicated region
    $region82: #{tpu_custom_call.1} parent=1 // pred_check
      _
    $region83: #{tpu_custom_call.1} parent=1 // pred_check_branch
      %129 = sbr.rel (0) target = $region85
    $region84: #{tpu_custom_call.1} parent=1 // pred_region
      %130 = dma.done [#allocation9], 4096
    $region85: #{tpu_custom_call.1} parent=1 // pred_fallthru
      _
    // Predicated region
    $region86: #{tpu_custom_call.1} parent=1 // pred_check
      _
    $region87: #{tpu_custom_call.1} parent=1 // pred_check_branch
      %132 = sbr.rel (0) target = $region89
    $region88: #{tpu_custom_call.1} parent=1 // pred_region
      %133 = dma.done [#allocation12], 4096
    $region89: #{tpu_custom_call.1} parent=1 // pred_fallthru
      _
    %v134 = vld [vmem:[#allocation2] sm:$0xff]
    %v135 = vld [vmem:[#allocation2 + $0x8] sm:$0xff]
    %v136 = vld [vmem:[#allocation5] sm:$0xff]
    %v137 = vld [vmem:[#allocation5 + $0x8] sm:$0xff]
    %v138 = vld [vmem:[#allocation5 + $0x10] sm:$0xff]
    %v139 = vld [vmem:[#allocation5 + $0x18] sm:$0xff]
    %v140 = vld [vmem:[#allocation5 + $0x20] sm:$0xff]
    %v141 = vld [vmem:[#allocation5 + $0x28] sm:$0xff]
    %v142 = vld [vmem:[#allocation5 + $0x30] sm:$0xff]
    %v143 = vld [vmem:[#allocation5 + $0x38] sm:$0xff]
    %v144 = vld [vmem:[#allocation5 + $0x40] sm:$0xff]
    %v145 = vld [vmem:[#allocation5 + $0x48] sm:$0xff]
    %v146 = vld [vmem:[#allocation5 + $0x50] sm:$0xff]
    %v147 = vld [vmem:[#allocation5 + $0x58] sm:$0xff]
    %v148 = vld [vmem:[#allocation5 + $0x60] sm:$0xff]
    %v149 = vld [vmem:[#allocation5 + $0x68] sm:$0xff]
    %v150 = vld [vmem:[#allocation5 + $0x70] sm:$0xff]
    %v151 = vld [vmem:[#allocation5 + $0x78] sm:$0xff]
    %v152 = vld [vmem:[#allocation5 + $0x80] sm:$0xff]
    %v153 = vld [vmem:[#allocation5 + $0x88] sm:$0xff]
    %v154 = vld [vmem:[#allocation5 + $0x90] sm:$0xff]
    %v155 = vld [vmem:[#allocation5 + $0x98] sm:$0xff]
    %v156 = vld [vmem:[#allocation5 + $0xa0] sm:$0xff]
    %v157 = vld [vmem:[#allocation5 + $0xa8] sm:$0xff]
    %v158 = vld [vmem:[#allocation5 + $0xb0] sm:$0xff]
    %v159 = vld [vmem:[#allocation5 + $0xb8] sm:$0xff]
    %v160 = vld [vmem:[#allocation5 + $0xc0] sm:$0xff]
    %v161 = vld [vmem:[#allocation5 + $0xc8] sm:$0xff]
    %v162 = vld [vmem:[#allocation5 + $0xd0] sm:$0xff]
    %v163 = vld [vmem:[#allocation5 + $0xd8] sm:$0xff]
    %v164 = vld [vmem:[#allocation5 + $0xe0] sm:$0xff]
    %v165 = vld [vmem:[#allocation5 + $0xe8] sm:$0xff]
    %v166 = vld [vmem:[#allocation5 + $0xf0] sm:$0xff]
    %v167 = vld [vmem:[#allocation5 + $0xf8] sm:$0xff]
    %v168 = vld [vmem:[#allocation5 + $0x100] sm:$0xff]
    %v169 = vld [vmem:[#allocation5 + $0x108] sm:$0xff]
    %v170 = vld [vmem:[#allocation5 + $0x110] sm:$0xff]
    %v171 = vld [vmem:[#allocation5 + $0x118] sm:$0xff]
    %v172 = vld [vmem:[#allocation5 + $0x120] sm:$0xff]
    %v173 = vld [vmem:[#allocation5 + $0x128] sm:$0xff]
    %v174 = vld [vmem:[#allocation5 + $0x130] sm:$0xff]
    %v175 = vld [vmem:[#allocation5 + $0x138] sm:$0xff]
    %v176 = vld [vmem:[#allocation5 + $0x140] sm:$0xff]
    %v177 = vld [vmem:[#allocation5 + $0x148] sm:$0xff]
    %v178 = vld [vmem:[#allocation5 + $0x150] sm:$0xff]
    %v179 = vld [vmem:[#allocation5 + $0x158] sm:$0xff]
    %v180 = vld [vmem:[#allocation5 + $0x160] sm:$0xff]
    %v181 = vld [vmem:[#allocation5 + $0x168] sm:$0xff]
    %v182 = vld [vmem:[#allocation5 + $0x170] sm:$0xff]
    %v183 = vld [vmem:[#allocation5 + $0x178] sm:$0xff]
    %184 = vmatprep.subr.mxu0 %v182
    %185 = vmatpush1.msra.mxu0 %v181
    %186 = vmatprep.subr.mxu0 %v179
    %187 = vmatpush1.msra.mxu0 %v178
    %188 = vmatprep.subr.mxu0 %v176
    %189 = vmatpush1.msra.mxu0 %v175
    %190 = vmatprep.subr.mxu0 %v173
    %191 = vmatpush1.msra.mxu0 %v172
    %192 = vmatprep.subr.mxu0 %v170
    %193 = vmatpush1.msra.mxu0 %v169
    %194 = vmatprep.subr.mxu0 %v167
    %195 = vmatpush1.msra.mxu0 %v166
    %196 = vmatprep.subr.mxu0 %v164
    %197 = vmatpush1.msra.mxu0 %v163
    %198 = vmatprep.subr.mxu0 %v161
    %199 = vmatpush1.msra.mxu0 %v160
    %200 = vmatprep.subr.mxu0 %v158
    %201 = vmatpush1.msra.mxu0 %v157
    %202 = vmatprep.subr.mxu0 %v155
    %203 = vmatpush1.msra.mxu0 %v154
    %204 = vmatprep.subr.mxu0 %v152
    %205 = vmatpush1.msra.mxu0 %v151
    %206 = vmatprep.subr.mxu0 %v149
    %207 = vmatpush1.msra.mxu0 %v148
    %208 = vmatprep.subr.mxu0 %v146
    %209 = vmatpush1.msra.mxu0 %v145
    %210 = vmatprep.subr.mxu0 %v143
    %211 = vmatpush1.msra.mxu0 %v142
    %212 = vmatprep.subr.mxu0 %v140
    %213 = vmatpush1.msra.mxu0 %v139
    %214 = vmatprep.subr.mxu0 %v137
    %215 = vmatpush1.msra.mxu0 %v136
    %216 = vmatprep.subr.mxu0 0.0
    %217 = vmatpush2.msra.mxu0 0.0
    %218 = vmatprep.subr.mxu0 0.0
    %219 = vmatpush2.msra.mxu0 0.0
    %220 = vmatprep.subr.mxu0 0.0
    %221 = vmatpush2.msra.mxu0 0.0
    %222 = vmatprep.subr.mxu0 0.0
    %223 = vmatpush2.msra.mxu0 0.0
    %224 = vmatprep.subr.mxu0 0.0
    %225 = vmatpush2.msra.mxu0 0.0
    %226 = vmatprep.subr.mxu0 0.0
    %227 = vmatpush2.msra.mxu0 0.0
    %228 = vmatprep.subr.mxu0 0.0
    %229 = vmatpush2.msra.mxu0 0.0
    %230 = vmatprep.subr.mxu0 0.0
    %231 = vmatpush2.msra.mxu0 0.0
    %232 = vmatprep.subr.mxu0 0.0
    %233 = vmatpush2.msra.mxu0 0.0
    %234 = vmatprep.subr.mxu0 0.0
    %235 = vmatpush2.msra.mxu0 0.0
    %236 = vmatprep.subr.mxu0 0.0
    %237 = vmatpush2.msra.mxu0 0.0
    %238 = vmatprep.subr.mxu0 0.0
    %239 = vmatpush2.msra.mxu0 0.0
    %240 = vmatprep.subr.mxu0 0.0
    %241 = vmatpush2.msra.mxu0 0.0
    %242 = vmatprep.subr.mxu0 0.0
    %243 = vmatpush2.msra.mxu0 0.0
    %244 = vmatprep.subr.mxu0 0.0
    %245 = vmatpush2.msra.mxu0 0.0
    %246 = vmatprep.subr.mxu0 0.0
    %247 = vmatpush2.msra.mxu0 0.0
    %248 = vmatprep.mubr.f32.mxu0 0.0
    %249 = vmatmul.mubr.f32.gmra.mxu0 %v134
    %v250 = vpop.f32.mrf.mxu0
    %v251 = vadd.f32 0.0, %v250
    %v252 = vpop.f32.mrf.mxu0
    %v253 = vadd.f32 0.0, %v252
    %254 = vmatprep.mubr.f32.mxu0 0.0
    %255 = vmatmul.mubr.f32.gmra.mxu0 %v135
    %v256 = vpop.f32.mrf.mxu0
    %v257 = vadd.f32 0.0, %v256
    %v258 = vpop.f32.mrf.mxu0
    %v259 = vadd.f32 0.0, %v258
    %260 = vdwg.mxu0
    %261 = vmatprep.subr.mxu0 0.0
    %262 = vmatpush1.msra.mxu0 %v183
    %263 = vmatprep.subr.mxu0 0.0
    %264 = vmatpush1.msra.mxu0 %v180
    %265 = vmatprep.subr.mxu0 0.0
    %266 = vmatpush1.msra.mxu0 %v177
    %267 = vmatprep.subr.mxu0 0.0
    %268 = vmatpush1.msra.mxu0 %v174
    %269 = vmatprep.subr.mxu0 0.0
    %270 = vmatpush1.msra.mxu0 %v171
    %271 = vmatprep.subr.mxu0 0.0
    %272 = vmatpush1.msra.mxu0 %v168
    %273 = vmatprep.subr.mxu0 0.0
    %274 = vmatpush1.msra.mxu0 %v165
    %275 = vmatprep.subr.mxu0 0.0
    %276 = vmatpush1.msra.mxu0 %v162
    %277 = vmatprep.subr.mxu0 0.0
    %278 = vmatpush1.msra.mxu0 %v159
    %279 = vmatprep.subr.mxu0 0.0
    %280 = vmatpush1.msra.mxu0 %v156
    %281 = vmatprep.subr.mxu0 0.0
    %282 = vmatpush1.msra.mxu0 %v153
    %283 = vmatprep.subr.mxu0 0.0
    %284 = vmatpush1.msra.mxu0 %v150
    %285 = vmatprep.subr.mxu0 0.0
    %286 = vmatpush1.msra.mxu0 %v147
    %287 = vmatprep.subr.mxu0 0.0
    %288 = vmatpush1.msra.mxu0 %v144
    %289 = vmatprep.subr.mxu0 0.0
    %290 = vmatpush1.msra.mxu0 %v141
    %291 = vmatprep.subr.mxu0 0.0
    %292 = vmatpush1.msra.mxu0 %v138
    %293 = vmatprep.subr.mxu0 0.0
    %294 = vmatpush2.msra.mxu0 0.0
    %295 = vmatprep.subr.mxu0 0.0
    %296 = vmatpush2.msra.mxu0 0.0
    %297 = vmatprep.subr.mxu0 0.0
    %298 = vmatpush2.msra.mxu0 0.0
    %299 = vmatprep.subr.mxu0 0.0
    %300 = vmatpush2.msra.mxu0 0.0
    %301 = vmatprep.subr.mxu0 0.0
    %302 = vmatpush2.msra.mxu0 0.0
    %303 = vmatprep.subr.mxu0 0.0
    %304 = vmatpush2.msra.mxu0 0.0
    %305 = vmatprep.subr.mxu0 0.0
    %306 = vmatpush2.msra.mxu0 0.0
    %307 = vmatprep.subr.mxu0 0.0
    %308 = vmatpush2.msra.mxu0 0.0
    %309 = vmatprep.subr.mxu0 0.0
    %310 = vmatpush2.msra.mxu0 0.0
    %311 = vmatprep.subr.mxu0 0.0
    %312 = vmatpush2.msra.mxu0 0.0
    %313 = vmatprep.subr.mxu0 0.0
    %314 = vmatpush2.msra.mxu0 0.0
    %315 = vmatprep.subr.mxu0 0.0
    %316 = vmatpush2.msra.mxu0 0.0
    %317 = vmatprep.subr.mxu0 0.0
    %318 = vmatpush2.msra.mxu0 0.0
    %319 = vmatprep.subr.mxu0 0.0
    %320 = vmatpush2.msra.mxu0 0.0
    %321 = vmatprep.subr.mxu0 0.0
    %322 = vmatpush2.msra.mxu0 0.0
    %323 = vmatprep.subr.mxu0 0.0
    %324 = vmatpush2.msra.mxu0 0.0
    %325 = vmatprep.mubr.f32.mxu0 0.0
    %326 = vmatmul.mubr.f32.gmra.mxu0 %v134
    %v327 = vpop.f32.mrf.mxu0
    %v328 = vadd.f32 0.0, %v327
    %v329 = vpop.f32.mrf.mxu0
    %330 = vmatprep.mubr.f32.mxu0 0.0
    %331 = vmatmul.mubr.f32.gmra.mxu0 %v135
    %v332 = vpop.f32.mrf.mxu0
    %v333 = vadd.f32 0.0, %v332
    %v334 = vpop.f32.mrf.mxu0
    %335 = vdwg.mxu0
    %vm336 = vcmask 261120
    %v338 = vsel %vm336, %v251, 0
    %v341 = vsel %vm336, %v253, 0
    %343 = vmatprep.subr.mxu0 0.0
    %344 = vmatpush1.xpose.msra.mxu0 0.0
    %345 = vmatprep.subr.mxu0 0.0
    %346 = vmatpush1.xpose.msra.mxu0 0.0
    %347 = vmatprep.subr.mxu0 0.0
    %348 = vmatpush1.xpose.msra.mxu0 0.0
    %349 = vmatprep.subr.mxu0 0.0
    %350 = vmatpush1.xpose.msra.mxu0 0.0
    %351 = vmatprep.subr.mxu0 0.0
    %352 = vmatpush1.xpose.msra.mxu0 0.0
    %353 = vmatprep.subr.mxu0 0.0
    %354 = vmatpush1.xpose.msra.mxu0 0.0
    %355 = vmatprep.subr.mxu0 0.0
    %356 = vmatpush1.xpose.msra.mxu0 0.0
    %357 = vmatprep.subr.mxu0 0.0
    %358 = vmatpush1.xpose.msra.mxu0 0.0
    %359 = vmatprep.subr.mxu0 0.0
    %360 = vmatpush1.xpose.msra.mxu0 0.0
    %361 = vmatprep.subr.mxu0 0.0
    %362 = vmatpush1.xpose.msra.mxu0 0.0
    %363 = vmatprep.subr.mxu0 0.0
    %364 = vmatpush1.xpose.msra.mxu0 0.0
    %365 = vmatprep.subr.mxu0 0.0
    %366 = vmatpush1.xpose.msra.mxu0 0.0
    %367 = vmatprep.subr.mxu0 0.0
    %368 = vmatpush1.xpose.msra.mxu0 0.0
    %369 = vmatprep.subr.mxu0 0.0
    %370 = vmatpush1.xpose.msra.mxu0 0.0
    %371 = vmatprep.subr.mxu0 0.0
    %372 = vmatpush1.xpose.msra.mxu0 0.0
    %373 = vmatprep.subr.mxu0 0.0
    %374 = vmatpush1.xpose.msra.mxu0 %v341
    %375 = vmatprep.subr.mxu0 0.0
    %376 = vmatpush2.xpose.msra.mxu0 0.0
    %377 = vmatprep.subr.mxu0 0.0
    %378 = vmatpush2.xpose.msra.mxu0 0.0
    %379 = vmatprep.subr.mxu0 0.0
    %380 = vmatpush2.xpose.msra.mxu0 0.0
    %381 = vmatprep.subr.mxu0 0.0
    %382 = vmatpush2.xpose.msra.mxu0 0.0
    %383 = vmatprep.subr.mxu0 0.0
    %384 = vmatpush2.xpose.msra.mxu0 0.0
    %385 = vmatprep.subr.mxu0 0.0
    %386 = vmatpush2.xpose.msra.mxu0 0.0
    %387 = vmatprep.subr.mxu0 0.0
    %388 = vmatpush2.xpose.msra.mxu0 0.0
    %389 = vmatprep.subr.mxu0 0.0
    %390 = vmatpush2.xpose.msra.mxu0 0.0
    %391 = vmatprep.subr.mxu0 0.0
    %392 = vmatpush2.xpose.msra.mxu0 0.0
    %393 = vmatprep.subr.mxu0 0.0
    %394 = vmatpush2.xpose.msra.mxu0 0.0
    %395 = vmatprep.subr.mxu0 0.0
    %396 = vmatpush2.xpose.msra.mxu0 0.0
    %397 = vmatprep.subr.mxu0 0.0
    %398 = vmatpush2.xpose.msra.mxu0 0.0
    %399 = vmatprep.subr.mxu0 0.0
    %400 = vmatpush2.xpose.msra.mxu0 0.0
    %401 = vmatprep.subr.mxu0 0.0
    %402 = vmatpush2.xpose.msra.mxu0 0.0
    %403 = vmatprep.subr.mxu0 0.0
    %404 = vmatpush2.xpose.msra.mxu0 0.0
    %405 = vmatprep.subr.mxu0 0.0
    %406 = vmatpush2.xpose.msra.mxu0 0.0
    %407 = vmatprep.mubr.f32.mxu0 0.0
    %408 = vmatmul.mubr.f32.gmra.mxu0 %v338
    %v409 = vpop.f32.mrf.mxu0
    %v410 = vadd.f32 0.0, %v409
    %v411 = vpop.f32.mrf.mxu0
    %412 = vdwg.mxu0
    %v414 = vsel %vm336, %v257, 0
    %v417 = vsel %vm336, %v259, 0
    %419 = vmatprep.subr.mxu0 0.0
    %420 = vmatpush1.xpose.msra.mxu0 0.0
    %421 = vmatprep.subr.mxu0 0.0
    %422 = vmatpush1.xpose.msra.mxu0 0.0
    %423 = vmatprep.subr.mxu0 0.0
    %424 = vmatpush1.xpose.msra.mxu0 0.0
    %425 = vmatprep.subr.mxu0 0.0
    %426 = vmatpush1.xpose.msra.mxu0 0.0
    %427 = vmatprep.subr.mxu0 0.0
    %428 = vmatpush1.xpose.msra.mxu0 0.0
    %429 = vmatprep.subr.mxu0 0.0
    %430 = vmatpush1.xpose.msra.mxu0 0.0
    %431 = vmatprep.subr.mxu0 0.0
    %432 = vmatpush1.xpose.msra.mxu0 0.0
    %433 = vmatprep.subr.mxu0 0.0
    %434 = vmatpush1.xpose.msra.mxu0 0.0
    %435 = vmatprep.subr.mxu0 0.0
    %436 = vmatpush1.xpose.msra.mxu0 0.0
    %437 = vmatprep.subr.mxu0 0.0
    %438 = vmatpush1.xpose.msra.mxu0 0.0
    %439 = vmatprep.subr.mxu0 0.0
    %440 = vmatpush1.xpose.msra.mxu0 0.0
    %441 = vmatprep.subr.mxu0 0.0
    %442 = vmatpush1.xpose.msra.mxu0 0.0
    %443 = vmatprep.subr.mxu0 0.0
    %444 = vmatpush1.xpose.msra.mxu0 0.0
    %445 = vmatprep.subr.mxu0 0.0
    %446 = vmatpush1.xpose.msra.mxu0 0.0
    %447 = vmatprep.subr.mxu0 0.0
    %448 = vmatpush1.xpose.msra.mxu0 0.0
    %449 = vmatprep.subr.mxu0 0.0
    %450 = vmatpush1.xpose.msra.mxu0 %v417
    %451 = vmatprep.subr.mxu0 0.0
    %452 = vmatpush2.xpose.msra.mxu0 0.0
    %453 = vmatprep.subr.mxu0 0.0
    %454 = vmatpush2.xpose.msra.mxu0 0.0
    %455 = vmatprep.subr.mxu0 0.0
    %456 = vmatpush2.xpose.msra.mxu0 0.0
    %457 = vmatprep.subr.mxu0 0.0
    %458 = vmatpush2.xpose.msra.mxu0 0.0
    %459 = vmatprep.subr.mxu0 0.0
    %460 = vmatpush2.xpose.msra.mxu0 0.0
    %461 = vmatprep.subr.mxu0 0.0
    %462 = vmatpush2.xpose.msra.mxu0 0.0
    %463 = vmatprep.subr.mxu0 0.0
    %464 = vmatpush2.xpose.msra.mxu0 0.0
    %465 = vmatprep.subr.mxu0 0.0
    %466 = vmatpush2.xpose.msra.mxu0 0.0
    %467 = vmatprep.subr.mxu0 0.0
    %468 = vmatpush2.xpose.msra.mxu0 0.0
    %469 = vmatprep.subr.mxu0 0.0
    %470 = vmatpush2.xpose.msra.mxu0 0.0
    %471 = vmatprep.subr.mxu0 0.0
    %472 = vmatpush2.xpose.msra.mxu0 0.0
    %473 = vmatprep.subr.mxu0 0.0
    %474 = vmatpush2.xpose.msra.mxu0 0.0
    %475 = vmatprep.subr.mxu0 0.0
    %476 = vmatpush2.xpose.msra.mxu0 0.0
    %477 = vmatprep.subr.mxu0 0.0
    %478 = vmatpush2.xpose.msra.mxu0 0.0
    %479 = vmatprep.subr.mxu0 0.0
    %480 = vmatpush2.xpose.msra.mxu0 0.0
    %481 = vmatprep.subr.mxu0 0.0
    %482 = vmatpush2.xpose.msra.mxu0 0.0
    %483 = vmatprep.mubr.f32.mxu0 0.0
    %484 = vmatmul.mubr.f32.gmra.mxu0 %v414
    %v485 = vpop.f32.mrf.mxu0
    %v486 = vadd.f32 0.0, %v485
    %v487 = vpop.f32.mrf.mxu0
    %488 = vdwg.mxu0
    %vm489 = vcmask 64512
    %v490 = vsel %vm489, %v410, -inf
    %491 = vmax.xlane.f32.xlu0 %v490
    %v492 = vpop.xlane.xlu0 %491
    %v493 = vsel %vm489, %v486, -inf
    %494 = vmax.xlane.f32.xlu0 %v493
    %v495 = vpop.xlane.xlu0 %494
    %v496 = vsub.f32 %v410, %v492
    %v497 = vsub.f32 %v486, %v495
    %v498 = vmul.f32 %v496, 1.442695
    %v499 = vpow.pop %v498
    %v500 = vmul.f32 %v497, 1.442695
    %v501 = vpow.pop %v500
    %v502 = vsel %vm489, %v499, 0.0
    %503 = vadd.xlane.f32.xlu0 %v502
    %v504 = vpop.xlane.xlu0 %503
    %v505 = vsel %vm489, %v501, 0.0
    %506 = vadd.xlane.f32.xlu0 %v505
    %v507 = vpop.xlane.xlu0 %506
    %v509 = vsel %vm489, %v499, 0
    %511 = vmatprep.subr.mxu0 0.0
    %512 = vmatpush1.msra.mxu0 0.0
    %513 = vmatprep.subr.mxu0 0.0
    %514 = vmatpush1.msra.mxu0 0.0
    %515 = vmatprep.subr.mxu0 0.0
    %516 = vmatpush1.msra.mxu0 0.0
    %517 = vmatprep.subr.mxu0 0.0
    %518 = vmatpush1.msra.mxu0 0.0
    %519 = vmatprep.subr.mxu0 0.0
    %520 = vmatpush1.msra.mxu0 0.0
    %521 = vmatprep.subr.mxu0 0.0
    %522 = vmatpush1.msra.mxu0 0.0
    %523 = vmatprep.subr.mxu0 0.0
    %524 = vmatpush1.msra.mxu0 0.0
    %525 = vmatprep.subr.mxu0 0.0
    %526 = vmatpush1.msra.mxu0 0.0
    %527 = vmatprep.subr.mxu0 0.0
    %528 = vmatpush1.msra.mxu0 0.0
    %529 = vmatprep.subr.mxu0 0.0
    %530 = vmatpush1.msra.mxu0 0.0
    %531 = vmatprep.subr.mxu0 0.0
    %532 = vmatpush1.msra.mxu0 0.0
    %533 = vmatprep.subr.mxu0 0.0
    %534 = vmatpush1.msra.mxu0 0.0
    %535 = vmatprep.subr.mxu0 0.0
    %536 = vmatpush1.msra.mxu0 0.0
    %537 = vmatprep.subr.mxu0 0.0
    %538 = vmatpush1.msra.mxu0 0.0
    %539 = vmatprep.subr.mxu0 0.0
    %540 = vmatpush1.msra.mxu0 0.0
    %541 = vmatprep.subr.mxu0 0.0
    %542 = vmatpush1.msra.mxu0 %v328
    %543 = vmatprep.subr.mxu0 0.0
    %544 = vmatpush2.msra.mxu0 0.0
    %545 = vmatprep.subr.mxu0 0.0
    %546 = vmatpush2.msra.mxu0 0.0
    %547 = vmatprep.subr.mxu0 0.0
    %548 = vmatpush2.msra.mxu0 0.0
    %549 = vmatprep.subr.mxu0 0.0
    %550 = vmatpush2.msra.mxu0 0.0
    %551 = vmatprep.subr.mxu0 0.0
    %552 = vmatpush2.msra.mxu0 0.0
    %553 = vmatprep.subr.mxu0 0.0
    %554 = vmatpush2.msra.mxu0 0.0
    %555 = vmatprep.subr.mxu0 0.0
    %556 = vmatpush2.msra.mxu0 0.0
    %557 = vmatprep.subr.mxu0 0.0
    %558 = vmatpush2.msra.mxu0 0.0
    %559 = vmatprep.subr.mxu0 0.0
    %560 = vmatpush2.msra.mxu0 0.0
    %561 = vmatprep.subr.mxu0 0.0
    %562 = vmatpush2.msra.mxu0 0.0
    %563 = vmatprep.subr.mxu0 0.0
    %564 = vmatpush2.msra.mxu0 0.0
    %565 = vmatprep.subr.mxu0 0.0
    %566 = vmatpush2.msra.mxu0 0.0
    %567 = vmatprep.subr.mxu0 0.0
    %568 = vmatpush2.msra.mxu0 0.0
    %569 = vmatprep.subr.mxu0 0.0
    %570 = vmatpush2.msra.mxu0 0.0
    %571 = vmatprep.subr.mxu0 0.0
    %572 = vmatpush2.msra.mxu0 0.0
    %573 = vmatprep.subr.mxu0 0.0
    %574 = vmatpush2.msra.mxu0 0.0
    %575 = vmatprep.mubr.f32.mxu0 0.0
    %576 = vmatmul.mubr.f32.gmra.mxu0 %v509
    %v577 = vpop.f32.mrf.mxu0
    %v578 = vadd.f32 0.0, %v577
    %v579 = vpop.f32.mrf.mxu0
    %580 = vdwg.mxu0
    %v582 = vsel %vm489, %v501, 0
    %584 = vmatprep.subr.mxu0 0.0
    %585 = vmatpush1.msra.mxu0 0.0
    %586 = vmatprep.subr.mxu0 0.0
    %587 = vmatpush1.msra.mxu0 0.0
    %588 = vmatprep.subr.mxu0 0.0
    %589 = vmatpush1.msra.mxu0 0.0
    %590 = vmatprep.subr.mxu0 0.0
    %591 = vmatpush1.msra.mxu0 0.0
    %592 = vmatprep.subr.mxu0 0.0
    %593 = vmatpush1.msra.mxu0 0.0
    %594 = vmatprep.subr.mxu0 0.0
    %595 = vmatpush1.msra.mxu0 0.0
    %596 = vmatprep.subr.mxu0 0.0
    %597 = vmatpush1.msra.mxu0 0.0
    %598 = vmatprep.subr.mxu0 0.0
    %599 = vmatpush1.msra.mxu0 0.0
    %600 = vmatprep.subr.mxu0 0.0
    %601 = vmatpush1.msra.mxu0 0.0
    %602 = vmatprep.subr.mxu0 0.0
    %603 = vmatpush1.msra.mxu0 0.0
    %604 = vmatprep.subr.mxu0 0.0
    %605 = vmatpush1.msra.mxu0 0.0
    %606 = vmatprep.subr.mxu0 0.0
    %607 = vmatpush1.msra.mxu0 0.0
    %608 = vmatprep.subr.mxu0 0.0
    %609 = vmatpush1.msra.mxu0 0.0
    %610 = vmatprep.subr.mxu0 0.0
    %611 = vmatpush1.msra.mxu0 0.0
    %612 = vmatprep.subr.mxu0 0.0
    %613 = vmatpush1.msra.mxu0 0.0
    %614 = vmatprep.subr.mxu0 0.0
    %615 = vmatpush1.msra.mxu0 %v333
    %616 = vmatprep.subr.mxu0 0.0
    %617 = vmatpush2.msra.mxu0 0.0
    %618 = vmatprep.subr.mxu0 0.0
    %619 = vmatpush2.msra.mxu0 0.0
    %620 = vmatprep.subr.mxu0 0.0
    %621 = vmatpush2.msra.mxu0 0.0
    %622 = vmatprep.subr.mxu0 0.0
    %623 = vmatpush2.msra.mxu0 0.0
    %624 = vmatprep.subr.mxu0 0.0
    %625 = vmatpush2.msra.mxu0 0.0
    %626 = vmatprep.subr.mxu0 0.0
    %627 = vmatpush2.msra.mxu0 0.0
    %628 = vmatprep.subr.mxu0 0.0
    %629 = vmatpush2.msra.mxu0 0.0
    %630 = vmatprep.subr.mxu0 0.0
    %631 = vmatpush2.msra.mxu0 0.0
    %632 = vmatprep.subr.mxu0 0.0
    %633 = vmatpush2.msra.mxu0 0.0
    %634 = vmatprep.subr.mxu0 0.0
    %635 = vmatpush2.msra.mxu0 0.0
    %636 = vmatprep.subr.mxu0 0.0
    %637 = vmatpush2.msra.mxu0 0.0
    %638 = vmatprep.subr.mxu0 0.0
    %639 = vmatpush2.msra.mxu0 0.0
    %640 = vmatprep.subr.mxu0 0.0
    %641 = vmatpush2.msra.mxu0 0.0
    %642 = vmatprep.subr.mxu0 0.0
    %643 = vmatpush2.msra.mxu0 0.0
    %644 = vmatprep.subr.mxu0 0.0
    %645 = vmatpush2.msra.mxu0 0.0
    %646 = vmatprep.subr.mxu0 0.0
    %647 = vmatpush2.msra.mxu0 0.0
    %648 = vmatprep.mubr.f32.mxu0 0.0
    %649 = vmatmul.mubr.f32.gmra.mxu0 %v582
    %v650 = vpop.f32.mrf.mxu0
    %v651 = vadd.f32 0.0, %v650
    %v652 = vpop.f32.mrf.mxu0
    %653 = vdwg.mxu0
    %v654 = vrcp.pop %v504
    %v655 = vmul.f32 %v578, %v654
    %v656 = vrcp.pop %v507
    %v657 = vmul.f32 %v651, %v656
    %v658 = vld [vmem:[#allocation7] sm:$0xff]
    %v659 = vld [vmem:[#allocation7 + $0x8] sm:$0xff]
    %v660 = vld [vmem:[#allocation7 + $0x10] sm:$0xff]
    %v661 = vld [vmem:[#allocation7 + $0x18] sm:$0xff]
    %662 = vrot.lane.b32.xlu0 %v251, 96
    %v663 = vpop.permute.xlu0 %662
    %664 = vrot.lane.b32.xlu0 %v253, 96
    %v665 = vpop.permute.xlu0 %664
    %v666 = vsel %vm336, %v663, 0
    %v668 = vsel %vm336, %v665, 0
    %670 = vmatprep.subr.mxu0 0.0
    %671 = vmatpush1.xpose.msra.mxu0 0.0
    %672 = vmatprep.subr.mxu0 0.0
    %673 = vmatpush1.xpose.msra.mxu0 0.0
    %674 = vmatprep.subr.mxu0 0.0
    %675 = vmatpush1.xpose.msra.mxu0 0.0
    %676 = vmatprep.subr.mxu0 0.0
    %677 = vmatpush1.xpose.msra.mxu0 0.0
    %678 = vmatprep.subr.mxu0 0.0
    %679 = vmatpush1.xpose.msra.mxu0 0.0
    %680 = vmatprep.subr.mxu0 0.0
    %681 = vmatpush1.xpose.msra.mxu0 0.0
    %682 = vmatprep.subr.mxu0 0.0
    %683 = vmatpush1.xpose.msra.mxu0 0.0
    %684 = vmatprep.subr.mxu0 0.0
    %685 = vmatpush1.xpose.msra.mxu0 0.0
    %686 = vmatprep.subr.mxu0 0.0
    %687 = vmatpush1.xpose.msra.mxu0 0.0
    %688 = vmatprep.subr.mxu0 0.0
    %689 = vmatpush1.xpose.msra.mxu0 0.0
    %690 = vmatprep.subr.mxu0 0.0
    %691 = vmatpush1.xpose.msra.mxu0 0.0
    %692 = vmatprep.subr.mxu0 0.0
    %693 = vmatpush1.xpose.msra.mxu0 0.0
    %694 = vmatprep.subr.mxu0 0.0
    %695 = vmatpush1.xpose.msra.mxu0 0.0
    %696 = vmatprep.subr.mxu0 0.0
    %697 = vmatpush1.xpose.msra.mxu0 0.0
    %698 = vmatprep.subr.mxu0 0.0
    %699 = vmatpush1.xpose.msra.mxu0 0.0
    %700 = vmatprep.subr.mxu0 0.0
    %701 = vmatpush1.xpose.msra.mxu0 %v668
    %702 = vmatprep.subr.mxu0 0.0
    %703 = vmatpush2.xpose.msra.mxu0 0.0
    %704 = vmatprep.subr.mxu0 0.0
    %705 = vmatpush2.xpose.msra.mxu0 0.0
    %706 = vmatprep.subr.mxu0 0.0
    %707 = vmatpush2.xpose.msra.mxu0 0.0
    %708 = vmatprep.subr.mxu0 0.0
    %709 = vmatpush2.xpose.msra.mxu0 0.0
    %710 = vmatprep.subr.mxu0 0.0
    %711 = vmatpush2.xpose.msra.mxu0 0.0
    %712 = vmatprep.subr.mxu0 0.0
    %713 = vmatpush2.xpose.msra.mxu0 0.0
    %714 = vmatprep.subr.mxu0 0.0
    %715 = vmatpush2.xpose.msra.mxu0 0.0
    %716 = vmatprep.subr.mxu0 0.0
    %717 = vmatpush2.xpose.msra.mxu0 0.0
    %718 = vmatprep.subr.mxu0 0.0
    %719 = vmatpush2.xpose.msra.mxu0 0.0
    %720 = vmatprep.subr.mxu0 0.0
    %721 = vmatpush2.xpose.msra.mxu0 0.0
    %722 = vmatprep.subr.mxu0 0.0
    %723 = vmatpush2.xpose.msra.mxu0 0.0
    %724 = vmatprep.subr.mxu0 0.0
    %725 = vmatpush2.xpose.msra.mxu0 0.0
    %726 = vmatprep.subr.mxu0 0.0
    %727 = vmatpush2.xpose.msra.mxu0 0.0
    %728 = vmatprep.subr.mxu0 0.0
    %729 = vmatpush2.xpose.msra.mxu0 0.0
    %730 = vmatprep.subr.mxu0 0.0
    %731 = vmatpush2.xpose.msra.mxu0 0.0
    %732 = vmatprep.subr.mxu0 0.0
    %733 = vmatpush2.xpose.msra.mxu0 0.0
    %734 = vmatprep.mubr.f32.mxu0 0.0
    %735 = vmatmul.mubr.f32.gmra.mxu0 %v666
    %v736 = vpop.f32.mrf.mxu0
    %v737 = vadd.f32 0.0, %v736
    %v738 = vpop.f32.mrf.mxu0
    %739 = vdwg.mxu0
    %740 = vrot.lane.b32.xlu0 %v257, 96
    %v741 = vpop.permute.xlu0 %740
    %742 = vrot.lane.b32.xlu0 %v259, 96
    %v743 = vpop.permute.xlu0 %742
    %v744 = vsel %vm336, %v741, 0
    %v746 = vsel %vm336, %v743, 0
    %748 = vmatprep.subr.mxu0 0.0
    %749 = vmatpush1.xpose.msra.mxu0 0.0
    %750 = vmatprep.subr.mxu0 0.0
    %751 = vmatpush1.xpose.msra.mxu0 0.0
    %752 = vmatprep.subr.mxu0 0.0
    %753 = vmatpush1.xpose.msra.mxu0 0.0
    %754 = vmatprep.subr.mxu0 0.0
    %755 = vmatpush1.xpose.msra.mxu0 0.0
    %756 = vmatprep.subr.mxu0 0.0
    %757 = vmatpush1.xpose.msra.mxu0 0.0
    %758 = vmatprep.subr.mxu0 0.0
    %759 = vmatpush1.xpose.msra.mxu0 0.0
    %760 = vmatprep.subr.mxu0 0.0
    %761 = vmatpush1.xpose.msra.mxu0 0.0
    %762 = vmatprep.subr.mxu0 0.0
    %763 = vmatpush1.xpose.msra.mxu0 0.0
    %764 = vmatprep.subr.mxu0 0.0
    %765 = vmatpush1.xpose.msra.mxu0 0.0
    %766 = vmatprep.subr.mxu0 0.0
    %767 = vmatpush1.xpose.msra.mxu0 0.0
    %768 = vmatprep.subr.mxu0 0.0
    %769 = vmatpush1.xpose.msra.mxu0 0.0
    %770 = vmatprep.subr.mxu0 0.0
    %771 = vmatpush1.xpose.msra.mxu0 0.0
    %772 = vmatprep.subr.mxu0 0.0
    %773 = vmatpush1.xpose.msra.mxu0 0.0
    %774 = vmatprep.subr.mxu0 0.0
    %775 = vmatpush1.xpose.msra.mxu0 0.0
    %776 = vmatprep.subr.mxu0 0.0
    %777 = vmatpush1.xpose.msra.mxu0 0.0
    %778 = vmatprep.subr.mxu0 0.0
    %779 = vmatpush1.xpose.msra.mxu0 %v746
    %780 = vmatprep.subr.mxu0 0.0
    %781 = vmatpush2.xpose.msra.mxu0 0.0
    %782 = vmatprep.subr.mxu0 0.0
    %783 = vmatpush2.xpose.msra.mxu0 0.0
    %784 = vmatprep.subr.mxu0 0.0
    %785 = vmatpush2.xpose.msra.mxu0 0.0
    %786 = vmatprep.subr.mxu0 0.0
    %787 = vmatpush2.xpose.msra.mxu0 0.0
    %788 = vmatprep.subr.mxu0 0.0
    %789 = vmatpush2.xpose.msra.mxu0 0.0
    %790 = vmatprep.subr.mxu0 0.0
    %791 = vmatpush2.xpose.msra.mxu0 0.0
    %792 = vmatprep.subr.mxu0 0.0
    %793 = vmatpush2.xpose.msra.mxu0 0.0
    %794 = vmatprep.subr.mxu0 0.0
    %795 = vmatpush2.xpose.msra.mxu0 0.0
    %796 = vmatprep.subr.mxu0 0.0
    %797 = vmatpush2.xpose.msra.mxu0 0.0
    %798 = vmatprep.subr.mxu0 0.0
    %799 = vmatpush2.xpose.msra.mxu0 0.0
    %800 = vmatprep.subr.mxu0 0.0
    %801 = vmatpush2.xpose.msra.mxu0 0.0
    %802 = vmatprep.subr.mxu0 0.0
    %803 = vmatpush2.xpose.msra.mxu0 0.0
    %804 = vmatprep.subr.mxu0 0.0
    %805 = vmatpush2.xpose.msra.mxu0 0.0
    %806 = vmatprep.subr.mxu0 0.0
    %807 = vmatpush2.xpose.msra.mxu0 0.0
    %808 = vmatprep.subr.mxu0 0.0
    %809 = vmatpush2.xpose.msra.mxu0 0.0
    %810 = vmatprep.subr.mxu0 0.0
    %811 = vmatpush2.xpose.msra.mxu0 0.0
    %812 = vmatprep.mubr.f32.mxu0 0.0
    %813 = vmatmul.mubr.f32.gmra.mxu0 %v744
    %v814 = vpop.f32.mrf.mxu0
    %v815 = vadd.f32 0.0, %v814
    %v816 = vpop.f32.mrf.mxu0
    %817 = vdwg.mxu0
    %v818 = vsel %vm489, %v737, -inf
    %819 = vmax.xlane.f32.xlu0 %v818
    %v820 = vpop.xlane.xlu0 %819
    %v821 = vsel %vm489, %v815, -inf
    %822 = vmax.xlane.f32.xlu0 %v821
    %v823 = vpop.xlane.xlu0 %822
    %v824 = vsub.f32 %v737, %v820
    %v825 = vsub.f32 %v815, %v823
    %v826 = vmul.f32 %v824, 1.442695
    %v827 = vpow.pop %v826
    %v828 = vmul.f32 %v825, 1.442695
    %v829 = vpow.pop %v828
    %v830 = vsel %vm489, %v827, 0.0
    %831 = vadd.xlane.f32.xlu0 %v830
    %v832 = vpop.xlane.xlu0 %831
    %v833 = vsel %vm489, %v829, 0.0
    %834 = vadd.xlane.f32.xlu0 %v833
    %v835 = vpop.xlane.xlu0 %834
    %837 = vrot.lane.b32.xlu0 %v328, 96
    %v838 = vpop.permute.xlu0 %837
    %v841 = vsel %vm489, %v827, 0
    %843 = vmatprep.subr.mxu0 0.0
    %844 = vmatpush1.msra.mxu0 0.0
    %845 = vmatprep.subr.mxu0 0.0
    %846 = vmatpush1.msra.mxu0 0.0
    %847 = vmatprep.subr.mxu0 0.0
    %848 = vmatpush1.msra.mxu0 0.0
    %849 = vmatprep.subr.mxu0 0.0
    %850 = vmatpush1.msra.mxu0 0.0
    %851 = vmatprep.subr.mxu0 0.0
    %852 = vmatpush1.msra.mxu0 0.0
    %853 = vmatprep.subr.mxu0 0.0
    %854 = vmatpush1.msra.mxu0 0.0
    %855 = vmatprep.subr.mxu0 0.0
    %856 = vmatpush1.msra.mxu0 0.0
    %857 = vmatprep.subr.mxu0 0.0
    %858 = vmatpush1.msra.mxu0 0.0
    %859 = vmatprep.subr.mxu0 0.0
    %860 = vmatpush1.msra.mxu0 0.0
    %861 = vmatprep.subr.mxu0 0.0
    %862 = vmatpush1.msra.mxu0 0.0
    %863 = vmatprep.subr.mxu0 0.0
    %864 = vmatpush1.msra.mxu0 0.0
    %865 = vmatprep.subr.mxu0 0.0
    %866 = vmatpush1.msra.mxu0 0.0
    %867 = vmatprep.subr.mxu0 0.0
    %868 = vmatpush1.msra.mxu0 0.0
    %869 = vmatprep.subr.mxu0 0.0
    %870 = vmatpush1.msra.mxu0 0.0
    %871 = vmatprep.subr.mxu0 0.0
    %872 = vmatpush1.msra.mxu0 0.0
    %873 = vmatprep.subr.mxu0 0.0
    %874 = vmatpush1.msra.mxu0 %v838
    %875 = vmatprep.subr.mxu0 0.0
    %876 = vmatpush2.msra.mxu0 0.0
    %877 = vmatprep.subr.mxu0 0.0
    %878 = vmatpush2.msra.mxu0 0.0
    %879 = vmatprep.subr.mxu0 0.0
    %880 = vmatpush2.msra.mxu0 0.0
    %881 = vmatprep.subr.mxu0 0.0
    %882 = vmatpush2.msra.mxu0 0.0
    %883 = vmatprep.subr.mxu0 0.0
    %884 = vmatpush2.msra.mxu0 0.0
    %885 = vmatprep.subr.mxu0 0.0
    %886 = vmatpush2.msra.mxu0 0.0
    %887 = vmatprep.subr.mxu0 0.0
    %888 = vmatpush2.msra.mxu0 0.0
    %889 = vmatprep.subr.mxu0 0.0
    %890 = vmatpush2.msra.mxu0 0.0
    %891 = vmatprep.subr.mxu0 0.0
    %892 = vmatpush2.msra.mxu0 0.0
    %893 = vmatprep.subr.mxu0 0.0
    %894 = vmatpush2.msra.mxu0 0.0
    %895 = vmatprep.subr.mxu0 0.0
    %896 = vmatpush2.msra.mxu0 0.0
    %897 = vmatprep.subr.mxu0 0.0
    %898 = vmatpush2.msra.mxu0 0.0
    %899 = vmatprep.subr.mxu0 0.0
    %900 = vmatpush2.msra.mxu0 0.0
    %901 = vmatprep.subr.mxu0 0.0
    %902 = vmatpush2.msra.mxu0 0.0
    %903 = vmatprep.subr.mxu0 0.0
    %904 = vmatpush2.msra.mxu0 0.0
    %905 = vmatprep.subr.mxu0 0.0
    %906 = vmatpush2.msra.mxu0 0.0
    %907 = vmatprep.mubr.f32.mxu0 0.0
    %908 = vmatmul.mubr.f32.gmra.mxu0 %v841
    %v909 = vpop.f32.mrf.mxu0
    %v910 = vadd.f32 0.0, %v909
    %v911 = vpop.f32.mrf.mxu0
    %912 = vdwg.mxu0
    %914 = vrot.lane.b32.xlu0 %v333, 96
    %v915 = vpop.permute.xlu0 %914
    %v918 = vsel %vm489, %v829, 0
    %920 = vmatprep.subr.mxu0 0.0
    %921 = vmatpush1.msra.mxu0 0.0
    %922 = vmatprep.subr.mxu0 0.0
    %923 = vmatpush1.msra.mxu0 0.0
    %924 = vmatprep.subr.mxu0 0.0
    %925 = vmatpush1.msra.mxu0 0.0
    %926 = vmatprep.subr.mxu0 0.0
    %927 = vmatpush1.msra.mxu0 0.0
    %928 = vmatprep.subr.mxu0 0.0
    %929 = vmatpush1.msra.mxu0 0.0
    %930 = vmatprep.subr.mxu0 0.0
    %931 = vmatpush1.msra.mxu0 0.0
    %932 = vmatprep.subr.mxu0 0.0
    %933 = vmatpush1.msra.mxu0 0.0
    %934 = vmatprep.subr.mxu0 0.0
    %935 = vmatpush1.msra.mxu0 0.0
    %936 = vmatprep.subr.mxu0 0.0
    %937 = vmatpush1.msra.mxu0 0.0
    %938 = vmatprep.subr.mxu0 0.0
    %939 = vmatpush1.msra.mxu0 0.0
    %940 = vmatprep.subr.mxu0 0.0
    %941 = vmatpush1.msra.mxu0 0.0
    %942 = vmatprep.subr.mxu0 0.0
    %943 = vmatpush1.msra.mxu0 0.0
    %944 = vmatprep.subr.mxu0 0.0
    %945 = vmatpush1.msra.mxu0 0.0
    %946 = vmatprep.subr.mxu0 0.0
    %947 = vmatpush1.msra.mxu0 0.0
    %948 = vmatprep.subr.mxu0 0.0
    %949 = vmatpush1.msra.mxu0 0.0
    %950 = vmatprep.subr.mxu0 0.0
    %951 = vmatpush1.msra.mxu0 %v915
    %952 = vmatprep.subr.mxu0 0.0
    %953 = vmatpush2.msra.mxu0 0.0
    %954 = vmatprep.subr.mxu0 0.0
    %955 = vmatpush2.msra.mxu0 0.0
    %956 = vmatprep.subr.mxu0 0.0
    %957 = vmatpush2.msra.mxu0 0.0
    %958 = vmatprep.subr.mxu0 0.0
    %959 = vmatpush2.msra.mxu0 0.0
    %960 = vmatprep.subr.mxu0 0.0
    %961 = vmatpush2.msra.mxu0 0.0
    %962 = vmatprep.subr.mxu0 0.0
    %963 = vmatpush2.msra.mxu0 0.0
    %964 = vmatprep.subr.mxu0 0.0
    %965 = vmatpush2.msra.mxu0 0.0
    %966 = vmatprep.subr.mxu0 0.0
    %967 = vmatpush2.msra.mxu0 0.0
    %968 = vmatprep.subr.mxu0 0.0
    %969 = vmatpush2.msra.mxu0 0.0
    %970 = vmatprep.subr.mxu0 0.0
    %971 = vmatpush2.msra.mxu0 0.0
    %972 = vmatprep.subr.mxu0 0.0
    %973 = vmatpush2.msra.mxu0 0.0
    %974 = vmatprep.subr.mxu0 0.0
    %975 = vmatpush2.msra.mxu0 0.0
    %976 = vmatprep.subr.mxu0 0.0
    %977 = vmatpush2.msra.mxu0 0.0
    %978 = vmatprep.subr.mxu0 0.0
    %979 = vmatpush2.msra.mxu0 0.0
    %980 = vmatprep.subr.mxu0 0.0
    %981 = vmatpush2.msra.mxu0 0.0
    %982 = vmatprep.subr.mxu0 0.0
    %983 = vmatpush2.msra.mxu0 0.0
    %984 = vmatprep.mubr.f32.mxu0 0.0
    %985 = vmatmul.mubr.f32.gmra.mxu0 %v918
    %v986 = vpop.f32.mrf.mxu0
    %v987 = vadd.f32 0.0, %v986
    %v988 = vpop.f32.mrf.mxu0
    %989 = vdwg.mxu0
    %v990 = vrcp.pop %v832
    %v991 = vmul.f32 %v910, %v990
    %v992 = vrcp.pop %v835
    %v993 = vmul.f32 %v987, %v992
    %v994 = vld [vmem:[#allocation7 + $0x20] sm:$0xff]
    %v995 = vld [vmem:[#allocation7 + $0x28] sm:$0xff]
    %v996 = vld [vmem:[#allocation7 + $0x30] sm:$0xff]
    %v997 = vld [vmem:[#allocation7 + $0x38] sm:$0xff]
    %v999 = vsel %vm336, %v991, 0
    %v1002 = vsel %vm336, %v993, 0
    %1004 = vmatprep.subr.mxu0 0.0
    %1005 = vmatpush1.msra.mxu0 0.0
    %1006 = vmatprep.subr.mxu0 0.0
    %1007 = vmatpush1.msra.mxu0 0.0
    %1008 = vmatprep.subr.mxu0 0.0
    %1009 = vmatpush1.msra.mxu0 0.0
    %1010 = vmatprep.subr.mxu0 0.0
    %1011 = vmatpush1.msra.mxu0 0.0
    %1012 = vmatprep.subr.mxu0 0.0
    %1013 = vmatpush1.msra.mxu0 0.0
    %1014 = vmatprep.subr.mxu0 0.0
    %1015 = vmatpush1.msra.mxu0 0.0
    %1016 = vmatprep.subr.mxu0 0.0
    %1017 = vmatpush1.msra.mxu0 0.0
    %1018 = vmatprep.subr.mxu0 0.0
    %1019 = vmatpush1.msra.mxu0 0.0
    %1020 = vmatprep.subr.mxu0 0.0
    %1021 = vmatpush1.msra.mxu0 0.0
    %1022 = vmatprep.subr.mxu0 0.0
    %1023 = vmatpush1.msra.mxu0 0.0
    %1024 = vmatprep.subr.mxu0 0.0
    %1025 = vmatpush1.msra.mxu0 0.0
    %1026 = vmatprep.subr.mxu0 0.0
    %1027 = vmatpush1.msra.mxu0 0.0
    %1028 = vmatprep.subr.mxu0 0.0
    %1029 = vmatpush1.msra.mxu0 %v997
    %1030 = vmatprep.subr.mxu0 0.0
    %1031 = vmatpush1.msra.mxu0 %v996
    %1032 = vmatprep.subr.mxu0 0.0
    %1033 = vmatpush1.msra.mxu0 %v995
    %1034 = vmatprep.subr.mxu0 0.0
    %1035 = vmatpush1.msra.mxu0 %v994
    %1036 = vmatprep.subr.mxu0 0.0
    %1037 = vmatpush2.msra.mxu0 0.0
    %1038 = vmatprep.subr.mxu0 0.0
    %1039 = vmatpush2.msra.mxu0 0.0
    %1040 = vmatprep.subr.mxu0 0.0
    %1041 = vmatpush2.msra.mxu0 0.0
    %1042 = vmatprep.subr.mxu0 0.0
    %1043 = vmatpush2.msra.mxu0 0.0
    %1044 = vmatprep.subr.mxu0 0.0
    %1045 = vmatpush2.msra.mxu0 0.0
    %1046 = vmatprep.subr.mxu0 0.0
    %1047 = vmatpush2.msra.mxu0 0.0
    %1048 = vmatprep.subr.mxu0 0.0
    %1049 = vmatpush2.msra.mxu0 0.0
    %1050 = vmatprep.subr.mxu0 0.0
    %1051 = vmatpush2.msra.mxu0 0.0
    %1052 = vmatprep.subr.mxu0 0.0
    %1053 = vmatpush2.msra.mxu0 0.0
    %1054 = vmatprep.subr.mxu0 0.0
    %1055 = vmatpush2.msra.mxu0 0.0
    %1056 = vmatprep.subr.mxu0 0.0
    %1057 = vmatpush2.msra.mxu0 0.0
    %1058 = vmatprep.subr.mxu0 0.0
    %1059 = vmatpush2.msra.mxu0 0.0
    %1060 = vmatprep.subr.mxu0 0.0
    %1061 = vmatpush2.msra.mxu0 0.0
    %1062 = vmatprep.subr.mxu0 0.0
    %1063 = vmatpush2.msra.mxu0 0.0
    %1064 = vmatprep.subr.mxu0 0.0
    %1065 = vmatpush2.msra.mxu0 0.0
    %1066 = vmatprep.subr.mxu0 0.0
    %1067 = vmatpush2.msra.mxu0 0.0
    %1068 = vmatprep.mubr.f32.mxu0 0.0
    %1069 = vmatmul.mubr.f32.gmra.mxu0 %v999
    %v1070 = vpop.f32.mrf.mxu0
    %v1071 = vadd.f32 0.0, %v1070
    %v1072 = vpop.f32.mrf.mxu0
    %1073 = vmatprep.mubr.f32.mxu0 0.0
    %1074 = vmatmul.mubr.f32.gmra.mxu0 %v1002
    %v1075 = vpop.f32.mrf.mxu0
    %v1076 = vadd.f32 0.0, %v1075
    %v1077 = vpop.f32.mrf.mxu0
    %1078 = vdwg.mxu0
    %v1080 = vsel %vm336, %v655, 0
    %v1083 = vsel %vm336, %v657, 0
    %1085 = vmatprep.subr.mxu0 0.0
    %1086 = vmatpush1.msra.mxu0 0.0
    %1087 = vmatprep.subr.mxu0 0.0
    %1088 = vmatpush1.msra.mxu0 0.0
    %1089 = vmatprep.subr.mxu0 0.0
    %1090 = vmatpush1.msra.mxu0 0.0
    %1091 = vmatprep.subr.mxu0 0.0
    %1092 = vmatpush1.msra.mxu0 0.0
    %1093 = vmatprep.subr.mxu0 0.0
    %1094 = vmatpush1.msra.mxu0 0.0
    %1095 = vmatprep.subr.mxu0 0.0
    %1096 = vmatpush1.msra.mxu0 0.0
    %1097 = vmatprep.subr.mxu0 0.0
    %1098 = vmatpush1.msra.mxu0 0.0
    %1099 = vmatprep.subr.mxu0 0.0
    %1100 = vmatpush1.msra.mxu0 0.0
    %1101 = vmatprep.subr.mxu0 0.0
    %1102 = vmatpush1.msra.mxu0 0.0
    %1103 = vmatprep.subr.mxu0 0.0
    %1104 = vmatpush1.msra.mxu0 0.0
    %1105 = vmatprep.subr.mxu0 0.0
    %1106 = vmatpush1.msra.mxu0 0.0
    %1107 = vmatprep.subr.mxu0 0.0
    %1108 = vmatpush1.msra.mxu0 0.0
    %1109 = vmatprep.subr.mxu0 0.0
    %1110 = vmatpush1.msra.mxu0 %v661
    %1111 = vmatprep.subr.mxu0 0.0
    %1112 = vmatpush1.msra.mxu0 %v660
    %1113 = vmatprep.subr.mxu0 0.0
    %1114 = vmatpush1.msra.mxu0 %v659
    %1115 = vmatprep.subr.mxu0 0.0
    %1116 = vmatpush1.msra.mxu0 %v658
    %1117 = vmatprep.subr.mxu0 0.0
    %1118 = vmatpush2.msra.mxu0 0.0
    %1119 = vmatprep.subr.mxu0 0.0
    %1120 = vmatpush2.msra.mxu0 0.0
    %1121 = vmatprep.subr.mxu0 0.0
    %1122 = vmatpush2.msra.mxu0 0.0
    %1123 = vmatprep.subr.mxu0 0.0
    %1124 = vmatpush2.msra.mxu0 0.0
    %1125 = vmatprep.subr.mxu0 0.0
    %1126 = vmatpush2.msra.mxu0 0.0
    %1127 = vmatprep.subr.mxu0 0.0
    %1128 = vmatpush2.msra.mxu0 0.0
    %1129 = vmatprep.subr.mxu0 0.0
    %1130 = vmatpush2.msra.mxu0 0.0
    %1131 = vmatprep.subr.mxu0 0.0
    %1132 = vmatpush2.msra.mxu0 0.0
    %1133 = vmatprep.subr.mxu0 0.0
    %1134 = vmatpush2.msra.mxu0 0.0
    %1135 = vmatprep.subr.mxu0 0.0
    %1136 = vmatpush2.msra.mxu0 0.0
    %1137 = vmatprep.subr.mxu0 0.0
    %1138 = vmatpush2.msra.mxu0 0.0
    %1139 = vmatprep.subr.mxu0 0.0
    %1140 = vmatpush2.msra.mxu0 0.0
    %1141 = vmatprep.subr.mxu0 0.0
    %1142 = vmatpush2.msra.mxu0 0.0
    %1143 = vmatprep.subr.mxu0 0.0
    %1144 = vmatpush2.msra.mxu0 0.0
    %1145 = vmatprep.subr.mxu0 0.0
    %1146 = vmatpush2.msra.mxu0 0.0
    %1147 = vmatprep.subr.mxu0 0.0
    %1148 = vmatpush2.msra.mxu0 0.0
    %1149 = vmatprep.mubr.f32.mxu0 0.0
    %1150 = vmatmul.mubr.f32.gmra.mxu0 %v1080
    %v1151 = vpop.f32.mrf.mxu0
    %v1152 = vadd.f32 %v1071, %v1151
    %v1153 = vpop.f32.mrf.mxu0
    %1154 = vmatprep.mubr.f32.mxu0 0.0
    %1155 = vmatmul.mubr.f32.gmra.mxu0 %v1083
    %v1156 = vpop.f32.mrf.mxu0
    %v1157 = vadd.f32 %v1076, %v1156
    %v1158 = vpop.f32.mrf.mxu0
    %1159 = vdwg.mxu0
    %1160 = vrot.lane.b32.xlu0 %v251, 64
    %v1161 = vpop.permute.xlu0 %1160
    %1162 = vrot.lane.b32.xlu0 %v253, 64
    %v1163 = vpop.permute.xlu0 %1162
    %v1164 = vsel %vm336, %v1161, 0
    %v1166 = vsel %vm336, %v1163, 0
    %1168 = vmatprep.subr.mxu0 0.0
    %1169 = vmatpush1.xpose.msra.mxu0 0.0
    %1170 = vmatprep.subr.mxu0 0.0
    %1171 = vmatpush1.xpose.msra.mxu0 0.0
    %1172 = vmatprep.subr.mxu0 0.0
    %1173 = vmatpush1.xpose.msra.mxu0 0.0
    %1174 = vmatprep.subr.mxu0 0.0
    %1175 = vmatpush1.xpose.msra.mxu0 0.0
    %1176 = vmatprep.subr.mxu0 0.0
    %1177 = vmatpush1.xpose.msra.mxu0 0.0
    %1178 = vmatprep.subr.mxu0 0.0
    %1179 = vmatpush1.xpose.msra.mxu0 0.0
    %1180 = vmatprep.subr.mxu0 0.0
    %1181 = vmatpush1.xpose.msra.mxu0 0.0
    %1182 = vmatprep.subr.mxu0 0.0
    %1183 = vmatpush1.xpose.msra.mxu0 0.0
    %1184 = vmatprep.subr.mxu0 0.0
    %1185 = vmatpush1.xpose.msra.mxu0 0.0
    %1186 = vmatprep.subr.mxu0 0.0
    %1187 = vmatpush1.xpose.msra.mxu0 0.0
    %1188 = vmatprep.subr.mxu0 0.0
    %1189 = vmatpush1.xpose.msra.mxu0 0.0
    %1190 = vmatprep.subr.mxu0 0.0
    %1191 = vmatpush1.xpose.msra.mxu0 0.0
    %1192 = vmatprep.subr.mxu0 0.0
    %1193 = vmatpush1.xpose.msra.mxu0 0.0
    %1194 = vmatprep.subr.mxu0 0.0
    %1195 = vmatpush1.xpose.msra.mxu0 0.0
    %1196 = vmatprep.subr.mxu0 0.0
    %1197 = vmatpush1.xpose.msra.mxu0 0.0
    %1198 = vmatprep.subr.mxu0 0.0
    %1199 = vmatpush1.xpose.msra.mxu0 %v1166
    %1200 = vmatprep.subr.mxu0 0.0
    %1201 = vmatpush2.xpose.msra.mxu0 0.0
    %1202 = vmatprep.subr.mxu0 0.0
    %1203 = vmatpush2.xpose.msra.mxu0 0.0
    %1204 = vmatprep.subr.mxu0 0.0
    %1205 = vmatpush2.xpose.msra.mxu0 0.0
    %1206 = vmatprep.subr.mxu0 0.0
    %1207 = vmatpush2.xpose.msra.mxu0 0.0
    %1208 = vmatprep.subr.mxu0 0.0
    %1209 = vmatpush2.xpose.msra.mxu0 0.0
    %1210 = vmatprep.subr.mxu0 0.0
    %1211 = vmatpush2.xpose.msra.mxu0 0.0
    %1212 = vmatprep.subr.mxu0 0.0
    %1213 = vmatpush2.xpose.msra.mxu0 0.0
    %1214 = vmatprep.subr.mxu0 0.0
    %1215 = vmatpush2.xpose.msra.mxu0 0.0
    %1216 = vmatprep.subr.mxu0 0.0
    %1217 = vmatpush2.xpose.msra.mxu0 0.0
    %1218 = vmatprep.subr.mxu0 0.0
    %1219 = vmatpush2.xpose.msra.mxu0 0.0
    %1220 = vmatprep.subr.mxu0 0.0
    %1221 = vmatpush2.xpose.msra.mxu0 0.0
    %1222 = vmatprep.subr.mxu0 0.0
    %1223 = vmatpush2.xpose.msra.mxu0 0.0
    %1224 = vmatprep.subr.mxu0 0.0
    %1225 = vmatpush2.xpose.msra.mxu0 0.0
    %1226 = vmatprep.subr.mxu0 0.0
    %1227 = vmatpush2.xpose.msra.mxu0 0.0
    %1228 = vmatprep.subr.mxu0 0.0
    %1229 = vmatpush2.xpose.msra.mxu0 0.0
    %1230 = vmatprep.subr.mxu0 0.0
    %1231 = vmatpush2.xpose.msra.mxu0 0.0
    %1232 = vmatprep.mubr.f32.mxu0 0.0
    %1233 = vmatmul.mubr.f32.gmra.mxu0 %v1164
    %v1234 = vpop.f32.mrf.mxu0
    %v1235 = vadd.f32 0.0, %v1234
    %v1236 = vpop.f32.mrf.mxu0
    %1237 = vdwg.mxu0
    %1238 = vrot.lane.b32.xlu0 %v257, 64
    %v1239 = vpop.permute.xlu0 %1238
    %1240 = vrot.lane.b32.xlu0 %v259, 64
    %v1241 = vpop.permute.xlu0 %1240
    %v1242 = vsel %vm336, %v1239, 0
    %v1244 = vsel %vm336, %v1241, 0
    %1246 = vmatprep.subr.mxu0 0.0
    %1247 = vmatpush1.xpose.msra.mxu0 0.0
    %1248 = vmatprep.subr.mxu0 0.0
    %1249 = vmatpush1.xpose.msra.mxu0 0.0
    %1250 = vmatprep.subr.mxu0 0.0
    %1251 = vmatpush1.xpose.msra.mxu0 0.0
    %1252 = vmatprep.subr.mxu0 0.0
    %1253 = vmatpush1.xpose.msra.mxu0 0.0
    %1254 = vmatprep.subr.mxu0 0.0
    %1255 = vmatpush1.xpose.msra.mxu0 0.0
    %1256 = vmatprep.subr.mxu0 0.0
    %1257 = vmatpush1.xpose.msra.mxu0 0.0
    %1258 = vmatprep.subr.mxu0 0.0
    %1259 = vmatpush1.xpose.msra.mxu0 0.0
    %1260 = vmatprep.subr.mxu0 0.0
    %1261 = vmatpush1.xpose.msra.mxu0 0.0
    %1262 = vmatprep.subr.mxu0 0.0
    %1263 = vmatpush1.xpose.msra.mxu0 0.0
    %1264 = vmatprep.subr.mxu0 0.0
    %1265 = vmatpush1.xpose.msra.mxu0 0.0
    %1266 = vmatprep.subr.mxu0 0.0
    %1267 = vmatpush1.xpose.msra.mxu0 0.0
    %1268 = vmatprep.subr.mxu0 0.0
    %1269 = vmatpush1.xpose.msra.mxu0 0.0
    %1270 = vmatprep.subr.mxu0 0.0
    %1271 = vmatpush1.xpose.msra.mxu0 0.0
    %1272 = vmatprep.subr.mxu0 0.0
    %1273 = vmatpush1.xpose.msra.mxu0 0.0
    %1274 = vmatprep.subr.mxu0 0.0
    %1275 = vmatpush1.xpose.msra.mxu0 0.0
    %1276 = vmatprep.subr.mxu0 0.0
    %1277 = vmatpush1.xpose.msra.mxu0 %v1244
    %1278 = vmatprep.subr.mxu0 0.0
    %1279 = vmatpush2.xpose.msra.mxu0 0.0
    %1280 = vmatprep.subr.mxu0 0.0
    %1281 = vmatpush2.xpose.msra.mxu0 0.0
    %1282 = vmatprep.subr.mxu0 0.0
    %1283 = vmatpush2.xpose.msra.mxu0 0.0
    %1284 = vmatprep.subr.mxu0 0.0
    %1285 = vmatpush2.xpose.msra.mxu0 0.0
    %1286 = vmatprep.subr.mxu0 0.0
    %1287 = vmatpush2.xpose.msra.mxu0 0.0
    %1288 = vmatprep.subr.mxu0 0.0
    %1289 = vmatpush2.xpose.msra.mxu0 0.0
    %1290 = vmatprep.subr.mxu0 0.0
    %1291 = vmatpush2.xpose.msra.mxu0 0.0
    %1292 = vmatprep.subr.mxu0 0.0
    %1293 = vmatpush2.xpose.msra.mxu0 0.0
    %1294 = vmatprep.subr.mxu0 0.0
    %1295 = vmatpush2.xpose.msra.mxu0 0.0
    %1296 = vmatprep.subr.mxu0 0.0
    %1297 = vmatpush2.xpose.msra.mxu0 0.0
    %1298 = vmatprep.subr.mxu0 0.0
    %1299 = vmatpush2.xpose.msra.mxu0 0.0
    %1300 = vmatprep.subr.mxu0 0.0
    %1301 = vmatpush2.xpose.msra.mxu0 0.0
    %1302 = vmatprep.subr.mxu0 0.0
    %1303 = vmatpush2.xpose.msra.mxu0 0.0
    %1304 = vmatprep.subr.mxu0 0.0
    %1305 = vmatpush2.xpose.msra.mxu0 0.0
    %1306 = vmatprep.subr.mxu0 0.0
    %1307 = vmatpush2.xpose.msra.mxu0 0.0
    %1308 = vmatprep.subr.mxu0 0.0
    %1309 = vmatpush2.xpose.msra.mxu0 0.0
    %1310 = vmatprep.mubr.f32.mxu0 0.0
    %1311 = vmatmul.mubr.f32.gmra.mxu0 %v1242
    %v1312 = vpop.f32.mrf.mxu0
    %v1313 = vadd.f32 0.0, %v1312
    %v1314 = vpop.f32.mrf.mxu0
    %1315 = vdwg.mxu0
    %v1316 = vsel %vm489, %v1235, -inf
    %1317 = vmax.xlane.f32.xlu0 %v1316
    %v1318 = vpop.xlane.xlu0 %1317
    %v1319 = vsel %vm489, %v1313, -inf
    %1320 = vmax.xlane.f32.xlu0 %v1319
    %v1321 = vpop.xlane.xlu0 %1320
    %v1322 = vsub.f32 %v1235, %v1318
    %v1323 = vsub.f32 %v1313, %v1321
    %v1324 = vmul.f32 %v1322, 1.442695
    %v1325 = vpow.pop %v1324
    %v1326 = vmul.f32 %v1323, 1.442695
    %v1327 = vpow.pop %v1326
    %v1328 = vsel %vm489, %v1325, 0.0
    %1329 = vadd.xlane.f32.xlu0 %v1328
    %v1330 = vpop.xlane.xlu0 %1329
    %v1331 = vsel %vm489, %v1327, 0.0
    %1332 = vadd.xlane.f32.xlu0 %v1331
    %v1333 = vpop.xlane.xlu0 %1332
    %1334 = vrot.lane.b32.xlu0 %v328, 64
    %v1335 = vpop.permute.xlu0 %1334
    %v1338 = vsel %vm489, %v1325, 0
    %1340 = vmatprep.subr.mxu0 0.0
    %1341 = vmatpush1.msra.mxu0 0.0
    %1342 = vmatprep.subr.mxu0 0.0
    %1343 = vmatpush1.msra.mxu0 0.0
    %1344 = vmatprep.subr.mxu0 0.0
    %1345 = vmatpush1.msra.mxu0 0.0
    %1346 = vmatprep.subr.mxu0 0.0
    %1347 = vmatpush1.msra.mxu0 0.0
    %1348 = vmatprep.subr.mxu0 0.0
    %1349 = vmatpush1.msra.mxu0 0.0
    %1350 = vmatprep.subr.mxu0 0.0
    %1351 = vmatpush1.msra.mxu0 0.0
    %1352 = vmatprep.subr.mxu0 0.0
    %1353 = vmatpush1.msra.mxu0 0.0
    %1354 = vmatprep.subr.mxu0 0.0
    %1355 = vmatpush1.msra.mxu0 0.0
    %1356 = vmatprep.subr.mxu0 0.0
    %1357 = vmatpush1.msra.mxu0 0.0
    %1358 = vmatprep.subr.mxu0 0.0
    %1359 = vmatpush1.msra.mxu0 0.0
    %1360 = vmatprep.subr.mxu0 0.0
    %1361 = vmatpush1.msra.mxu0 0.0
    %1362 = vmatprep.subr.mxu0 0.0
    %1363 = vmatpush1.msra.mxu0 0.0
    %1364 = vmatprep.subr.mxu0 0.0
    %1365 = vmatpush1.msra.mxu0 0.0
    %1366 = vmatprep.subr.mxu0 0.0
    %1367 = vmatpush1.msra.mxu0 0.0
    %1368 = vmatprep.subr.mxu0 0.0
    %1369 = vmatpush1.msra.mxu0 0.0
    %1370 = vmatprep.subr.mxu0 0.0
    %1371 = vmatpush1.msra.mxu0 %v1335
    %1372 = vmatprep.subr.mxu0 0.0
    %1373 = vmatpush2.msra.mxu0 0.0
    %1374 = vmatprep.subr.mxu0 0.0
    %1375 = vmatpush2.msra.mxu0 0.0
    %1376 = vmatprep.subr.mxu0 0.0
    %1377 = vmatpush2.msra.mxu0 0.0
    %1378 = vmatprep.subr.mxu0 0.0
    %1379 = vmatpush2.msra.mxu0 0.0
    %1380 = vmatprep.subr.mxu0 0.0
    %1381 = vmatpush2.msra.mxu0 0.0
    %1382 = vmatprep.subr.mxu0 0.0
    %1383 = vmatpush2.msra.mxu0 0.0
    %1384 = vmatprep.subr.mxu0 0.0
    %1385 = vmatpush2.msra.mxu0 0.0
    %1386 = vmatprep.subr.mxu0 0.0
    %1387 = vmatpush2.msra.mxu0 0.0
    %1388 = vmatprep.subr.mxu0 0.0
    %1389 = vmatpush2.msra.mxu0 0.0
    %1390 = vmatprep.subr.mxu0 0.0
    %1391 = vmatpush2.msra.mxu0 0.0
    %1392 = vmatprep.subr.mxu0 0.0
    %1393 = vmatpush2.msra.mxu0 0.0
    %1394 = vmatprep.subr.mxu0 0.0
    %1395 = vmatpush2.msra.mxu0 0.0
    %1396 = vmatprep.subr.mxu0 0.0
    %1397 = vmatpush2.msra.mxu0 0.0
    %1398 = vmatprep.subr.mxu0 0.0
    %1399 = vmatpush2.msra.mxu0 0.0
    %1400 = vmatprep.subr.mxu0 0.0
    %1401 = vmatpush2.msra.mxu0 0.0
    %1402 = vmatprep.subr.mxu0 0.0
    %1403 = vmatpush2.msra.mxu0 0.0
    %1404 = vmatprep.mubr.f32.mxu0 0.0
    %1405 = vmatmul.mubr.f32.gmra.mxu0 %v1338
    %v1406 = vpop.f32.mrf.mxu0
    %v1407 = vadd.f32 0.0, %v1406
    %v1408 = vpop.f32.mrf.mxu0
    %1409 = vdwg.mxu0
    %1410 = vrot.lane.b32.xlu0 %v333, 64
    %v1411 = vpop.permute.xlu0 %1410
    %v1414 = vsel %vm489, %v1327, 0
    %1416 = vmatprep.subr.mxu0 0.0
    %1417 = vmatpush1.msra.mxu0 0.0
    %1418 = vmatprep.subr.mxu0 0.0
    %1419 = vmatpush1.msra.mxu0 0.0
    %1420 = vmatprep.subr.mxu0 0.0
    %1421 = vmatpush1.msra.mxu0 0.0
    %1422 = vmatprep.subr.mxu0 0.0
    %1423 = vmatpush1.msra.mxu0 0.0
    %1424 = vmatprep.subr.mxu0 0.0
    %1425 = vmatpush1.msra.mxu0 0.0
    %1426 = vmatprep.subr.mxu0 0.0
    %1427 = vmatpush1.msra.mxu0 0.0
    %1428 = vmatprep.subr.mxu0 0.0
    %1429 = vmatpush1.msra.mxu0 0.0
    %1430 = vmatprep.subr.mxu0 0.0
    %1431 = vmatpush1.msra.mxu0 0.0
    %1432 = vmatprep.subr.mxu0 0.0
    %1433 = vmatpush1.msra.mxu0 0.0
    %1434 = vmatprep.subr.mxu0 0.0
    %1435 = vmatpush1.msra.mxu0 0.0
    %1436 = vmatprep.subr.mxu0 0.0
    %1437 = vmatpush1.msra.mxu0 0.0
    %1438 = vmatprep.subr.mxu0 0.0
    %1439 = vmatpush1.msra.mxu0 0.0
    %1440 = vmatprep.subr.mxu0 0.0
    %1441 = vmatpush1.msra.mxu0 0.0
    %1442 = vmatprep.subr.mxu0 0.0
    %1443 = vmatpush1.msra.mxu0 0.0
    %1444 = vmatprep.subr.mxu0 0.0
    %1445 = vmatpush1.msra.mxu0 0.0
    %1446 = vmatprep.subr.mxu0 0.0
    %1447 = vmatpush1.msra.mxu0 %v1411
    %1448 = vmatprep.subr.mxu0 0.0
    %1449 = vmatpush2.msra.mxu0 0.0
    %1450 = vmatprep.subr.mxu0 0.0
    %1451 = vmatpush2.msra.mxu0 0.0
    %1452 = vmatprep.subr.mxu0 0.0
    %1453 = vmatpush2.msra.mxu0 0.0
    %1454 = vmatprep.subr.mxu0 0.0
    %1455 = vmatpush2.msra.mxu0 0.0
    %1456 = vmatprep.subr.mxu0 0.0
    %1457 = vmatpush2.msra.mxu0 0.0
    %1458 = vmatprep.subr.mxu0 0.0
    %1459 = vmatpush2.msra.mxu0 0.0
    %1460 = vmatprep.subr.mxu0 0.0
    %1461 = vmatpush2.msra.mxu0 0.0
    %1462 = vmatprep.subr.mxu0 0.0
    %1463 = vmatpush2.msra.mxu0 0.0
    %1464 = vmatprep.subr.mxu0 0.0
    %1465 = vmatpush2.msra.mxu0 0.0
    %1466 = vmatprep.subr.mxu0 0.0
    %1467 = vmatpush2.msra.mxu0 0.0
    %1468 = vmatprep.subr.mxu0 0.0
    %1469 = vmatpush2.msra.mxu0 0.0
    %1470 = vmatprep.subr.mxu0 0.0
    %1471 = vmatpush2.msra.mxu0 0.0
    %1472 = vmatprep.subr.mxu0 0.0
    %1473 = vmatpush2.msra.mxu0 0.0
    %1474 = vmatprep.subr.mxu0 0.0
    %1475 = vmatpush2.msra.mxu0 0.0
    %1476 = vmatprep.subr.mxu0 0.0
    %1477 = vmatpush2.msra.mxu0 0.0
    %1478 = vmatprep.subr.mxu0 0.0
    %1479 = vmatpush2.msra.mxu0 0.0
    %1480 = vmatprep.mubr.f32.mxu0 0.0
    %1481 = vmatmul.mubr.f32.gmra.mxu0 %v1414
    %v1482 = vpop.f32.mrf.mxu0
    %v1483 = vadd.f32 0.0, %v1482
    %v1484 = vpop.f32.mrf.mxu0
    %1485 = vdwg.mxu0
    %v1486 = vrcp.pop %v1330
    %v1487 = vmul.f32 %v1407, %v1486
    %v1488 = vrcp.pop %v1333
    %v1489 = vmul.f32 %v1483, %v1488
    %v1490 = vld [vmem:[#allocation7 + $0x40] sm:$0xff]
    %v1491 = vld [vmem:[#allocation7 + $0x48] sm:$0xff]
    %v1492 = vld [vmem:[#allocation7 + $0x50] sm:$0xff]
    %v1493 = vld [vmem:[#allocation7 + $0x58] sm:$0xff]
    %v1495 = vsel %vm336, %v1487, 0
    %v1498 = vsel %vm336, %v1489, 0
    %1500 = vmatprep.subr.mxu0 0.0
    %1501 = vmatpush1.msra.mxu0 0.0
    %1502 = vmatprep.subr.mxu0 0.0
    %1503 = vmatpush1.msra.mxu0 0.0
    %1504 = vmatprep.subr.mxu0 0.0
    %1505 = vmatpush1.msra.mxu0 0.0
    %1506 = vmatprep.subr.mxu0 0.0
    %1507 = vmatpush1.msra.mxu0 0.0
    %1508 = vmatprep.subr.mxu0 0.0
    %1509 = vmatpush1.msra.mxu0 0.0
    %1510 = vmatprep.subr.mxu0 0.0
    %1511 = vmatpush1.msra.mxu0 0.0
    %1512 = vmatprep.subr.mxu0 0.0
    %1513 = vmatpush1.msra.mxu0 0.0
    %1514 = vmatprep.subr.mxu0 0.0
    %1515 = vmatpush1.msra.mxu0 0.0
    %1516 = vmatprep.subr.mxu0 0.0
    %1517 = vmatpush1.msra.mxu0 0.0
    %1518 = vmatprep.subr.mxu0 0.0
    %1519 = vmatpush1.msra.mxu0 0.0
    %1520 = vmatprep.subr.mxu0 0.0
    %1521 = vmatpush1.msra.mxu0 0.0
    %1522 = vmatprep.subr.mxu0 0.0
    %1523 = vmatpush1.msra.mxu0 0.0
    %1524 = vmatprep.subr.mxu0 0.0
    %1525 = vmatpush1.msra.mxu0 %v1493
    %1526 = vmatprep.subr.mxu0 0.0
    %1527 = vmatpush1.msra.mxu0 %v1492
    %1528 = vmatprep.subr.mxu0 0.0
    %1529 = vmatpush1.msra.mxu0 %v1491
    %1530 = vmatprep.subr.mxu0 0.0
    %1531 = vmatpush1.msra.mxu0 %v1490
    %1532 = vmatprep.subr.mxu0 0.0
    %1533 = vmatpush2.msra.mxu0 0.0
    %1534 = vmatprep.subr.mxu0 0.0
    %1535 = vmatpush2.msra.mxu0 0.0
    %1536 = vmatprep.subr.mxu0 0.0
    %1537 = vmatpush2.msra.mxu0 0.0
    %1538 = vmatprep.subr.mxu0 0.0
    %1539 = vmatpush2.msra.mxu0 0.0
    %1540 = vmatprep.subr.mxu0 0.0
    %1541 = vmatpush2.msra.mxu0 0.0
    %1542 = vmatprep.subr.mxu0 0.0
    %1543 = vmatpush2.msra.mxu0 0.0
    %1544 = vmatprep.subr.mxu0 0.0
    %1545 = vmatpush2.msra.mxu0 0.0
    %1546 = vmatprep.subr.mxu0 0.0
    %1547 = vmatpush2.msra.mxu0 0.0
    %1548 = vmatprep.subr.mxu0 0.0
    %1549 = vmatpush2.msra.mxu0 0.0
    %1550 = vmatprep.subr.mxu0 0.0
    %1551 = vmatpush2.msra.mxu0 0.0
    %1552 = vmatprep.subr.mxu0 0.0
    %1553 = vmatpush2.msra.mxu0 0.0
    %1554 = vmatprep.subr.mxu0 0.0
    %1555 = vmatpush2.msra.mxu0 0.0
    %1556 = vmatprep.subr.mxu0 0.0
    %1557 = vmatpush2.msra.mxu0 0.0
    %1558 = vmatprep.subr.mxu0 0.0
    %1559 = vmatpush2.msra.mxu0 0.0
    %1560 = vmatprep.subr.mxu0 0.0
    %1561 = vmatpush2.msra.mxu0 0.0
    %1562 = vmatprep.subr.mxu0 0.0
    %1563 = vmatpush2.msra.mxu0 0.0
    %1564 = vmatprep.mubr.f32.mxu0 0.0
    %1565 = vmatmul.mubr.f32.gmra.mxu0 %v1495
    %v1566 = vpop.f32.mrf.mxu0
    %v1567 = vadd.f32 0.0, %v1566
    %v1568 = vpop.f32.mrf.mxu0
    %1569 = vmatprep.mubr.f32.mxu0 0.0
    %1570 = vmatmul.mubr.f32.gmra.mxu0 %v1498
    %v1571 = vpop.f32.mrf.mxu0
    %v1572 = vadd.f32 0.0, %v1571
    %v1573 = vpop.f32.mrf.mxu0
    %1574 = vdwg.mxu0
    %v1575 = vadd.f32 %v1152, %v1567
    %v1576 = vadd.f32 %v1157, %v1572
    %1577 = vrot.lane.b32.xlu0 %v251, 32
    %v1578 = vpop.permute.xlu0 %1577
    %1579 = vrot.lane.b32.xlu0 %v253, 32
    %v1580 = vpop.permute.xlu0 %1579
    %v1581 = vsel %vm336, %v1578, 0
    %v1583 = vsel %vm336, %v1580, 0
    %1585 = vmatprep.subr.mxu0 0.0
    %1586 = vmatpush1.xpose.msra.mxu0 0.0
    %1587 = vmatprep.subr.mxu0 0.0
    %1588 = vmatpush1.xpose.msra.mxu0 0.0
    %1589 = vmatprep.subr.mxu0 0.0
    %1590 = vmatpush1.xpose.msra.mxu0 0.0
    %1591 = vmatprep.subr.mxu0 0.0
    %1592 = vmatpush1.xpose.msra.mxu0 0.0
    %1593 = vmatprep.subr.mxu0 0.0
    %1594 = vmatpush1.xpose.msra.mxu0 0.0
    %1595 = vmatprep.subr.mxu0 0.0
    %1596 = vmatpush1.xpose.msra.mxu0 0.0
    %1597 = vmatprep.subr.mxu0 0.0
    %1598 = vmatpush1.xpose.msra.mxu0 0.0
    %1599 = vmatprep.subr.mxu0 0.0
    %1600 = vmatpush1.xpose.msra.mxu0 0.0
    %1601 = vmatprep.subr.mxu0 0.0
    %1602 = vmatpush1.xpose.msra.mxu0 0.0
    %1603 = vmatprep.subr.mxu0 0.0
    %1604 = vmatpush1.xpose.msra.mxu0 0.0
    %1605 = vmatprep.subr.mxu0 0.0
    %1606 = vmatpush1.xpose.msra.mxu0 0.0
    %1607 = vmatprep.subr.mxu0 0.0
    %1608 = vmatpush1.xpose.msra.mxu0 0.0
    %1609 = vmatprep.subr.mxu0 0.0
    %1610 = vmatpush1.xpose.msra.mxu0 0.0
    %1611 = vmatprep.subr.mxu0 0.0
    %1612 = vmatpush1.xpose.msra.mxu0 0.0
    %1613 = vmatprep.subr.mxu0 0.0
    %1614 = vmatpush1.xpose.msra.mxu0 0.0
    %1615 = vmatprep.subr.mxu0 0.0
    %1616 = vmatpush1.xpose.msra.mxu0 %v1583
    %1617 = vmatprep.subr.mxu0 0.0
    %1618 = vmatpush2.xpose.msra.mxu0 0.0
    %1619 = vmatprep.subr.mxu0 0.0
    %1620 = vmatpush2.xpose.msra.mxu0 0.0
    %1621 = vmatprep.subr.mxu0 0.0
    %1622 = vmatpush2.xpose.msra.mxu0 0.0
    %1623 = vmatprep.subr.mxu0 0.0
    %1624 = vmatpush2.xpose.msra.mxu0 0.0
    %1625 = vmatprep.subr.mxu0 0.0
    %1626 = vmatpush2.xpose.msra.mxu0 0.0
    %1627 = vmatprep.subr.mxu0 0.0
    %1628 = vmatpush2.xpose.msra.mxu0 0.0
    %1629 = vmatprep.subr.mxu0 0.0
    %1630 = vmatpush2.xpose.msra.mxu0 0.0
    %1631 = vmatprep.subr.mxu0 0.0
    %1632 = vmatpush2.xpose.msra.mxu0 0.0
    %1633 = vmatprep.subr.mxu0 0.0
    %1634 = vmatpush2.xpose.msra.mxu0 0.0
    %1635 = vmatprep.subr.mxu0 0.0
    %1636 = vmatpush2.xpose.msra.mxu0 0.0
    %1637 = vmatprep.subr.mxu0 0.0
    %1638 = vmatpush2.xpose.msra.mxu0 0.0
    %1639 = vmatprep.subr.mxu0 0.0
    %1640 = vmatpush2.xpose.msra.mxu0 0.0
    %1641 = vmatprep.subr.mxu0 0.0
    %1642 = vmatpush2.xpose.msra.mxu0 0.0
    %1643 = vmatprep.subr.mxu0 0.0
    %1644 = vmatpush2.xpose.msra.mxu0 0.0
    %1645 = vmatprep.subr.mxu0 0.0
    %1646 = vmatpush2.xpose.msra.mxu0 0.0
    %1647 = vmatprep.subr.mxu0 0.0
    %1648 = vmatpush2.xpose.msra.mxu0 0.0
    %1649 = vmatprep.mubr.f32.mxu0 0.0
    %1650 = vmatmul.mubr.f32.gmra.mxu0 %v1581
    %v1651 = vpop.f32.mrf.mxu0
    %v1652 = vadd.f32 0.0, %v1651
    %v1653 = vpop.f32.mrf.mxu0
    %1654 = vdwg.mxu0
    %1655 = vrot.lane.b32.xlu0 %v257, 32
    %v1656 = vpop.permute.xlu0 %1655
    %1657 = vrot.lane.b32.xlu0 %v259, 32
    %v1658 = vpop.permute.xlu0 %1657
    %v1659 = vsel %vm336, %v1656, 0
    %v1661 = vsel %vm336, %v1658, 0
    %1663 = vmatprep.subr.mxu0 0.0
    %1664 = vmatpush1.xpose.msra.mxu0 0.0
    %1665 = vmatprep.subr.mxu0 0.0
    %1666 = vmatpush1.xpose.msra.mxu0 0.0
    %1667 = vmatprep.subr.mxu0 0.0
    %1668 = vmatpush1.xpose.msra.mxu0 0.0
    %1669 = vmatprep.subr.mxu0 0.0
    %1670 = vmatpush1.xpose.msra.mxu0 0.0
    %1671 = vmatprep.subr.mxu0 0.0
    %1672 = vmatpush1.xpose.msra.mxu0 0.0
    %1673 = vmatprep.subr.mxu0 0.0
    %1674 = vmatpush1.xpose.msra.mxu0 0.0
    %1675 = vmatprep.subr.mxu0 0.0
    %1676 = vmatpush1.xpose.msra.mxu0 0.0
    %1677 = vmatprep.subr.mxu0 0.0
    %1678 = vmatpush1.xpose.msra.mxu0 0.0
    %1679 = vmatprep.subr.mxu0 0.0
    %1680 = vmatpush1.xpose.msra.mxu0 0.0
    %1681 = vmatprep.subr.mxu0 0.0
    %1682 = vmatpush1.xpose.msra.mxu0 0.0
    %1683 = vmatprep.subr.mxu0 0.0
    %1684 = vmatpush1.xpose.msra.mxu0 0.0
    %1685 = vmatprep.subr.mxu0 0.0
    %1686 = vmatpush1.xpose.msra.mxu0 0.0
    %1687 = vmatprep.subr.mxu0 0.0
    %1688 = vmatpush1.xpose.msra.mxu0 0.0
    %1689 = vmatprep.subr.mxu0 0.0
    %1690 = vmatpush1.xpose.msra.mxu0 0.0
    %1691 = vmatprep.subr.mxu0 0.0
    %1692 = vmatpush1.xpose.msra.mxu0 0.0
    %1693 = vmatprep.subr.mxu0 0.0
    %1694 = vmatpush1.xpose.msra.mxu0 %v1661
    %1695 = vmatprep.subr.mxu0 0.0
    %1696 = vmatpush2.xpose.msra.mxu0 0.0
    %1697 = vmatprep.subr.mxu0 0.0
    %1698 = vmatpush2.xpose.msra.mxu0 0.0
    %1699 = vmatprep.subr.mxu0 0.0
    %1700 = vmatpush2.xpose.msra.mxu0 0.0
    %1701 = vmatprep.subr.mxu0 0.0
    %1702 = vmatpush2.xpose.msra.mxu0 0.0
    %1703 = vmatprep.subr.mxu0 0.0
    %1704 = vmatpush2.xpose.msra.mxu0 0.0
    %1705 = vmatprep.subr.mxu0 0.0
    %1706 = vmatpush2.xpose.msra.mxu0 0.0
    %1707 = vmatprep.subr.mxu0 0.0
    %1708 = vmatpush2.xpose.msra.mxu0 0.0
    %1709 = vmatprep.subr.mxu0 0.0
    %1710 = vmatpush2.xpose.msra.mxu0 0.0
    %1711 = vmatprep.subr.mxu0 0.0
    %1712 = vmatpush2.xpose.msra.mxu0 0.0
    %1713 = vmatprep.subr.mxu0 0.0
    %1714 = vmatpush2.xpose.msra.mxu0 0.0
    %1715 = vmatprep.subr.mxu0 0.0
    %1716 = vmatpush2.xpose.msra.mxu0 0.0
    %1717 = vmatprep.subr.mxu0 0.0
    %1718 = vmatpush2.xpose.msra.mxu0 0.0
    %1719 = vmatprep.subr.mxu0 0.0
    %1720 = vmatpush2.xpose.msra.mxu0 0.0
    %1721 = vmatprep.subr.mxu0 0.0
    %1722 = vmatpush2.xpose.msra.mxu0 0.0
    %1723 = vmatprep.subr.mxu0 0.0
    %1724 = vmatpush2.xpose.msra.mxu0 0.0
    %1725 = vmatprep.subr.mxu0 0.0
    %1726 = vmatpush2.xpose.msra.mxu0 0.0
    %1727 = vmatprep.mubr.f32.mxu0 0.0
    %1728 = vmatmul.mubr.f32.gmra.mxu0 %v1659
    %v1729 = vpop.f32.mrf.mxu0
    %v1730 = vadd.f32 0.0, %v1729
    %v1731 = vpop.f32.mrf.mxu0
    %1732 = vdwg.mxu0
    %v1733 = vsel %vm489, %v1652, -inf
    %1734 = vmax.xlane.f32.xlu0 %v1733
    %v1735 = vpop.xlane.xlu0 %1734
    %v1736 = vsel %vm489, %v1730, -inf
    %1737 = vmax.xlane.f32.xlu0 %v1736
    %v1738 = vpop.xlane.xlu0 %1737
    %v1739 = vsub.f32 %v1652, %v1735
    %v1740 = vsub.f32 %v1730, %v1738
    %v1741 = vmul.f32 %v1739, 1.442695
    %v1742 = vpow.pop %v1741
    %v1743 = vmul.f32 %v1740, 1.442695
    %v1744 = vpow.pop %v1743
    %v1745 = vsel %vm489, %v1742, 0.0
    %1746 = vadd.xlane.f32.xlu0 %v1745
    %v1747 = vpop.xlane.xlu0 %1746
    %v1748 = vsel %vm489, %v1744, 0.0
    %1749 = vadd.xlane.f32.xlu0 %v1748
    %v1750 = vpop.xlane.xlu0 %1749
    %1751 = vrot.lane.b32.xlu0 %v328, 32
    %v1752 = vpop.permute.xlu0 %1751
    %v1755 = vsel %vm489, %v1742, 0
    %1757 = vmatprep.subr.mxu0 0.0
    %1758 = vmatpush1.msra.mxu0 0.0
    %1759 = vmatprep.subr.mxu0 0.0
    %1760 = vmatpush1.msra.mxu0 0.0
    %1761 = vmatprep.subr.mxu0 0.0
    %1762 = vmatpush1.msra.mxu0 0.0
    %1763 = vmatprep.subr.mxu0 0.0
    %1764 = vmatpush1.msra.mxu0 0.0
    %1765 = vmatprep.subr.mxu0 0.0
    %1766 = vmatpush1.msra.mxu0 0.0
    %1767 = vmatprep.subr.mxu0 0.0
    %1768 = vmatpush1.msra.mxu0 0.0
    %1769 = vmatprep.subr.mxu0 0.0
    %1770 = vmatpush1.msra.mxu0 0.0
    %1771 = vmatprep.subr.mxu0 0.0
    %1772 = vmatpush1.msra.mxu0 0.0
    %1773 = vmatprep.subr.mxu0 0.0
    %1774 = vmatpush1.msra.mxu0 0.0
    %1775 = vmatprep.subr.mxu0 0.0
    %1776 = vmatpush1.msra.mxu0 0.0
    %1777 = vmatprep.subr.mxu0 0.0
    %1778 = vmatpush1.msra.mxu0 0.0
    %1779 = vmatprep.subr.mxu0 0.0
    %1780 = vmatpush1.msra.mxu0 0.0
    %1781 = vmatprep.subr.mxu0 0.0
    %1782 = vmatpush1.msra.mxu0 0.0
    %1783 = vmatprep.subr.mxu0 0.0
    %1784 = vmatpush1.msra.mxu0 0.0
    %1785 = vmatprep.subr.mxu0 0.0
    %1786 = vmatpush1.msra.mxu0 0.0
    %1787 = vmatprep.subr.mxu0 0.0
    %1788 = vmatpush1.msra.mxu0 %v1752
    %1789 = vmatprep.subr.mxu0 0.0
    %1790 = vmatpush2.msra.mxu0 0.0
    %1791 = vmatprep.subr.mxu0 0.0
    %1792 = vmatpush2.msra.mxu0 0.0
    %1793 = vmatprep.subr.mxu0 0.0
    %1794 = vmatpush2.msra.mxu0 0.0
    %1795 = vmatprep.subr.mxu0 0.0
    %1796 = vmatpush2.msra.mxu0 0.0
    %1797 = vmatprep.subr.mxu0 0.0
    %1798 = vmatpush2.msra.mxu0 0.0
    %1799 = vmatprep.subr.mxu0 0.0
    %1800 = vmatpush2.msra.mxu0 0.0
    %1801 = vmatprep.subr.mxu0 0.0
    %1802 = vmatpush2.msra.mxu0 0.0
    %1803 = vmatprep.subr.mxu0 0.0
    %1804 = vmatpush2.msra.mxu0 0.0
    %1805 = vmatprep.subr.mxu0 0.0
    %1806 = vmatpush2.msra.mxu0 0.0
    %1807 = vmatprep.subr.mxu0 0.0
    %1808 = vmatpush2.msra.mxu0 0.0
    %1809 = vmatprep.subr.mxu0 0.0
    %1810 = vmatpush2.msra.mxu0 0.0
    %1811 = vmatprep.subr.mxu0 0.0
    %1812 = vmatpush2.msra.mxu0 0.0
    %1813 = vmatprep.subr.mxu0 0.0
    %1814 = vmatpush2.msra.mxu0 0.0
    %1815 = vmatprep.subr.mxu0 0.0
    %1816 = vmatpush2.msra.mxu0 0.0
    %1817 = vmatprep.subr.mxu0 0.0
    %1818 = vmatpush2.msra.mxu0 0.0
    %1819 = vmatprep.subr.mxu0 0.0
    %1820 = vmatpush2.msra.mxu0 0.0
    %1821 = vmatprep.mubr.f32.mxu0 0.0
    %1822 = vmatmul.mubr.f32.gmra.mxu0 %v1755
    %v1823 = vpop.f32.mrf.mxu0
    %v1824 = vadd.f32 0.0, %v1823
    %v1825 = vpop.f32.mrf.mxu0
    %1826 = vdwg.mxu0
    %1827 = vrot.lane.b32.xlu0 %v333, 32
    %v1828 = vpop.permute.xlu0 %1827
    %v1831 = vsel %vm489, %v1744, 0
    %1833 = vmatprep.subr.mxu0 0.0
    %1834 = vmatpush1.msra.mxu0 0.0
    %1835 = vmatprep.subr.mxu0 0.0
    %1836 = vmatpush1.msra.mxu0 0.0
    %1837 = vmatprep.subr.mxu0 0.0
    %1838 = vmatpush1.msra.mxu0 0.0
    %1839 = vmatprep.subr.mxu0 0.0
    %1840 = vmatpush1.msra.mxu0 0.0
    %1841 = vmatprep.subr.mxu0 0.0
    %1842 = vmatpush1.msra.mxu0 0.0
    %1843 = vmatprep.subr.mxu0 0.0
    %1844 = vmatpush1.msra.mxu0 0.0
    %1845 = vmatprep.subr.mxu0 0.0
    %1846 = vmatpush1.msra.mxu0 0.0
    %1847 = vmatprep.subr.mxu0 0.0
    %1848 = vmatpush1.msra.mxu0 0.0
    %1849 = vmatprep.subr.mxu0 0.0
    %1850 = vmatpush1.msra.mxu0 0.0
    %1851 = vmatprep.subr.mxu0 0.0
    %1852 = vmatpush1.msra.mxu0 0.0
    %1853 = vmatprep.subr.mxu0 0.0
    %1854 = vmatpush1.msra.mxu0 0.0
    %1855 = vmatprep.subr.mxu0 0.0
    %1856 = vmatpush1.msra.mxu0 0.0
    %1857 = vmatprep.subr.mxu0 0.0
    %1858 = vmatpush1.msra.mxu0 0.0
    %1859 = vmatprep.subr.mxu0 0.0
    %1860 = vmatpush1.msra.mxu0 0.0
    %1861 = vmatprep.subr.mxu0 0.0
    %1862 = vmatpush1.msra.mxu0 0.0
    %1863 = vmatprep.subr.mxu0 0.0
    %1864 = vmatpush1.msra.mxu0 %v1828
    %1865 = vmatprep.subr.mxu0 0.0
    %1866 = vmatpush2.msra.mxu0 0.0
    %1867 = vmatprep.subr.mxu0 0.0
    %1868 = vmatpush2.msra.mxu0 0.0
    %1869 = vmatprep.subr.mxu0 0.0
    %1870 = vmatpush2.msra.mxu0 0.0
    %1871 = vmatprep.subr.mxu0 0.0
    %1872 = vmatpush2.msra.mxu0 0.0
    %1873 = vmatprep.subr.mxu0 0.0
    %1874 = vmatpush2.msra.mxu0 0.0
    %1875 = vmatprep.subr.mxu0 0.0
    %1876 = vmatpush2.msra.mxu0 0.0
    %1877 = vmatprep.subr.mxu0 0.0
    %1878 = vmatpush2.msra.mxu0 0.0
    %1879 = vmatprep.subr.mxu0 0.0
    %1880 = vmatpush2.msra.mxu0 0.0
    %1881 = vmatprep.subr.mxu0 0.0
    %1882 = vmatpush2.msra.mxu0 0.0
    %1883 = vmatprep.subr.mxu0 0.0
    %1884 = vmatpush2.msra.mxu0 0.0
    %1885 = vmatprep.subr.mxu0 0.0
    %1886 = vmatpush2.msra.mxu0 0.0
    %1887 = vmatprep.subr.mxu0 0.0
    %1888 = vmatpush2.msra.mxu0 0.0
    %1889 = vmatprep.subr.mxu0 0.0
    %1890 = vmatpush2.msra.mxu0 0.0
    %1891 = vmatprep.subr.mxu0 0.0
    %1892 = vmatpush2.msra.mxu0 0.0
    %1893 = vmatprep.subr.mxu0 0.0
    %1894 = vmatpush2.msra.mxu0 0.0
    %1895 = vmatprep.subr.mxu0 0.0
    %1896 = vmatpush2.msra.mxu0 0.0
    %1897 = vmatprep.mubr.f32.mxu0 0.0
    %1898 = vmatmul.mubr.f32.gmra.mxu0 %v1831
    %v1899 = vpop.f32.mrf.mxu0
    %v1900 = vadd.f32 0.0, %v1899
    %v1901 = vpop.f32.mrf.mxu0
    %1902 = vdwg.mxu0
    %v1903 = vrcp.pop %v1747
    %v1904 = vmul.f32 %v1824, %v1903
    %v1905 = vrcp.pop %v1750
    %v1906 = vmul.f32 %v1900, %v1905
    %v1907 = vld [vmem:[#allocation7 + $0x60] sm:$0xff]
    %v1908 = vld [vmem:[#allocation7 + $0x68] sm:$0xff]
    %v1909 = vld [vmem:[#allocation7 + $0x70] sm:$0xff]
    %v1910 = vld [vmem:[#allocation7 + $0x78] sm:$0xff]
    %v1912 = vsel %vm336, %v1904, 0
    %v1915 = vsel %vm336, %v1906, 0
    %1917 = vmatprep.subr.mxu0 0.0
    %1918 = vmatpush1.msra.mxu0 0.0
    %1919 = vmatprep.subr.mxu0 0.0
    %1920 = vmatpush1.msra.mxu0 0.0
    %1921 = vmatprep.subr.mxu0 0.0
    %1922 = vmatpush1.msra.mxu0 0.0
    %1923 = vmatprep.subr.mxu0 0.0
    %1924 = vmatpush1.msra.mxu0 0.0
    %1925 = vmatprep.subr.mxu0 0.0
    %1926 = vmatpush1.msra.mxu0 0.0
    %1927 = vmatprep.subr.mxu0 0.0
    %1928 = vmatpush1.msra.mxu0 0.0
    %1929 = vmatprep.subr.mxu0 0.0
    %1930 = vmatpush1.msra.mxu0 0.0
    %1931 = vmatprep.subr.mxu0 0.0
    %1932 = vmatpush1.msra.mxu0 0.0
    %1933 = vmatprep.subr.mxu0 0.0
    %1934 = vmatpush1.msra.mxu0 0.0
    %1935 = vmatprep.subr.mxu0 0.0
    %1936 = vmatpush1.msra.mxu0 0.0
    %1937 = vmatprep.subr.mxu0 0.0
    %1938 = vmatpush1.msra.mxu0 0.0
    %1939 = vmatprep.subr.mxu0 0.0
    %1940 = vmatpush1.msra.mxu0 0.0
    %1941 = vmatprep.subr.mxu0 0.0
    %1942 = vmatpush1.msra.mxu0 %v1910
    %1943 = vmatprep.subr.mxu0 0.0
    %1944 = vmatpush1.msra.mxu0 %v1909
    %1945 = vmatprep.subr.mxu0 0.0
    %1946 = vmatpush1.msra.mxu0 %v1908
    %1947 = vmatprep.subr.mxu0 0.0
    %1948 = vmatpush1.msra.mxu0 %v1907
    %1949 = vmatprep.subr.mxu0 0.0
    %1950 = vmatpush2.msra.mxu0 0.0
    %1951 = vmatprep.subr.mxu0 0.0
    %1952 = vmatpush2.msra.mxu0 0.0
    %1953 = vmatprep.subr.mxu0 0.0
    %1954 = vmatpush2.msra.mxu0 0.0
    %1955 = vmatprep.subr.mxu0 0.0
    %1956 = vmatpush2.msra.mxu0 0.0
    %1957 = vmatprep.subr.mxu0 0.0
    %1958 = vmatpush2.msra.mxu0 0.0
    %1959 = vmatprep.subr.mxu0 0.0
    %1960 = vmatpush2.msra.mxu0 0.0
    %1961 = vmatprep.subr.mxu0 0.0
    %1962 = vmatpush2.msra.mxu0 0.0
    %1963 = vmatprep.subr.mxu0 0.0
    %1964 = vmatpush2.msra.mxu0 0.0
    %1965 = vmatprep.subr.mxu0 0.0
    %1966 = vmatpush2.msra.mxu0 0.0
    %1967 = vmatprep.subr.mxu0 0.0
    %1968 = vmatpush2.msra.mxu0 0.0
    %1969 = vmatprep.subr.mxu0 0.0
    %1970 = vmatpush2.msra.mxu0 0.0
    %1971 = vmatprep.subr.mxu0 0.0
    %1972 = vmatpush2.msra.mxu0 0.0
    %1973 = vmatprep.subr.mxu0 0.0
    %1974 = vmatpush2.msra.mxu0 0.0
    %1975 = vmatprep.subr.mxu0 0.0
    %1976 = vmatpush2.msra.mxu0 0.0
    %1977 = vmatprep.subr.mxu0 0.0
    %1978 = vmatpush2.msra.mxu0 0.0
    %1979 = vmatprep.subr.mxu0 0.0
    %1980 = vmatpush2.msra.mxu0 0.0
    %1981 = vmatprep.mubr.f32.mxu0 0.0
    %1982 = vmatmul.mubr.f32.gmra.mxu0 %v1912
    %v1983 = vpop.f32.mrf.mxu0
    %v1984 = vadd.f32 0.0, %v1983
    %v1985 = vpop.f32.mrf.mxu0
    %1986 = vmatprep.mubr.f32.mxu0 0.0
    %1987 = vmatmul.mubr.f32.gmra.mxu0 %v1915
    %v1988 = vpop.f32.mrf.mxu0
    %v1989 = vadd.f32 0.0, %v1988
    %v1990 = vpop.f32.mrf.mxu0
    %1991 = vdwg.mxu0
    %v1992 = vadd.f32 %v1575, %v1984
    %v1993 = vadd.f32 %v1576, %v1989
    %v1994 = vld [vmem:[#allocation2] sm:$0xff]
    %v1995 = vld [vmem:[#allocation2 + $0x8] sm:$0xff]
    %v1996 = vld [vmem:[%s3] sm:$0x1]
    %v1998 = vlaneseq
    %v1999 = vshrl.u32 %v1998, 7
    %v2000 = vsub.s32 0, %v1999
    %v2001 = vrot.slane %v1996, %v2000
    %v2003 = vadd.f32 %v1992, %v2001
    %v2004 = vadd.f32 %v1993, %v2001
    %v2005 = vadd.f32 %v2003, %v1994
    %v2006 = vadd.f32 %v2004, %v1995
    %v2007 = vld [vmem:[#allocation8] sm:$0x1]
    %v2008 = vld [vmem:[%s5] sm:$0x1]
    %2009 = vadd.xlane.f32.xlu0 %v2005
    %v2010 = vpop.xlane.xlu0 %2009
    %2011 = vadd.xlane.f32.xlu0 %v2006
    %v2012 = vpop.xlane.xlu0 %2011
    %v2013 = vrcp.pop 128.0
    %v2014 = vmul.f32 %v2010, %v2013
    %v2015 = vmul.f32 %v2012, %v2013
    %v2016 = vsub.f32 %v2005, %v2014
    %v2017 = vsub.f32 %v2006, %v2015
    %v2018 = vmul.f32 %v2016, %v2016
    %v2019 = vmul.f32 %v2017, %v2017
    %2020 = vadd.xlane.f32.xlu0 %v2018
    %v2021 = vpop.xlane.xlu0 %2020
    %2022 = vadd.xlane.f32.xlu0 %v2019
    %v2023 = vpop.xlane.xlu0 %2022
    %v2024 = vmul.f32 %v2021, %v2013
    %v2025 = vmul.f32 %v2023, %v2013
    %v2026 = vadd.f32 %v2024, 1e-05
    %v2027 = vadd.f32 %v2025, 1e-05
    %v2028 = vrsqrt.pop %v2026
    %v2029 = vrsqrt.pop %v2027
    %v2030 = vmul.f32 %v2016, %v2028
    %v2031 = vmul.f32 %v2017, %v2029
    %v2033 = vlaneseq
    %v2034 = vshrl.u32 %v2033, 7
    %v2035 = vsub.s32 0, %v2034
    %v2036 = vrot.slane %v2007, %v2035
    %v2038 = vmul.f32 %v2030, %v2036
    %v2039 = vmul.f32 %v2031, %v2036
    %v2041 = vlaneseq
    %v2042 = vshrl.u32 %v2041, 7
    %v2043 = vsub.s32 0, %v2042
    %v2044 = vrot.slane %v2008, %v2043
    %v2046 = vadd.f32 %v2038, %v2044
    %v2047 = vadd.f32 %v2039, %v2044
    %v2048 = vmul.f32 %v2046, 0.5
    %v2049 = vmul.f32 %v2047, 0.5
    %v2050 = vmul.f32 %v2046, 0.70710677
    %v2051 = vmul.f32 %v2047, 0.70710677
    %v2052 = verf.f32.pop %v2050
    %v2053 = verf.f32.pop %v2051
    %v2054 = vadd.f32 %v2052, 1.0
    %v2055 = vadd.f32 %v2053, 1.0
    %v2056 = vmul.f32 %v2048, %v2054
    %v2057 = vmul.f32 %v2049, %v2055
    %v2058 = vld [vmem:[%s6] sm:$0x1]
    %v2059 = vld [vmem:[%s7] sm:$0x1]
    %2060 = vadd.xlane.f32.xlu0 %v2056
    %v2061 = vpop.xlane.xlu0 %2060
    %2062 = vadd.xlane.f32.xlu0 %v2057
    %v2063 = vpop.xlane.xlu0 %2062
    %v2064 = vmul.f32 %v2061, %v2013
    %v2065 = vmul.f32 %v2063, %v2013
    %v2066 = vsub.f32 %v2056, %v2064
    %v2067 = vsub.f32 %v2057, %v2065
    %v2068 = vmul.f32 %v2066, %v2066
    %v2069 = vmul.f32 %v2067, %v2067
    %2070 = vadd.xlane.f32.xlu0 %v2068
    %v2071 = vpop.xlane.xlu0 %2070
    %2072 = vadd.xlane.f32.xlu0 %v2069
    %v2073 = vpop.xlane.xlu0 %2072
    %v2074 = vmul.f32 %v2071, %v2013
    %v2075 = vmul.f32 %v2073, %v2013
    %v2076 = vadd.f32 %v2074, 1e-05
    %v2077 = vadd.f32 %v2075, 1e-05
    %v2078 = vrsqrt.pop %v2076
    %v2079 = vrsqrt.pop %v2077
    %v2080 = vmul.f32 %v2066, %v2078
    %v2081 = vmul.f32 %v2067, %v2079
    %v2083 = vlaneseq
    %v2084 = vshrl.u32 %v2083, 7
    %v2085 = vsub.s32 0, %v2084
    %v2086 = vrot.slane %v2058, %v2085
    %v2088 = vmul.f32 %v2080, %v2086
    %v2089 = vmul.f32 %v2081, %v2086
    %v2091 = vlaneseq
    %v2092 = vshrl.u32 %v2091, 7
    %v2093 = vsub.s32 0, %v2092
    %v2094 = vrot.slane %v2059, %v2093
    %v2096 = vadd.f32 %v2088, %v2094
    %v2097 = vadd.f32 %v2089, %v2094
    %v2098 = vld [vmem:[#allocation10] sm:$0xff]
    %v2099 = vld [vmem:[#allocation10 + $0x8] sm:$0xff]
    %v2100 = vld [vmem:[#allocation10 + $0x10] sm:$0xff]
    %v2101 = vld [vmem:[#allocation10 + $0x18] sm:$0xff]
    %v2102 = vld [vmem:[#allocation10 + $0x20] sm:$0xff]
    %v2103 = vld [vmem:[#allocation10 + $0x28] sm:$0xff]
    %v2104 = vld [vmem:[#allocation10 + $0x30] sm:$0xff]
    %v2105 = vld [vmem:[#allocation10 + $0x38] sm:$0xff]
    %v2106 = vld [vmem:[#allocation10 + $0x40] sm:$0xff]
    %v2107 = vld [vmem:[#allocation10 + $0x48] sm:$0xff]
    %v2108 = vld [vmem:[#allocation10 + $0x50] sm:$0xff]
    %v2109 = vld [vmem:[#allocation10 + $0x58] sm:$0xff]
    %v2110 = vld [vmem:[#allocation10 + $0x60] sm:$0xff]
    %v2111 = vld [vmem:[#allocation10 + $0x68] sm:$0xff]
    %v2112 = vld [vmem:[#allocation10 + $0x70] sm:$0xff]
    %v2113 = vld [vmem:[#allocation10 + $0x78] sm:$0xff]
    %v2114 = vld [vmem:[#allocation10 + $0x80] sm:$0xff]
    %v2115 = vld [vmem:[#allocation10 + $0x88] sm:$0xff]
    %v2116 = vld [vmem:[#allocation10 + $0x90] sm:$0xff]
    %v2117 = vld [vmem:[#allocation10 + $0x98] sm:$0xff]
    %v2118 = vld [vmem:[#allocation10 + $0xa0] sm:$0xff]
    %v2119 = vld [vmem:[#allocation10 + $0xa8] sm:$0xff]
    %v2120 = vld [vmem:[#allocation10 + $0xb0] sm:$0xff]
    %v2121 = vld [vmem:[#allocation10 + $0xb8] sm:$0xff]
    %v2122 = vld [vmem:[#allocation10 + $0xc0] sm:$0xff]
    %v2123 = vld [vmem:[#allocation10 + $0xc8] sm:$0xff]
    %v2124 = vld [vmem:[#allocation10 + $0xd0] sm:$0xff]
    %v2125 = vld [vmem:[#allocation10 + $0xd8] sm:$0xff]
    %v2126 = vld [vmem:[#allocation10 + $0xe0] sm:$0xff]
    %v2127 = vld [vmem:[#allocation10 + $0xe8] sm:$0xff]
    %v2128 = vld [vmem:[#allocation10 + $0xf0] sm:$0xff]
    %v2129 = vld [vmem:[#allocation10 + $0xf8] sm:$0xff]
    %v2130 = vld [vmem:[%s9] sm:$0x3]
    %v2132 = vlaneseq
    %v2133 = vshrl.u32 %v2132, 7
    %v2134 = vsub.s32 0, %v2133
    %v2135 = vrot.slane %v2130, %v2134
    %v2136 = vlaneseq
    %v2137 = vshrl.u32 %v2136, 7
    %v2138 = vsub.s32 1, %v2137
    %v2139 = vrot.slane %v2130, %v2138
    %2142 = vmatprep.subr.mxu0 %v2129
    %2143 = vmatpush1.msra.mxu0 %v2128
    %2144 = vmatprep.subr.mxu0 %v2127
    %2145 = vmatpush1.msra.mxu0 %v2126
    %2146 = vmatprep.subr.mxu0 %v2125
    %2147 = vmatpush1.msra.mxu0 %v2124
    %2148 = vmatprep.subr.mxu0 %v2123
    %2149 = vmatpush1.msra.mxu0 %v2122
    %2150 = vmatprep.subr.mxu0 %v2121
    %2151 = vmatpush1.msra.mxu0 %v2120
    %2152 = vmatprep.subr.mxu0 %v2119
    %2153 = vmatpush1.msra.mxu0 %v2118
    %2154 = vmatprep.subr.mxu0 %v2117
    %2155 = vmatpush1.msra.mxu0 %v2116
    %2156 = vmatprep.subr.mxu0 %v2115
    %2157 = vmatpush1.msra.mxu0 %v2114
    %2158 = vmatprep.subr.mxu0 %v2113
    %2159 = vmatpush1.msra.mxu0 %v2112
    %2160 = vmatprep.subr.mxu0 %v2111
    %2161 = vmatpush1.msra.mxu0 %v2110
    %2162 = vmatprep.subr.mxu0 %v2109
    %2163 = vmatpush1.msra.mxu0 %v2108
    %2164 = vmatprep.subr.mxu0 %v2107
    %2165 = vmatpush1.msra.mxu0 %v2106
    %2166 = vmatprep.subr.mxu0 %v2105
    %2167 = vmatpush1.msra.mxu0 %v2104
    %2168 = vmatprep.subr.mxu0 %v2103
    %2169 = vmatpush1.msra.mxu0 %v2102
    %2170 = vmatprep.subr.mxu0 %v2101
    %2171 = vmatpush1.msra.mxu0 %v2100
    %2172 = vmatprep.subr.mxu0 %v2099
    %2173 = vmatpush1.msra.mxu0 %v2098
    %2174 = vmatprep.subr.mxu0 0.0
    %2175 = vmatpush2.msra.mxu0 0.0
    %2176 = vmatprep.subr.mxu0 0.0
    %2177 = vmatpush2.msra.mxu0 0.0
    %2178 = vmatprep.subr.mxu0 0.0
    %2179 = vmatpush2.msra.mxu0 0.0
    %2180 = vmatprep.subr.mxu0 0.0
    %2181 = vmatpush2.msra.mxu0 0.0
    %2182 = vmatprep.subr.mxu0 0.0
    %2183 = vmatpush2.msra.mxu0 0.0
    %2184 = vmatprep.subr.mxu0 0.0
    %2185 = vmatpush2.msra.mxu0 0.0
    %2186 = vmatprep.subr.mxu0 0.0
    %2187 = vmatpush2.msra.mxu0 0.0
    %2188 = vmatprep.subr.mxu0 0.0
    %2189 = vmatpush2.msra.mxu0 0.0
    %2190 = vmatprep.subr.mxu0 0.0
    %2191 = vmatpush2.msra.mxu0 0.0
    %2192 = vmatprep.subr.mxu0 0.0
    %2193 = vmatpush2.msra.mxu0 0.0
    %2194 = vmatprep.subr.mxu0 0.0
    %2195 = vmatpush2.msra.mxu0 0.0
    %2196 = vmatprep.subr.mxu0 0.0
    %2197 = vmatpush2.msra.mxu0 0.0
    %2198 = vmatprep.subr.mxu0 0.0
    %2199 = vmatpush2.msra.mxu0 0.0
    %2200 = vmatprep.subr.mxu0 0.0
    %2201 = vmatpush2.msra.mxu0 0.0
    %2202 = vmatprep.subr.mxu0 0.0
    %2203 = vmatpush2.msra.mxu0 0.0
    %2204 = vmatprep.subr.mxu0 0.0
    %2205 = vmatpush2.msra.mxu0 0.0
    %2206 = vmatprep.mubr.f32.mxu0 0.0
    %2207 = vmatmul.mubr.f32.gmra.mxu0 %v2096
    %v2208 = vpop.f32.mrf.mxu0
    %v2209 = vadd.f32 %v2135, %v2208
    %v2210 = vpop.f32.mrf.mxu0
    %v2211 = vadd.f32 %v2139, %v2210
    %2212 = vmatprep.mubr.f32.mxu0 0.0
    %2213 = vmatmul.mubr.f32.gmra.mxu0 %v2097
    %v2214 = vpop.f32.mrf.mxu0
    %v2215 = vadd.f32 %v2135, %v2214
    %v2216 = vpop.f32.mrf.mxu0
    %v2217 = vadd.f32 %v2139, %v2216
    %2218 = vdwg.mxu0
    %v2219 = vmul.f32 %v2209, 0.5
    %v2220 = vmul.f32 %v2211, 0.5
    %v2221 = vmul.f32 %v2215, 0.5
    %v2222 = vmul.f32 %v2217, 0.5
    %v2223 = vmul.f32 %v2209, 0.70710677
    %v2224 = vmul.f32 %v2211, 0.70710677
    %v2225 = vmul.f32 %v2215, 0.70710677
    %v2226 = vmul.f32 %v2217, 0.70710677
    %v2227 = verf.f32.pop %v2223
    %v2228 = verf.f32.pop %v2224
    %v2229 = verf.f32.pop %v2225
    %v2230 = verf.f32.pop %v2226
    %v2231 = vadd.f32 %v2227, 1.0
    %v2232 = vadd.f32 %v2228, 1.0
    %v2233 = vadd.f32 %v2229, 1.0
    %v2234 = vadd.f32 %v2230, 1.0
    %v2235 = vmul.f32 %v2219, %v2231
    %v2236 = vmul.f32 %v2220, %v2232
    %v2237 = vmul.f32 %v2221, %v2233
    %v2238 = vmul.f32 %v2222, %v2234
    %v2239 = vld [vmem:[%s10] sm:$0x3]
    %v2240 = vld [vmem:[%s11] sm:$0x3]
    %v2241 = vadd.f32 %v2235, %v2236
    %2242 = vadd.xlane.f32.xlu0 %v2241
    %v2243 = vpop.xlane.xlu0 %2242
    %v2244 = vadd.f32 %v2237, %v2238
    %2245 = vadd.xlane.f32.xlu0 %v2244
    %v2246 = vpop.xlane.xlu0 %2245
    %v2247 = vrcp.pop 256.0
    %v2248 = vmul.f32 %v2243, %v2247
    %v2249 = vmul.f32 %v2246, %v2247
    %v2250 = vsub.f32 %v2235, %v2248
    %v2251 = vsub.f32 %v2236, %v2248
    %v2252 = vsub.f32 %v2237, %v2249
    %v2253 = vsub.f32 %v2238, %v2249
    %v2254 = vmul.f32 %v2250, %v2250
    %v2255 = vmul.f32 %v2251, %v2251
    %v2256 = vmul.f32 %v2252, %v2252
    %v2257 = vmul.f32 %v2253, %v2253
    %v2258 = vadd.f32 %v2254, %v2255
    %2259 = vadd.xlane.f32.xlu0 %v2258
    %v2260 = vpop.xlane.xlu0 %2259
    %v2261 = vadd.f32 %v2256, %v2257
    %2262 = vadd.xlane.f32.xlu0 %v2261
    %v2263 = vpop.xlane.xlu0 %2262
    %v2264 = vmul.f32 %v2260, %v2247
    %v2265 = vmul.f32 %v2263, %v2247
    %v2266 = vadd.f32 %v2264, 1e-05
    %v2267 = vadd.f32 %v2265, 1e-05
    %v2268 = vrsqrt.pop %v2266
    %v2269 = vrsqrt.pop %v2267
    %v2270 = vmul.f32 %v2250, %v2268
    %v2271 = vmul.f32 %v2251, %v2268
    %v2272 = vmul.f32 %v2252, %v2269
    %v2273 = vmul.f32 %v2253, %v2269
    %v2275 = vlaneseq
    %v2276 = vshrl.u32 %v2275, 7
    %v2277 = vsub.s32 0, %v2276
    %v2278 = vrot.slane %v2239, %v2277
    %v2279 = vlaneseq
    %v2280 = vshrl.u32 %v2279, 7
    %v2281 = vsub.s32 1, %v2280
    %v2282 = vrot.slane %v2239, %v2281
    %v2285 = vmul.f32 %v2270, %v2278
    %v2286 = vmul.f32 %v2271, %v2282
    %v2287 = vmul.f32 %v2272, %v2278
    %v2288 = vmul.f32 %v2273, %v2282
    %v2290 = vlaneseq
    %v2291 = vshrl.u32 %v2290, 7
    %v2292 = vsub.s32 0, %v2291
    %v2293 = vrot.slane %v2240, %v2292
    %v2294 = vlaneseq
    %v2295 = vshrl.u32 %v2294, 7
    %v2296 = vsub.s32 1, %v2295
    %v2297 = vrot.slane %v2240, %v2296
    %v2300 = vadd.f32 %v2285, %v2293
    %v2301 = vadd.f32 %v2286, %v2297
    %v2302 = vadd.f32 %v2287, %v2293
    %v2303 = vadd.f32 %v2288, %v2297
    %v2304 = vld [vmem:[#allocation11] sm:$0xff]
    %v2305 = vld [vmem:[#allocation11 + $0x8] sm:$0xff]
    %v2306 = vld [vmem:[#allocation11 + $0x10] sm:$0xff]
    %v2307 = vld [vmem:[#allocation11 + $0x18] sm:$0xff]
    %v2308 = vld [vmem:[#allocation11 + $0x20] sm:$0xff]
    %v2309 = vld [vmem:[#allocation11 + $0x28] sm:$0xff]
    %v2310 = vld [vmem:[#allocation11 + $0x30] sm:$0xff]
    %v2311 = vld [vmem:[#allocation11 + $0x38] sm:$0xff]
    %v2312 = vld [vmem:[#allocation11 + $0x40] sm:$0xff]
    %v2313 = vld [vmem:[#allocation11 + $0x48] sm:$0xff]
    %v2314 = vld [vmem:[#allocation11 + $0x50] sm:$0xff]
    %v2315 = vld [vmem:[#allocation11 + $0x58] sm:$0xff]
    %v2316 = vld [vmem:[#allocation11 + $0x60] sm:$0xff]
    %v2317 = vld [vmem:[#allocation11 + $0x68] sm:$0xff]
    %v2318 = vld [vmem:[#allocation11 + $0x70] sm:$0xff]
    %v2319 = vld [vmem:[#allocation11 + $0x78] sm:$0xff]
    %v2320 = vld [vmem:[#allocation11 + $0x80] sm:$0xff]
    %v2321 = vld [vmem:[#allocation11 + $0x88] sm:$0xff]
    %v2322 = vld [vmem:[#allocation11 + $0x90] sm:$0xff]
    %v2323 = vld [vmem:[#allocation11 + $0x98] sm:$0xff]
    %v2324 = vld [vmem:[#allocation11 + $0xa0] sm:$0xff]
    %v2325 = vld [vmem:[#allocation11 + $0xa8] sm:$0xff]
    %v2326 = vld [vmem:[#allocation11 + $0xb0] sm:$0xff]
    %v2327 = vld [vmem:[#allocation11 + $0xb8] sm:$0xff]
    %v2328 = vld [vmem:[#allocation11 + $0xc0] sm:$0xff]
    %v2329 = vld [vmem:[#allocation11 + $0xc8] sm:$0xff]
    %v2330 = vld [vmem:[#allocation11 + $0xd0] sm:$0xff]
    %v2331 = vld [vmem:[#allocation11 + $0xd8] sm:$0xff]
    %v2332 = vld [vmem:[#allocation11 + $0xe0] sm:$0xff]
    %v2333 = vld [vmem:[#allocation11 + $0xe8] sm:$0xff]
    %v2334 = vld [vmem:[#allocation11 + $0xf0] sm:$0xff]
    %v2335 = vld [vmem:[#allocation11 + $0xf8] sm:$0xff]
    %v2336 = vld [vmem:[%s13] sm:$0x1]
    %v2338 = vlaneseq
    %v2339 = vshrl.u32 %v2338, 7
    %v2340 = vsub.s32 0, %v2339
    %v2341 = vrot.slane %v2336, %v2340
    %2343 = vmatprep.subr.mxu0 0.0
    %2344 = vmatpush1.msra.mxu0 %v2319
    %2345 = vmatprep.subr.mxu0 0.0
    %2346 = vmatpush1.msra.mxu0 %v2318
    %2347 = vmatprep.subr.mxu0 0.0
    %2348 = vmatpush1.msra.mxu0 %v2317
    %2349 = vmatprep.subr.mxu0 0.0
    %2350 = vmatpush1.msra.mxu0 %v2316
    %2351 = vmatprep.subr.mxu0 0.0
    %2352 = vmatpush1.msra.mxu0 %v2315
    %2353 = vmatprep.subr.mxu0 0.0
    %2354 = vmatpush1.msra.mxu0 %v2314
    %2355 = vmatprep.subr.mxu0 0.0
    %2356 = vmatpush1.msra.mxu0 %v2313
    %2357 = vmatprep.subr.mxu0 0.0
    %2358 = vmatpush1.msra.mxu0 %v2312
    %2359 = vmatprep.subr.mxu0 0.0
    %2360 = vmatpush1.msra.mxu0 %v2311
    %2361 = vmatprep.subr.mxu0 0.0
    %2362 = vmatpush1.msra.mxu0 %v2310
    %2363 = vmatprep.subr.mxu0 0.0
    %2364 = vmatpush1.msra.mxu0 %v2309
    %2365 = vmatprep.subr.mxu0 0.0
    %2366 = vmatpush1.msra.mxu0 %v2308
    %2367 = vmatprep.subr.mxu0 0.0
    %2368 = vmatpush1.msra.mxu0 %v2307
    %2369 = vmatprep.subr.mxu0 0.0
    %2370 = vmatpush1.msra.mxu0 %v2306
    %2371 = vmatprep.subr.mxu0 0.0
    %2372 = vmatpush1.msra.mxu0 %v2305
    %2373 = vmatprep.subr.mxu0 0.0
    %2374 = vmatpush1.msra.mxu0 %v2304
    %2375 = vmatprep.subr.mxu0 0.0
    %2376 = vmatpush2.msra.mxu0 %v2335
    %2377 = vmatprep.subr.mxu0 0.0
    %2378 = vmatpush2.msra.mxu0 %v2334
    %2379 = vmatprep.subr.mxu0 0.0
    %2380 = vmatpush2.msra.mxu0 %v2333
    %2381 = vmatprep.subr.mxu0 0.0
    %2382 = vmatpush2.msra.mxu0 %v2332
    %2383 = vmatprep.subr.mxu0 0.0
    %2384 = vmatpush2.msra.mxu0 %v2331
    %2385 = vmatprep.subr.mxu0 0.0
    %2386 = vmatpush2.msra.mxu0 %v2330
    %2387 = vmatprep.subr.mxu0 0.0
    %2388 = vmatpush2.msra.mxu0 %v2329
    %2389 = vmatprep.subr.mxu0 0.0
    %2390 = vmatpush2.msra.mxu0 %v2328
    %2391 = vmatprep.subr.mxu0 0.0
    %2392 = vmatpush2.msra.mxu0 %v2327
    %2393 = vmatprep.subr.mxu0 0.0
    %2394 = vmatpush2.msra.mxu0 %v2326
    %2395 = vmatprep.subr.mxu0 0.0
    %2396 = vmatpush2.msra.mxu0 %v2325
    %2397 = vmatprep.subr.mxu0 0.0
    %2398 = vmatpush2.msra.mxu0 %v2324
    %2399 = vmatprep.subr.mxu0 0.0
    %2400 = vmatpush2.msra.mxu0 %v2323
    %2401 = vmatprep.subr.mxu0 0.0
    %2402 = vmatpush2.msra.mxu0 %v2322
    %2403 = vmatprep.subr.mxu0 0.0
    %2404 = vmatpush2.msra.mxu0 %v2321
    %2405 = vmatprep.subr.mxu0 0.0
    %2406 = vmatpush2.msra.mxu0 %v2320
    %2407 = vmatprep.mubr.f32.mxu0 %v2301
    %2408 = vmatmul.mubr.f32.gmra.mxu0 %v2300
    %v2409 = vpop.f32.mrf.mxu0
    %v2410 = vadd.f32 %v2341, %v2409
    %v2411 = vpop.f32.mrf.mxu0
    %2412 = vmatprep.mubr.f32.mxu0 %v2303
    %2413 = vmatmul.mubr.f32.gmra.mxu0 %v2302
    %v2414 = vpop.f32.mrf.mxu0
    %v2415 = vadd.f32 %v2341, %v2414
    %v2416 = vpop.f32.mrf.mxu0
    %2417 = vdwg.mxu0
    %v2418 = vadd.f32 %v2410, %v1994
    %v2419 = vadd.f32 %v2415, %v1995
    %v2420 = vld [vmem:[%s14] sm:$0x1]
    %v2421 = vld [vmem:[%s15] sm:$0x1]
    %2422 = vadd.xlane.f32.xlu0 %v2418
    %v2423 = vpop.xlane.xlu0 %2422
    %2424 = vadd.xlane.f32.xlu0 %v2419
    %v2425 = vpop.xlane.xlu0 %2424
    %v2426 = vmul.f32 %v2423, %v2013
    %v2427 = vmul.f32 %v2425, %v2013
    %v2428 = vsub.f32 %v2418, %v2426
    %v2429 = vsub.f32 %v2419, %v2427
    %v2430 = vmul.f32 %v2428, %v2428
    %v2431 = vmul.f32 %v2429, %v2429
    %2432 = vadd.xlane.f32.xlu0 %v2430
    %v2433 = vpop.xlane.xlu0 %2432
    %2434 = vadd.xlane.f32.xlu0 %v2431
    %v2435 = vpop.xlane.xlu0 %2434
    %v2436 = vmul.f32 %v2433, %v2013
    %v2437 = vmul.f32 %v2435, %v2013
    %v2438 = vadd.f32 %v2436, 1e-05
    %v2439 = vadd.f32 %v2437, 1e-05
    %v2440 = vrsqrt.pop %v2438
    %v2441 = vrsqrt.pop %v2439
    %v2442 = vmul.f32 %v2428, %v2440
    %v2443 = vmul.f32 %v2429, %v2441
    %v2445 = vlaneseq
    %v2446 = vshrl.u32 %v2445, 7
    %v2447 = vsub.s32 0, %v2446
    %v2448 = vrot.slane %v2420, %v2447
    %v2450 = vmul.f32 %v2442, %v2448
    %v2451 = vmul.f32 %v2443, %v2448
    %v2453 = vlaneseq
    %v2454 = vshrl.u32 %v2453, 7
    %v2455 = vsub.s32 0, %v2454
    %v2456 = vrot.slane %v2421, %v2455
    %v2458 = vadd.f32 %v2450, %v2456
    %v2459 = vadd.f32 %v2451, %v2456
    %2460 = vst [vmem:[#allocation13] sm:$0xff] %v2458
    %2461 = vst [vmem:[#allocation13 + $0x8] sm:$0xff] %v2459
    // Predicated region
    $region90: #{tpu_custom_call.1} parent=1 // pred_check
      _
    $region91: #{tpu_custom_call.1} parent=1 // pred_check_branch
      %2463 = sbr.rel (0) target = $region93
    $region92: #{tpu_custom_call.1} parent=1 // pred_region
      %s2465 = ssub.s32 256, 256
      %2466 = vsyncadd [#allocation4], %s2465
      %s2467 = sshll.u32 [#allocation13], 4
      %s2468 = int_to_ptr.vmem [resolvable:$true] %s2467
      %2473 = dma.vmem_to_hbm [thread:$0]  %s2468, 256, %s16, [#allocation4], 128, 128, 8
    $region93: #{tpu_custom_call.1} parent=1 // pred_fallthru
      _
    // Predicated region
    $region94: #{tpu_custom_call.1} parent=1 // pred_check
      _
    $region95: #{tpu_custom_call.1} parent=1 // pred_check_branch
      %2475 = sbr.rel (0) target = $region97
    $region96: #{tpu_custom_call.1} parent=1 // pred_region
      %2476 = dma.done [#allocation4], 256
    $region97: #{tpu_custom_call.1} parent=1 // pred_fallthru
      _
    %2477 = vsyncpa [#allocation3], 1
    %2478 = vsyncpa [#allocation6], 1
    %2479 = vsyncpa [#allocation9], 1
    %2480 = vsyncpa [#allocation12], 1
    %2481 = vsyncpa [#allocation4], 1

</llo_original>
